<compile_context>
chip_gen: v7x
topology: tpu7x:2x2x1
jax: 0.10.0
libtpu: 0.0.40
codegen_flags: <defaults>
</compile_context>

<pallas_src>
import math
import functools

import jax
import jax.numpy as jnp
from jax import lax
from jax.experimental import pallas as pl
from jax.experimental.pallas import tpu as pltpu

# MXU input dtype: bf16 is native on v5e/v6e/v7x (f32 matmul is the slow
# multi-pass path on all three).  Set to jnp.float32 to bit-match torch.
MM_DTYPE = jnp.bfloat16
LN_EPS = 1e-5


# ----------------------------------------------------------------------------
# hardware-aware sizing
# ----------------------------------------------------------------------------
_VMEM_CAP = None


def _vmem_cap():
    global _VMEM_CAP
    if _VMEM_CAP is None:
        try:
            _VMEM_CAP = int(pltpu.get_tpu_info().vmem_capacity_bytes)
        except Exception:
            _VMEM_CAP = 64 * 1024 * 1024          # conservative (v7x) fallback
    return _VMEM_CAP


def _vmem_limit():
    # ~96 MiB on 128 MiB parts (v5e/v6e), ~48 MiB on 64 MiB/TC v7x.
    return int(min(_vmem_cap() * 3 // 4, 100 * 1024 * 1024))


def _default_row_tile(n_seq):
    base = 1024 if _vmem_cap() >= 96 * 1024 * 1024 else 512
    return max(128, base // max(n_seq, 1))


def _choose_tile(P, target):
    """Packed-row tile T (multiple of 8) and padded extent.  Guarantees >=2
    grid steps when possible so the 'parallel' axis shards over v7x's 2 TCs."""
    if P <= 8:
        return P, P
    cap = -(-P // 2)                      # ceil(P/2)  -> at least 2 grid steps
    cap = -(-cap // 8) * 8
    T = min(max(8, (target // 8) * 8), cap)
    P_pad = -(-P // T) * T
    return T, P_pad


def _rep(shape):
    """Replicated (broadcast) BlockSpec: constant index_map, DMA'd once."""
    n = len(shape)
    return pl.BlockSpec(shape, lambda *args, _n=n: (0,) * _n)


# ----------------------------------------------------------------------------
# constant matrices (built in the wrapper, passed as inputs)
# ----------------------------------------------------------------------------
def _gavg_matrix(GD, D):
    """(GD, GD) f32 matrix averaging each packed group of D lanes."""
    i = jnp.arange(GD)
    return jnp.where(i[:, None] // D == i[None, :] // D,
                     1.0 / D, 0.0).astype(jnp.float32)


def _hsum_hbc(G, n_head, c):
    """Head-sum (GHC, GH) and head-broadcast (GH, GHC) 0/1 matrices."""
    GHC, GH = G * n_head * c, G * n_head
    ghc = jnp.arange(GHC)
    gh = jnp.arange(GH)
    hsum = (ghc[:, None] // c == gh[None, :]).astype(MM_DTYPE)
    return hsum, hsum.T


# ----------------------------------------------------------------------------
# kernel bodies
# ----------------------------------------------------------------------------
def _ln_hat(x, gavg):
    """LayerNorm (x - mu) * rsqrt(var + eps) per packed channel group.
    Affine (gamma/beta) is pre-folded into the downstream weights.  Stats f32."""
    mu = jnp.dot(x, gavg, preferred_element_type=jnp.float32)
    d = x - mu
    var = jnp.dot(d * d, gavg, preferred_element_type=jnp.float32)
    return d * lax.rsqrt(var + LN_EPS)


def _ssatt_block(zb, gavg, hsum, hbc, wqkvg, bqkvg, wo, bo, *, sq_c):
    """z + ssAttention(z) on a (N, T, GD) lane-packed block."""
    N, T, GD = zb.shape
    GHC = wo.shape[0]
    GH = hsum.shape[1]

    x = zb.reshape(N * T, GD)
    xh = _ln_hat(x, gavg)

    # fused Q|K|V|G projection: one big MXU matmul (LN affine folded in).
    proj = jnp.dot(xh.astype(MM_DTYPE), wqkvg,
                   preferred_element_type=jnp.float32) + bqkvg    # (N*T, 4GHC)
    q = proj[:, 0 * GHC:1 * GHC].reshape(N, T, GHC)
    k = proj[:, 1 * GHC:2 * GHC].reshape(N, T, GHC)
    v = proj[:, 2 * GHC:3 * GHC].reshape(N, T, GHC)
    gate = jax.nn.sigmoid(proj[:, 3 * GHC:4 * GHC]).reshape(N, T, GHC)

    # logits over all (i, j) in ONE hsum matmul (no per-j Python loop).
    qk = q[:, None, :, :] * k[None, :, :, :]                      # (N,N,T,GHC)
    logits = jnp.dot(qk.reshape(N * N * T, GHC).astype(MM_DTYPE), hsum,
                     preferred_element_type=jnp.float32)
    logits = logits.reshape(N, N, T, GH) * sq_c                   # (i,j,T,GH)

    # softmax over the j axis.
    m = jnp.max(logits, axis=1, keepdims=True)
    p = jnp.exp(logits - m)
    den = jnp.sum(p, axis=1, keepdims=True)
    prob = p * pl.reciprocal(den, approx=True)                    # (N,N,T,GH)

    # head -> channel broadcast in ONE hbc matmul, then value mix over j.
    att = jnp.dot(prob.reshape(N * N * T, GH).astype(MM_DTYPE), hbc,
                  preferred_element_type=jnp.float32).reshape(N, N, T, GHC)
    o = jnp.sum(att * v[None, :, :, :], axis=1) * gate            # (N,T,GHC)

    out = jnp.dot(o.reshape(N * T, GHC).astype(MM_DTYPE), wo,
                  preferred_element_type=jnp.float32) + bo
    return zb + out.reshape(N, T, GD)                             # residual


def _trans_block(x, gavg, w1, b1, w2, b2):
    """x + PairTrans(x) on (rows, GD) lane-packed rows (LN affine folded)."""
    xh = _ln_hat(x, gavg)
    h = jnp.maximum(jnp.dot(xh.astype(MM_DTYPE), w1,
                            preferred_element_type=jnp.float32) + b1, 0.0)
    y = jnp.dot(h.astype(MM_DTYPE), w2,
                preferred_element_type=jnp.float32) + b2
    return x + y                                                  # residual


def _ssatt_trans_kernel(z_ref, gavg_ref, hsum_ref, hbc_ref,
                        wqkvg_ref, bqkvg_ref, wo_ref, bo_ref,
                        w1_ref, b1_ref, w2_ref, b2_ref, o_ref, *, sq_c):
    """Fused: z1 = z + ssAttention(z); out = z1 + PairTrans(z1)."""
    zb = z_ref[...]
    N, T, GD = zb.shape
    z1 = _ssatt_block(zb, gavg_ref[...], hsum_ref[...], hbc_ref[...],
                      wqkvg_ref[...], bqkvg_ref[...], wo_ref[...], bo_ref[...],
                      sq_c=sq_c)
    z2 = _trans_block(z1.reshape(N * T, GD), gavg_ref[...],
                      w1_ref[...], b1_ref[...], w2_ref[...], b2_ref[...])
    o_ref[...] = z2.reshape(N, T, GD)


def _pair_trans_kernel(x_ref, gavg_ref, w1_ref, b1_ref, w2_ref, b2_ref, o_ref):
    o_ref[...] = _trans_block(x_ref[...], gavg_ref[...], w1_ref[...],
                              b1_ref[...], w2_ref[...], b2_ref[...])


# ----------------------------------------------------------------------------
# weight preparation (kron block-diagonal packing + LayerNorm-affine folding)
# ----------------------------------------------------------------------------
def _prep_ssatt(p, G):
    D, HC = p['wq'].shape
    GHC = G * HC
    eye = jnp.eye(G, dtype=jnp.float32)
    wqkvg = jnp.concatenate([jnp.kron(eye, p['wq']), jnp.kron(eye, p['wk']),
                             jnp.kron(eye, p['wv']), jnp.kron(eye, p['wg'])],
                            axis=1)                               # (GD, 4*GHC)
    ln_g = jnp.tile(p['ln_g'].reshape(-1), G)
    ln_b = jnp.tile(p['ln_b'].reshape(-1), G)
    bqkvg = ln_b @ wqkvg                                          # fold LN beta
    bqkvg = bqkvg.at[3 * GHC:].add(jnp.tile(p['bg'].reshape(-1), G))
    wqkvg = (ln_g[:, None] * wqkvg).astype(MM_DTYPE)              # fold LN gamma
    wo = jnp.kron(eye, p['wo']).astype(MM_DTYPE)                  # (GHC, GD)
    bo = jnp.tile(p['bo'].reshape(-1), G)[None]                   # (1, GD)
    return wqkvg, bqkvg[None], wo, bo


def _prep_trans(p, G):
    eye = jnp.eye(G, dtype=jnp.float32)
    w1 = jnp.kron(eye, p['w1'])                                   # (GD, GDh)
    ln_g = jnp.tile(p['ln_g'].reshape(-1), G)
    ln_b = jnp.tile(p['ln_b'].reshape(-1), G)
    b1 = jnp.tile(p['b1'].reshape(-1), G) + ln_b @ w1             # fold LN beta
    w1 = (ln_g[:, None] * w1).astype(MM_DTYPE)                    # fold LN gamma
    w2 = jnp.kron(eye, p['w2']).astype(MM_DTYPE)                  # (GDh, GD)
    b2 = jnp.tile(p['b2'].reshape(-1), G)[None]
    return w1, b1[None], w2, b2


# ----------------------------------------------------------------------------
# Pallas wrappers
# ----------------------------------------------------------------------------
def ssatt_pair_trans_pallas(z, p_att, p_trans, n_head=8, c=8, row_tile=None):
    """Returns z2 + PairTrans(z2) where z2 = z + ssAttention(z), fused."""
    N, L, L2, D = z.shape
    HC = n_head * c
    G = 128 // math.gcd(D, 128)
    GD, GHC, GH = G * D, G * HC, G * n_head
    GDh = G * p_trans['w1'].shape[1]

    wqkvg, bqkvg, wo, bo = _prep_ssatt(p_att, G)
    w1, b1, w2, b2 = _prep_trans(p_trans, G)
    hsum, hbc = _hsum_hbc(G, n_head, c)
    gavg = _gavg_matrix(GD, D)

    M2 = L * L2
    z2 = z.reshape(N, M2, D)
    P = -(-M2 // G)
    if row_tile is None:
        row_tile = _default_row_tile(N)
    T, P_pad = _choose_tile(P, row_tile)
    pad = P_pad * G - M2
    if pad:
        z2 = jnp.pad(z2, ((0, 0), (0, pad), (0, 0)))
    zp = z2.reshape(N, P_pad, GD)

    kernel = functools.partial(_ssatt_trans_kernel, sq_c=1.0 / math.sqrt(c))
    out = pl.pallas_call(
        kernel,
        out_shape=jax.ShapeDtypeStruct((N, P_pad, GD), jnp.float32),
        grid=(P_pad // T,),
        in_specs=[
            pl.BlockSpec((N, T, GD), lambda t: (0, t, 0)),
            _rep((GD, GD)),
            _rep((GHC, GH)), _rep((GH, GHC)),
            _rep((GD, 4 * GHC)), _rep((1, 4 * GHC)),
            _rep((GHC, GD)), _rep((1, GD)),
            _rep((GD, GDh)), _rep((1, GDh)),
            _rep((GDh, GD)), _rep((1, GD)),
        ],
        out_specs=pl.BlockSpec((N, T, GD), lambda t: (0, t, 0)),
        compiler_params=pltpu.CompilerParams(
            dimension_semantics=("parallel",),
            vmem_limit_bytes=_vmem_limit()),
    )(zp, gavg, hsum, hbc, wqkvg, bqkvg, wo, bo, w1, b1, w2, b2)

    out = out.reshape(N, P_pad * G, D)
    if pad:
        out = out[:, :M2]
    return out.reshape(N, L, L2, D)


def pair_trans_pallas(z, p, row_tile=None):
    """Returns z + PairTrans(z) (residual fused in the kernel)."""
    N, L, L2, D = z.shape
    G = 128 // math.gcd(D, 128)
    GD = G * D
    GDh = G * p['w1'].shape[1]

    w1, b1, w2, b2 = _prep_trans(p, G)
    gavg = _gavg_matrix(GD, D)

    M = N * L * L2
    x = z.reshape(M, D)
    P = -(-M // G)
    if row_tile is None:
        row_tile = 2 * _default_row_tile(1)
    T, P_pad = _choose_tile(P, row_tile)
    pad = P_pad * G - M
    if pad:
        x = jnp.pad(x, ((0, pad), (0, 0)))
    xp = x.reshape(P_pad, GD)

    out = pl.pallas_call(
        _pair_trans_kernel,
        out_shape=jax.ShapeDtypeStruct((P_pad, GD), jnp.float32),
        grid=(P_pad // T,),
        in_specs=[
            pl.BlockSpec((T, GD), lambda i: (i, 0)),
            _rep((GD, GD)),
            _rep((GD, GDh)), _rep((1, GDh)),
            _rep((GDh, GD)), _rep((1, GD)),
        ],
        out_specs=pl.BlockSpec((T, GD), lambda i: (i, 0)),
        compiler_params=pltpu.CompilerParams(
            dimension_semantics=("parallel",),
            vmem_limit_bytes=_vmem_limit()),
    )(xp, gavg, w1, b1, w2, b2)

    out = out.reshape(P_pad * G, D)
    if pad:
        out = out[:M]
    return out.reshape(N, L, L2, D)


# ----------------------------------------------------------------------------
# zBlock (EvoPair.*) — plain JAX, standard AlphaFold2 formulations.
# TODO(synk): EvoPair.TriOut/TriIn/TriAttStart/TriAttEnd source was not
#             provided; standard AF2 triangle-update semantics are used and
#             left in plain JAX (would need flash-style Pallas kernels for
#             realistic L, where they dominate wall-clock).
# ----------------------------------------------------------------------------
def _layer_norm(x, g, b, eps=LN_EPS):
    mu = jnp.mean(x, axis=-1, keepdims=True)
    var = jnp.mean((x - mu) ** 2, axis=-1, keepdims=True)
    return (x - mu) * lax.rsqrt(var + eps) * g + b


def tri_mul(z, p, outgoing):
    zn = _layer_norm(z, p['ln_g'], p['ln_b'])
    a = jax.nn.sigmoid(zn @ p['wag'] + p['bag']) * (zn @ p['wa'])
    b = jax.nn.sigmoid(zn @ p['wbg'] + p['bbg']) * (zn @ p['wb'])
    if outgoing:
        x = jnp.einsum('nikc,njkc->nijc', a, b)
    else:
        x = jnp.einsum('nkic,nkjc->nijc', a, b)
    xn = _layer_norm(x, p['ln2_g'], p['ln2_b'])
    g = jax.nn.sigmoid(zn @ p['wg'] + p['bg'])
    return g * (xn @ p['wo'] + p['bo'])


def tri_att(z, p, start):
    N, L, _, D = z.shape
    H, C = p['H'], p['C']
    zn = _layer_norm(z, p['ln_g'], p['ln_b'])
    q = (zn @ p['wq']).reshape(N, L, L, H, C)
    k = (zn @ p['wk']).reshape(N, L, L, H, C)
    v = (zn @ p['wv']).reshape(N, L, L, H, C)
    bpair = zn @ p['wb']                                      # (N, L, L, H)
    g = jax.nn.sigmoid(zn @ p['wg'] + p['bg']).reshape(N, L, L, H, C)
    scale = 1.0 / math.sqrt(C)
    if start:
        logits = jnp.einsum('nijhc,nikhc->nijkh', q, k) * scale \
                 + bpair[:, None, :, :, :]
        att = jax.nn.softmax(logits, axis=3)
        o = jnp.einsum('nijkh,nikhc->nijhc', att, v)
    else:
        logits = jnp.einsum('nijhc,nkjhc->nijkh', q, k) * scale \
                 + jnp.transpose(bpair, (0, 2, 1, 3))[:, :, None, :, :]
        att = jax.nn.softmax(logits, axis=3)
        o = jnp.einsum('nijkh,nkjhc->nijhc', att, v)
    o = (o * g).reshape(N, L, L, H * C)
    return o @ p['wo'] + p['bo']


def zblock_forward(z, p):
    z = z + tri_mul(z, p['triout'], outgoing=True)
    z = z + tri_mul(z, p['triin'], outgoing=False)
    z = z + tri_att(z, p['tristart'], start=True)
    z = z + tri_att(z, p['triend'], start=False)
    z = pair_trans_pallas(z, p['trans'])              # residual fused in kernel
    return z


# ----------------------------------------------------------------------------
# ssModule forward
# ----------------------------------------------------------------------------
def ss_module_forward(ss, params):
    # emblinear: nn.Linear(1, z_dim) applied to ss[..., None]
    z = ss[..., None] * params['emb_w'] + params['emb_b']       # (N, L, L, D)
    z = zblock_forward(z, params['block1'])                     # batchz(block1)
    # ssatt_i + trans_i pairs fused (residuals inside the kernel)
    z = ssatt_pair_trans_pallas(z, params['ssatt1'], params['trans1'])
    z = ssatt_pair_trans_pallas(z, params['ssatt2'], params['trans2'])
    z = ssatt_pair_trans_pallas(z, params['ssatt3'], params['trans3'])
    return z


# ----------------------------------------------------------------------------
# deterministic parameter construction
# ----------------------------------------------------------------------------
def init_params(key, D, n_head=8, c=8, tri_head=4, tri_c=8, trans_expand=4):
    HC = n_head * c
    keys = iter(jax.random.split(key, 256))

    def nk():
        return next(keys)

    def dense(fi, fo):
        return jax.random.normal(nk(), (fi, fo), jnp.float32) / math.sqrt(fi)

    def ssatt_params():
        return dict(ln_g=jnp.ones((1, D)), ln_b=jnp.zeros((1, D)),
                    wq=dense(D, HC), wk=dense(D, HC), wv=dense(D, HC),
                    wg=dense(D, HC), bg=jnp.zeros((1, HC)),
                    wo=dense(HC, D), bo=jnp.zeros((1, D)))

    def trans_params(expand):
        Dh = expand * D
        return dict(ln_g=jnp.ones((1, D)), ln_b=jnp.zeros((1, D)),
                    w1=dense(D, Dh), b1=jnp.zeros((1, Dh)),
                    w2=dense(Dh, D), b2=jnp.zeros((1, D)))

    def trimul_params():
        return dict(ln_g=jnp.ones((D,)), ln_b=jnp.zeros((D,)),
                    wag=dense(D, D), bag=jnp.zeros((D,)), wa=dense(D, D),
                    wbg=dense(D, D), bbg=jnp.zeros((D,)), wb=dense(D, D),
                    ln2_g=jnp.ones((D,)), ln2_b=jnp.zeros((D,)),
                    wg=dense(D, D), bg=jnp.zeros((D,)),
                    wo=dense(D, D), bo=jnp.zeros((D,)))

    def triatt_params():
        HCt = tri_head * tri_c
        return dict(H=tri_head, C=tri_c,
                    ln_g=jnp.ones((D,)), ln_b=jnp.zeros((D,)),
                    wq=dense(D, HCt), wk=dense(D, HCt), wv=dense(D, HCt),
                    wb=dense(D, tri_head),
                    wg=dense(D, HCt), bg=jnp.zeros((HCt,)),
                    wo=dense(HCt, D), bo=jnp.zeros((D,)))

    block1 = dict(triout=trimul_params(), triin=trimul_params(),
                  tristart=triatt_params(), triend=triatt_params(),
                  trans=trans_params(trans_expand))

    # NOTE: block2 exists in __init__ but is never used in forward -> omitted.
    return dict(emb_w=jax.random.normal(nk(), (D,), jnp.float32),
                emb_b=jnp.zeros((D,)),
                block1=block1,
                ssatt1=ssatt_params(), trans1=trans_params(1),
                ssatt2=ssatt_params(), trans2=trans_params(1),
                ssatt3=ssatt_params(), trans3=trans_params(1))


# ----------------------------------------------------------------------------
if __name__ == "__main__":
    N, L, D = 2, 8, 32          # small shapes: N seqs, LxL pair map, z_dim=32
    key = jax.random.PRNGKey(0)
    k_in, k_par = jax.random.split(key)
    ss = jax.random.normal(k_in, (N, L, L), jnp.float32)
    params = init_params(k_par, D)

    fwd = jax.jit(lambda s: ss_module_forward(s, params))
    out = fwd(ss)
    jax.block_until_ready(out)
    assert out.shape == (N, L, L, D), out.shape
    assert bool(jnp.all(jnp.isfinite(out)))
    print("KERNEL_OK")
</pallas_src>

<mosaic_0001>
module attributes {stable_mosaic.version = 11 : i64} {
  func.func @_pair_trans_kernel(%arg0: i32, %arg1: memref<16x128xf32, #tpu.memory_space<vmem>>, %arg2: memref<128x128xf32, #tpu.memory_space<vmem>>, %arg3: memref<128x512xbf16, #tpu.memory_space<vmem>>, %arg4: memref<1x512xf32, #tpu.memory_space<vmem>>, %arg5: memref<512x128xbf16, #tpu.memory_space<vmem>>, %arg6: memref<1x128xf32, #tpu.memory_space<vmem>>, %arg7: memref<16x128xf32, #tpu.memory_space<vmem>>) attributes {dimension_semantics = [#tpu.dimension_semantics<parallel>], iteration_bounds = array<i64: 2>, scalar_prefetch = 0 : i64, scratch_operands = 0 : i64, tpu.core_type = #tpu.core_type<tc>, window_params = [{transform_indices = @transform_0, window_bounds = array<i64: 16, 128>}, {pipeline_mode = #tpu.pipeline_mode<synchronous>, transform_indices = @transform_1, window_bounds = array<i64: 128, 128>}, {pipeline_mode = #tpu.pipeline_mode<synchronous>, transform_indices = @transform_2, window_bounds = array<i64: 128, 512>}, {pipeline_mode = #tpu.pipeline_mode<synchronous>, transform_indices = @transform_3, window_bounds = array<i64: 1, 512>}, {pipeline_mode = #tpu.pipeline_mode<synchronous>, transform_indices = @transform_4, window_bounds = array<i64: 512, 128>}, {pipeline_mode = #tpu.pipeline_mode<synchronous>, transform_indices = @transform_5, window_bounds = array<i64: 1, 128>}, {transform_indices = @transform_6, window_bounds = array<i64: 16, 128>}]} {
    %c0 = arith.constant 0 : index
    %c0_0 = arith.constant 0 : index
    %0 = vector.load %arg1[%c0, %c0_0] : memref<16x128xf32, #tpu.memory_space<vmem>>, vector<16x128xf32>
    %c0_1 = arith.constant 0 : index
    %c0_2 = arith.constant 0 : index
    %1 = vector.load %arg2[%c0_1, %c0_2] : memref<128x128xf32, #tpu.memory_space<vmem>>, vector<128x128xf32>
    %c0_3 = arith.constant 0 : index
    %c0_4 = arith.constant 0 : index
    %2 = vector.load %arg3[%c0_3, %c0_4] : memref<128x512xbf16, #tpu.memory_space<vmem>>, vector<128x512xbf16>
    %c0_5 = arith.constant 0 : index
    %c0_6 = arith.constant 0 : index
    %3 = vector.load %arg4[%c0_5, %c0_6] : memref<1x512xf32, #tpu.memory_space<vmem>>, vector<1x512xf32>
    %c0_7 = arith.constant 0 : index
    %c0_8 = arith.constant 0 : index
    %4 = vector.load %arg5[%c0_7, %c0_8] : memref<512x128xbf16, #tpu.memory_space<vmem>>, vector<512x128xbf16>
    %c0_9 = arith.constant 0 : index
    %c0_10 = arith.constant 0 : index
    %5 = vector.load %arg6[%c0_9, %c0_10] : memref<1x128xf32, #tpu.memory_space<vmem>>, vector<1x128xf32>
    %cst = arith.constant dense<0.000000e+00> : vector<16x128xf32>
    %6 = tpu.matmul %0, %1, %cst {dimension_numbers = #tpu.dot_dimension_numbers<[1], [0], [0], [1], [0, 0, 1, 1], [], []>} : vector<16x128xf32>, vector<128x128xf32>, vector<16x128xf32> -> vector<16x128xf32>
    %7 = arith.subf %0, %6 : vector<16x128xf32>
    %8 = arith.mulf %7, %7 : vector<16x128xf32>
    %cst_11 = arith.constant dense<0.000000e+00> : vector<16x128xf32>
    %9 = tpu.matmul %8, %1, %cst_11 {dimension_numbers = #tpu.dot_dimension_numbers<[1], [0], [0], [1], [0, 0, 1, 1], [], []>} : vector<16x128xf32>, vector<128x128xf32>, vector<16x128xf32> -> vector<16x128xf32>
    %cst_12 = arith.constant 9.99999974E-6 : f32
    %10 = vector.broadcast %cst_12 : f32 to vector<16x128xf32>
    %11 = arith.addf %9, %10 : vector<16x128xf32>
    %12 = math.rsqrt %11 : vector<16x128xf32>
    %13 = arith.mulf %7, %12 : vector<16x128xf32>
    %14 = arith.truncf %13 : vector<16x128xf32> to vector<16x128xbf16>
    %cst_13 = arith.constant dense<0.000000e+00> : vector<16x512xf32>
    %15 = tpu.matmul %14, %2, %cst_13 {dimension_numbers = #tpu.dot_dimension_numbers<[1], [0], [0], [1], [0, 0, 1, 1], [], []>} : vector<16x128xbf16>, vector<128x512xbf16>, vector<16x512xf32> -> vector<16x512xf32>
    %16 = vector.broadcast %3 : vector<1x512xf32> to vector<16x512xf32>
    %17 = arith.addf %15, %16 : vector<16x512xf32>
    %cst_14 = arith.constant 0.000000e+00 : f32
    %18 = vector.broadcast %cst_14 : f32 to vector<16x512xf32>
    %19 = arith.maximumf %17, %18 : vector<16x512xf32>
    %20 = arith.truncf %19 : vector<16x512xf32> to vector<16x512xbf16>
    %cst_15 = arith.constant dense<0.000000e+00> : vector<16x128xf32>
    %21 = tpu.matmul %20, %4, %cst_15 {dimension_numbers = #tpu.dot_dimension_numbers<[1], [0], [0], [1], [0, 0, 1, 1], [], []>} : vector<16x512xbf16>, vector<512x128xbf16>, vector<16x128xf32> -> vector<16x128xf32>
    %22 = vector.broadcast %5 : vector<1x128xf32> to vector<16x128xf32>
    %23 = arith.addf %21, %22 : vector<16x128xf32>
    %24 = arith.addf %0, %23 : vector<16x128xf32>
    %c0_16 = arith.constant 0 : index
    %c0_17 = arith.constant 0 : index
    %25 = vector.load %arg7[%c0_16, %c0_17] : memref<16x128xf32, #tpu.memory_space<vmem>>, vector<16x128xf32>
    tpu.vector_store %arg7[%c0_16, %c0_17], %24 {strides = array<i32>} : memref<16x128xf32, #tpu.memory_space<vmem>>, vector<16x128xf32>,
    return
  }
  func.func @transform_0(%arg0: i32) -> (i32, i32) {
    %c0_i32 = arith.constant 0 : i32
    %c0_i32_0 = arith.constant 0 : i32
    return %arg0, %c0_i32 : i32, i32
  }
  func.func @transform_1(%arg0: i32) -> (i32, i32) {
    %c0_i32 = arith.constant 0 : i32
    %c0_i32_0 = arith.constant 0 : i32
    %c0_i32_1 = arith.constant 0 : i32
    return %c0_i32, %c0_i32_0 : i32, i32
  }
  func.func @transform_2(%arg0: i32) -> (i32, i32) {
    %c0_i32 = arith.constant 0 : i32
    %c0_i32_0 = arith.constant 0 : i32
    %c0_i32_1 = arith.constant 0 : i32
    return %c0_i32, %c0_i32_0 : i32, i32
  }
  func.func @transform_3(%arg0: i32) -> (i32, i32) {
    %c0_i32 = arith.constant 0 : i32
    %c0_i32_0 = arith.constant 0 : i32
    %c0_i32_1 = arith.constant 0 : i32
    return %c0_i32, %c0_i32_0 : i32, i32
  }
  func.func @transform_4(%arg0: i32) -> (i32, i32) {
    %c0_i32 = arith.constant 0 : i32
    %c0_i32_0 = arith.constant 0 : i32
    %c0_i32_1 = arith.constant 0 : i32
    return %c0_i32, %c0_i32_0 : i32, i32
  }
  func.func @transform_5(%arg0: i32) -> (i32, i32) {
    %c0_i32 = arith.constant 0 : i32
    %c0_i32_0 = arith.constant 0 : i32
    %c0_i32_1 = arith.constant 0 : i32
    return %c0_i32, %c0_i32_0 : i32, i32
  }
  func.func @transform_6(%arg0: i32) -> (i32, i32) {
    %c0_i32 = arith.constant 0 : i32
    %c0_i32_0 = arith.constant 0 : i32
    return %arg0, %c0_i32 : i32, i32
  }
}

module attributes {stable_mosaic.version = 11 : i64} {
  func.func @_ssatt_trans_kernel(%arg0: i32, %arg1: memref<2x8x128xf32, #tpu.memory_space<vmem>>, %arg2: memref<128x128xf32, #tpu.memory_space<vmem>>, %arg3: memref<256x32xbf16, #tpu.memory_space<vmem>>, %arg4: memref<32x256xbf16, #tpu.memory_space<vmem>>, %arg5: memref<128x1024xbf16, #tpu.memory_space<vmem>>, %arg6: memref<1x1024xf32, #tpu.memory_space<vmem>>, %arg7: memref<256x128xbf16, #tpu.memory_space<vmem>>, %arg8: memref<1x128xf32, #tpu.memory_space<vmem>>, %arg9: memref<128x128xbf16, #tpu.memory_space<vmem>>, %arg10: memref<1x128xf32, #tpu.memory_space<vmem>>, %arg11: memref<128x128xbf16, #tpu.memory_space<vmem>>, %arg12: memref<1x128xf32, #tpu.memory_space<vmem>>, %arg13: memref<2x8x128xf32, #tpu.memory_space<vmem>>) attributes {dimension_semantics = [#tpu.dimension_semantics<parallel>], iteration_bounds = array<i64: 2>, scalar_prefetch = 0 : i64, scratch_operands = 0 : i64, tpu.core_type = #tpu.core_type<tc>, window_params = [{transform_indices = @transform_0, window_bounds = array<i64: 2, 8, 128>}, {pipeline_mode = #tpu.pipeline_mode<synchronous>, transform_indices = @transform_1, window_bounds = array<i64: 128, 128>}, {pipeline_mode = #tpu.pipeline_mode<synchronous>, transform_indices = @transform_2, window_bounds = array<i64: 256, 32>}, {pipeline_mode = #tpu.pipeline_mode<synchronous>, transform_indices = @transform_3, window_bounds = array<i64: 32, 256>}, {pipeline_mode = #tpu.pipeline_mode<synchronous>, transform_indices = @transform_4, window_bounds = array<i64: 128, 1024>}, {pipeline_mode = #tpu.pipeline_mode<synchronous>, transform_indices = @transform_5, window_bounds = array<i64: 1, 1024>}, {pipeline_mode = #tpu.pipeline_mode<synchronous>, transform_indices = @transform_6, window_bounds = array<i64: 256, 128>}, {pipeline_mode = #tpu.pipeline_mode<synchronous>, transform_indices = @transform_7, window_bounds = array<i64: 1, 128>}, {pipeline_mode = #tpu.pipeline_mode<synchronous>, transform_indices = @transform_8, window_bounds = array<i64: 128, 128>}, {pipeline_mode = #tpu.pipeline_mode<synchronous>, transform_indices = @transform_9, window_bounds = array<i64: 1, 128>}, {pipeline_mode = #tpu.pipeline_mode<synchronous>, transform_indices = @transform_10, window_bounds = array<i64: 128, 128>}, {pipeline_mode = #tpu.pipeline_mode<synchronous>, transform_indices = @transform_11, window_bounds = array<i64: 1, 128>}, {transform_indices = @transform_12, window_bounds = array<i64: 2, 8, 128>}]} {
    %c0 = arith.constant 0 : index
    %c0_0 = arith.constant 0 : index
    %c0_1 = arith.constant 0 : index
    %0 = vector.load %arg1[%c0, %c0_0, %c0_1] : memref<2x8x128xf32, #tpu.memory_space<vmem>>, vector<2x8x128xf32>
    %c0_2 = arith.constant 0 : index
    %c0_3 = arith.constant 0 : index
    %1 = vector.load %arg2[%c0_2, %c0_3] : memref<128x128xf32, #tpu.memory_space<vmem>>, vector<128x128xf32>
    %c0_4 = arith.constant 0 : index
    %c0_5 = arith.constant 0 : index
    %2 = vector.load %arg3[%c0_4, %c0_5] : memref<256x32xbf16, #tpu.memory_space<vmem>>, vector<256x32xbf16>
    %c0_6 = arith.constant 0 : index
    %c0_7 = arith.constant 0 : index
    %3 = vector.load %arg4[%c0_6, %c0_7] : memref<32x256xbf16, #tpu.memory_space<vmem>>, vector<32x256xbf16>
    %c0_8 = arith.constant 0 : index
    %c0_9 = arith.constant 0 : index
    %4 = vector.load %arg5[%c0_8, %c0_9] : memref<128x1024xbf16, #tpu.memory_space<vmem>>, vector<128x1024xbf16>
    %c0_10 = arith.constant 0 : index
    %c0_11 = arith.constant 0 : index
    %5 = vector.load %arg6[%c0_10, %c0_11] : memref<1x1024xf32, #tpu.memory_space<vmem>>, vector<1x1024xf32>
    %c0_12 = arith.constant 0 : index
    %c0_13 = arith.constant 0 : index
    %6 = vector.load %arg7[%c0_12, %c0_13] : memref<256x128xbf16, #tpu.memory_space<vmem>>, vector<256x128xbf16>
    %c0_14 = arith.constant 0 : index
    %c0_15 = arith.constant 0 : index
    %7 = vector.load %arg8[%c0_14, %c0_15] : memref<1x128xf32, #tpu.memory_space<vmem>>, vector<1x128xf32>
    %8 = vector.shape_cast %0 : vector<2x8x128xf32> to vector<16x128xf32>
    %cst = arith.constant dense<0.000000e+00> : vector<16x128xf32>
    %9 = tpu.matmul %8, %1, %cst {dimension_numbers = #tpu.dot_dimension_numbers<[1], [0], [0], [1], [0, 0, 1, 1], [], []>} : vector<16x128xf32>, vector<128x128xf32>, vector<16x128xf32> -> vector<16x128xf32>
    %10 = arith.subf %8, %9 : vector<16x128xf32>
    %11 = arith.mulf %10, %10 : vector<16x128xf32>
    %cst_16 = arith.constant dense<0.000000e+00> : vector<16x128xf32>
    %12 = tpu.matmul %11, %1, %cst_16 {dimension_numbers = #tpu.dot_dimension_numbers<[1], [0], [0], [1], [0, 0, 1, 1], [], []>} : vector<16x128xf32>, vector<128x128xf32>, vector<16x128xf32> -> vector<16x128xf32>
    %cst_17 = arith.constant 9.99999974E-6 : f32
    %13 = vector.broadcast %cst_17 : f32 to vector<16x128xf32>
    %14 = arith.addf %12, %13 : vector<16x128xf32>
    %15 = math.rsqrt %14 : vector<16x128xf32>
    %16 = arith.mulf %10, %15 : vector<16x128xf32>
    %17 = arith.truncf %16 : vector<16x128xf32> to vector<16x128xbf16>
    %cst_18 = arith.constant dense<0.000000e+00> : vector<16x1024xf32>
    %18 = tpu.matmul %17, %4, %cst_18 {dimension_numbers = #tpu.dot_dimension_numbers<[1], [0], [0], [1], [0, 0, 1, 1], [], []>} : vector<16x128xbf16>, vector<128x1024xbf16>, vector<16x1024xf32> -> vector<16x1024xf32>
    %19 = vector.broadcast %5 : vector<1x1024xf32> to vector<16x1024xf32>
    %20 = arith.addf %18, %19 : vector<16x1024xf32>
    %21 = vector.extract_strided_slice %20 {offsets = [0, 0], sizes = [16, 256], strides = [1, 1]} : vector<16x1024xf32> to vector<16x256xf32>
    %22 = vector.shape_cast %21 : vector<16x256xf32> to vector<2x8x256xf32>
    %23 = vector.extract_strided_slice %20 {offsets = [0, 256], sizes = [16, 256], strides = [1, 1]} : vector<16x1024xf32> to vector<16x256xf32>
    %24 = vector.shape_cast %23 : vector<16x256xf32> to vector<2x8x256xf32>
    %25 = vector.extract_strided_slice %20 {offsets = [0, 512], sizes = [16, 256], strides = [1, 1]} : vector<16x1024xf32> to vector<16x256xf32>
    %26 = vector.shape_cast %25 : vector<16x256xf32> to vector<2x8x256xf32>
    %27 = vector.extract_strided_slice %20 {offsets = [0, 768], sizes = [16, 256], strides = [1, 1]} : vector<16x1024xf32> to vector<16x256xf32>
    %28 = arith.negf %27 : vector<16x256xf32>
    %29 = math.exp %28 : vector<16x256xf32>
    %cst_19 = arith.constant 1.000000e+00 : f32
    %30 = vector.broadcast %cst_19 : f32 to vector<16x256xf32>
    %31 = arith.addf %30, %29 : vector<16x256xf32>
    %32 = arith.divf %30, %31 : vector<16x256xf32>
    %33 = vector.shape_cast %32 : vector<16x256xf32> to vector<2x8x256xf32>
    %34 = vector.shape_cast %22 : vector<2x8x256xf32> to vector<2x1x8x256xf32>
    %35 = vector.shape_cast %24 : vector<2x8x256xf32> to vector<1x2x8x256xf32>
    %36 = vector.broadcast %34 : vector<2x1x8x256xf32> to vector<2x2x8x256xf32>
    %37 = vector.broadcast %35 : vector<1x2x8x256xf32> to vector<2x2x8x256xf32>
    %38 = arith.mulf %36, %37 : vector<2x2x8x256xf32>
    %39 = vector.shape_cast %38 : vector<2x2x8x256xf32> to vector<32x256xf32>
    %40 = arith.truncf %39 : vector<32x256xf32> to vector<32x256xbf16>
    %cst_20 = arith.constant dense<0.000000e+00> : vector<32x32xf32>
    %41 = tpu.matmul %40, %2, %cst_20 {dimension_numbers = #tpu.dot_dimension_numbers<[1], [0], [0], [1], [0, 0, 1, 1], [], []>} : vector<32x256xbf16>, vector<256x32xbf16>, vector<32x32xf32> -> vector<32x32xf32>
    %42 = vector.shape_cast %41 : vector<32x32xf32> to vector<2x2x8x32xf32>
    %cst_21 = arith.constant 0.353553385 : f32
    %43 = vector.broadcast %cst_21 : f32 to vector<2x2x8x32xf32>
    %44 = arith.mulf %42, %43 : vector<2x2x8x32xf32>
    %cst_22 = arith.constant dense<0xFF800000> : vector<2x8x32xf32>
    %45 = vector.multi_reduction <maximumf>, %44, %cst_22 [1] : vector<2x2x8x32xf32> to vector<2x8x32xf32>
    %46 = vector.shape_cast %45 : vector<2x8x32xf32> to vector<2x1x8x32xf32>
    %47 = vector.broadcast %46 : vector<2x1x8x32xf32> to vector<2x2x8x32xf32>
    %48 = arith.subf %44, %47 : vector<2x2x8x32xf32>
    %49 = math.exp %48 : vector<2x2x8x32xf32>
    %cst_23 = arith.constant dense<0.000000e+00> : vector<2x8x32xf32>
    %50 = vector.multi_reduction <add>, %49, %cst_23 [1] : vector<2x2x8x32xf32> to vector<2x8x32xf32>
    %51 = vector.shape_cast %50 : vector<2x8x32xf32> to vector<2x1x8x32xf32>
    %52 = tpu.reciprocal %51 {approx = true} : vector<2x1x8x32xf32> -> vector<2x1x8x32xf32>
    %53 = vector.broadcast %52 : vector<2x1x8x32xf32> to vector<2x2x8x32xf32>
    %54 = arith.mulf %49, %53 : vector<2x2x8x32xf32>
    %55 = vector.shape_cast %54 : vector<2x2x8x32xf32> to vector<32x32xf32>
    %56 = arith.truncf %55 : vector<32x32xf32> to vector<32x32xbf16>
    %cst_24 = arith.constant dense<0.000000e+00> : vector<32x256xf32>
    %57 = tpu.matmul %56, %3, %cst_24 {dimension_numbers = #tpu.dot_dimension_numbers<[1], [0], [0], [1], [0, 0, 1, 1], [], []>} : vector<32x32xbf16>, vector<32x256xbf16>, vector<32x256xf32> -> vector<32x256xf32>
    %58 = vector.shape_cast %57 : vector<32x256xf32> to vector<2x2x8x256xf32>
    %59 = vector.shape_cast %26 : vector<2x8x256xf32> to vector<1x2x8x256xf32>
    %60 = vector.broadcast %59 : vector<1x2x8x256xf32> to vector<2x2x8x256xf32>
    %61 = arith.mulf %58, %60 : vector<2x2x8x256xf32>
    %cst_25 = arith.constant dense<0.000000e+00> : vector<2x8x256xf32>
    %62 = vector.multi_reduction <add>, %61, %cst_25 [1] : vector<2x2x8x256xf32> to vector<2x8x256xf32>
    %63 = arith.mulf %62, %33 : vector<2x8x256xf32>
    %64 = vector.shape_cast %63 : vector<2x8x256xf32> to vector<16x256xf32>
    %65 = arith.truncf %64 : vector<16x256xf32> to vector<16x256xbf16>
    %cst_26 = arith.constant dense<0.000000e+00> : vector<16x128xf32>
    %66 = tpu.matmul %65, %6, %cst_26 {dimension_numbers = #tpu.dot_dimension_numbers<[1], [0], [0], [1], [0, 0, 1, 1], [], []>} : vector<16x256xbf16>, vector<256x128xbf16>, vector<16x128xf32> -> vector<16x128xf32>
    %67 = vector.broadcast %7 : vector<1x128xf32> to vector<16x128xf32>
    %68 = arith.addf %66, %67 : vector<16x128xf32>
    %69 = vector.shape_cast %68 : vector<16x128xf32> to vector<2x8x128xf32>
    %70 = arith.addf %0, %69 : vector<2x8x128xf32>
    %71 = vector.shape_cast %70 : vector<2x8x128xf32> to vector<16x128xf32>
    %c0_27 = arith.constant 0 : index
    %c0_28 = arith.constant 0 : index
    %72 = vector.load %arg2[%c0_27, %c0_28] : memref<128x128xf32, #tpu.memory_space<vmem>>, vector<128x128xf32>
    %c0_29 = arith.constant 0 : index
    %c0_30 = arith.constant 0 : index
    %73 = vector.load %arg9[%c0_29, %c0_30] : memref<128x128xbf16, #tpu.memory_space<vmem>>, vector<128x128xbf16>
    %c0_31 = arith.constant 0 : index
    %c0_32 = arith.constant 0 : index
    %74 = vector.load %arg10[%c0_31, %c0_32] : memref<1x128xf32, #tpu.memory_space<vmem>>, vector<1x128xf32>
    %c0_33 = arith.constant 0 : index
    %c0_34 = arith.constant 0 : index
    %75 = vector.load %arg11[%c0_33, %c0_34] : memref<128x128xbf16, #tpu.memory_space<vmem>>, vector<128x128xbf16>
    %c0_35 = arith.constant 0 : index
    %c0_36 = arith.constant 0 : index
    %76 = vector.load %arg12[%c0_35, %c0_36] : memref<1x128xf32, #tpu.memory_space<vmem>>, vector<1x128xf32>
    %cst_37 = arith.constant dense<0.000000e+00> : vector<16x128xf32>
    %77 = tpu.matmul %71, %72, %cst_37 {dimension_numbers = #tpu.dot_dimension_numbers<[1], [0], [0], [1], [0, 0, 1, 1], [], []>} : vector<16x128xf32>, vector<128x128xf32>, vector<16x128xf32> -> vector<16x128xf32>
    %78 = arith.subf %71, %77 : vector<16x128xf32>
    %79 = arith.mulf %78, %78 : vector<16x128xf32>
    %cst_38 = arith.constant dense<0.000000e+00> : vector<16x128xf32>
    %80 = tpu.matmul %79, %72, %cst_38 {dimension_numbers = #tpu.dot_dimension_numbers<[1], [0], [0], [1], [0, 0, 1, 1], [], []>} : vector<16x128xf32>, vector<128x128xf32>, vector<16x128xf32> -> vector<16x128xf32>
    %cst_39 = arith.constant 9.99999974E-6 : f32
    %81 = vector.broadcast %cst_39 : f32 to vector<16x128xf32>
    %82 = arith.addf %80, %81 : vector<16x128xf32>
    %83 = math.rsqrt %82 : vector<16x128xf32>
    %84 = arith.mulf %78, %83 : vector<16x128xf32>
    %85 = arith.truncf %84 : vector<16x128xf32> to vector<16x128xbf16>
    %cst_40 = arith.constant dense<0.000000e+00> : vector<16x128xf32>
    %86 = tpu.matmul %85, %73, %cst_40 {dimension_numbers = #tpu.dot_dimension_numbers<[1], [0], [0], [1], [0, 0, 1, 1], [], []>} : vector<16x128xbf16>, vector<128x128xbf16>, vector<16x128xf32> -> vector<16x128xf32>
    %87 = vector.broadcast %74 : vector<1x128xf32> to vector<16x128xf32>
    %88 = arith.addf %86, %87 : vector<16x128xf32>
    %cst_41 = arith.constant 0.000000e+00 : f32
    %89 = vector.broadcast %cst_41 : f32 to vector<16x128xf32>
    %90 = arith.maximumf %88, %89 : vector<16x128xf32>
    %91 = arith.truncf %90 : vector<16x128xf32> to vector<16x128xbf16>
    %cst_42 = arith.constant dense<0.000000e+00> : vector<16x128xf32>
    %92 = tpu.matmul %91, %75, %cst_42 {dimension_numbers = #tpu.dot_dimension_numbers<[1], [0], [0], [1], [0, 0, 1, 1], [], []>} : vector<16x128xbf16>, vector<128x128xbf16>, vector<16x128xf32> -> vector<16x128xf32>
    %93 = vector.broadcast %76 : vector<1x128xf32> to vector<16x128xf32>
    %94 = arith.addf %92, %93 : vector<16x128xf32>
    %95 = arith.addf %71, %94 : vector<16x128xf32>
    %96 = vector.shape_cast %95 : vector<16x128xf32> to vector<2x8x128xf32>
    %c0_43 = arith.constant 0 : index
    %c0_44 = arith.constant 0 : index
    %c0_45 = arith.constant 0 : index
    %97 = vector.load %arg13[%c0_43, %c0_44, %c0_45] : memref<2x8x128xf32, #tpu.memory_space<vmem>>, vector<2x8x128xf32>
    tpu.vector_store %arg13[%c0_43, %c0_44, %c0_45], %96 {strides = array<i32>} : memref<2x8x128xf32, #tpu.memory_space<vmem>>, vector<2x8x128xf32>,
    return
  }
  func.func @transform_0(%arg0: i32) -> (i32, i32, i32) {
    %c0_i32 = arith.constant 0 : i32
    %c0_i32_0 = arith.constant 0 : i32
    %c0_i32_1 = arith.constant 0 : i32
    return %c0_i32, %arg0, %c0_i32_0 : i32, i32, i32
  }
  func.func @transform_1(%arg0: i32) -> (i32, i32) {
    %c0_i32 = arith.constant 0 : i32
    %c0_i32_0 = arith.constant 0 : i32
    %c0_i32_1 = arith.constant 0 : i32
    return %c0_i32, %c0_i32_0 : i32, i32
  }
  func.func @transform_2(%arg0: i32) -> (i32, i32) {
    %c0_i32 = arith.constant 0 : i32
    %c0_i32_0 = arith.constant 0 : i32
    %c0_i32_1 = arith.constant 0 : i32
    return %c0_i32, %c0_i32_0 : i32, i32
  }
  func.func @transform_3(%arg0: i32) -> (i32, i32) {
    %c0_i32 = arith.constant 0 : i32
    %c0_i32_0 = arith.constant 0 : i32
    %c0_i32_1 = arith.constant 0 : i32
    return %c0_i32, %c0_i32_0 : i32, i32
  }
  func.func @transform_4(%arg0: i32) -> (i32, i32) {
    %c0_i32 = arith.constant 0 : i32
    %c0_i32_0 = arith.constant 0 : i32
    %c0_i32_1 = arith.constant 0 : i32
    return %c0_i32, %c0_i32_0 : i32, i32
  }
  func.func @transform_5(%arg0: i32) -> (i32, i32) {
    %c0_i32 = arith.constant 0 : i32
    %c0_i32_0 = arith.constant 0 : i32
    %c0_i32_1 = arith.constant 0 : i32
    return %c0_i32, %c0_i32_0 : i32, i32
  }
  func.func @transform_6(%arg0: i32) -> (i32, i32) {
    %c0_i32 = arith.constant 0 : i32
    %c0_i32_0 = arith.constant 0 : i32
    %c0_i32_1 = arith.constant 0 : i32
    return %c0_i32, %c0_i32_0 : i32, i32
  }
  func.func @transform_7(%arg0: i32) -> (i32, i32) {
    %c0_i32 = arith.constant 0 : i32
    %c0_i32_0 = arith.constant 0 : i32
    %c0_i32_1 = arith.constant 0 : i32
    return %c0_i32, %c0_i32_0 : i32, i32
  }
  func.func @transform_8(%arg0: i32) -> (i32, i32) {
    %c0_i32 = arith.constant 0 : i32
    %c0_i32_0 = arith.constant 0 : i32
    %c0_i32_1 = arith.constant 0 : i32
    return %c0_i32, %c0_i32_0 : i32, i32
  }
  func.func @transform_9(%arg0: i32) -> (i32, i32) {
    %c0_i32 = arith.constant 0 : i32
    %c0_i32_0 = arith.constant 0 : i32
    %c0_i32_1 = arith.constant 0 : i32
    return %c0_i32, %c0_i32_0 : i32, i32
  }
  func.func @transform_10(%arg0: i32) -> (i32, i32) {
    %c0_i32 = arith.constant 0 : i32
    %c0_i32_0 = arith.constant 0 : i32
    %c0_i32_1 = arith.constant 0 : i32
    return %c0_i32, %c0_i32_0 : i32, i32
  }
  func.func @transform_11(%arg0: i32) -> (i32, i32) {
    %c0_i32 = arith.constant 0 : i32
    %c0_i32_0 = arith.constant 0 : i32
    %c0_i32_1 = arith.constant 0 : i32
    return %c0_i32, %c0_i32_0 : i32, i32
  }
  func.func @transform_12(%arg0: i32) -> (i32, i32, i32) {
    %c0_i32 = arith.constant 0 : i32
    %c0_i32_0 = arith.constant 0 : i32
    %c0_i32_1 = arith.constant 0 : i32
    return %c0_i32, %arg0, %c0_i32_0 : i32, i32, i32
  }
}

</mosaic_0001>

<llo_original>
// kernel: _lambda_.4
$region0: #{_lambda_.4}
  #allocation0 [shape = 'u32[]', space=smem, size = 0x4, offset = 0x4, fixed_abs, tag = 'smem constant byte address 0x4 - core index']
  #allocation1 [shape = 'u32[144,128]{1,0:T(1,128)}', space=vmem, size = 0x12000, scoped, tag = 'internal scratch']
  %s0 = inlined_call_operand.vmem [shape: f32[32,128], index: 0, kind: input, shape index: {}]
  %s1 = inlined_call_operand.vmem [shape: f32[128,128], index: 1, kind: input, shape index: {}]
  %s2 = inlined_call_operand.vmem [shape: bf16[128,512], index: 2, kind: input, shape index: {}]
  %s3 = inlined_call_operand.vmem [shape: f32[1,512], index: 3, kind: input, shape index: {}]
  %s4 = inlined_call_operand.vmem [shape: bf16[512,128], index: 4, kind: input, shape index: {}]
  %s5 = inlined_call_operand.vmem [shape: f32[1,128], index: 5, kind: input, shape index: {}]
  %s6 = inlined_call_operand.vmem [shape: f32[32,128], index: 6, kind: output, shape index: {}]
  %s7 = sld [smem:[#allocation0]]
  $region57: #{_lambda_.4} parent=0
    _
  %s9 = ssub.s32 1, %s7
  %s10 = scalar_select 0, %s9, %s7
  loop: start=0, step=1, limit=4
  $region2: #{_lambda_.4} parent=0 // loop_pre_header
    _
  $region3: #{_lambda_.4} parent=0 // loop_header
    %s12 = sphi 0, %s16
    %p13 = scmp.ge.s32.totalorder %s12, 4
    %s22 = sphi 0, %s24
    %s25 = sphi 0, %s22
    %s26 = sphi 0, %s25
    %s42 = sphi 0, %s26
    %s46 = sphi 0, %s46
    %s48 = sphi 0, %s46
    %s49 = sphi 0, %s48
    %s63 = sphi 0, %s49
    %s67 = sphi 0, %s67
    %s69 = sphi 0, %s67
    %s70 = sphi 0, %s69
    %s84 = sphi 0, %s70
    %s88 = sphi 0, %s88
    %s90 = sphi 0, %s88
    %s91 = sphi 0, %s90
    %s105 = sphi 0, %s91
    %s109 = sphi 0, %s109
    %s111 = sphi 0, %s109
    %s112 = sphi 0, %s111
    %s126 = sphi 0, %s112
    %s130 = sphi 0, %s130
    %s132 = sphi 0, %s130
    %s133 = sphi 0, %s132
    %s147 = sphi 0, %s133
    %s153 = sphi 0, %s155
    %s156 = sphi 0, %s153
    %s157 = sphi 0, %s156
    %s173 = sphi 0, %s157
  $region4: #{_lambda_.4} parent=0 // loop_header_branch
    %15 = sbr.rel (%p13) target = $region8
  $region5: #{_lambda_.4} parent=0 // loop_body
    %s17 = ssub.s32 %s12, 1
    %s18 = ssub.s32 %s12, 2
    %s19 = sadd.s32 %s12, 1
    %s20 = ssub.s32 %s12, %s19
    %p21 = scmp.eq.s32.totalorder %s20, 0
    %s23 = sadd.s32 %s22, 1
    %s24 = scalar_select %p21, %s22, %s23
    %p27 = pneg %p21
    %p28 = scmp.eq.s32.totalorder %s12, 1
    %p29 = por %p27, %p28
    %p30 = scmp.ne.s32.totalorder %s22, %s25
    %p31 = scmp.eq.s32.totalorder %s12, 0
    %p32 = por %p30, %p31
    %p33 = scmp.ne.s32.totalorder %s22, %s25
    %p34 = scmp.eq.s32.totalorder %s17, 1
    %p35 = por %p33, %p34
    %p36 = scmp.ne.s32.totalorder %s25, %s26
    %p37 = scmp.eq.s32.totalorder %s17, 0
    %p38 = por %p36, %p37
    %p39 = scmp.ne.s32.totalorder %s25, %s26
    %p40 = scmp.eq.s32.totalorder %s18, 1
    %p41 = por %p39, %p40
    %p43 = scmp.ne.s32.totalorder %s26, %s42
    %p44 = scmp.eq.s32.totalorder %s18, 0
    %p45 = por %p43, %p44
    %s47 = sadd.s32 %s46, 1
    %p50 = scmp.eq.s32.totalorder %s12, 1
    %p51 = scmp.ne.s32.totalorder %s46, %s48
    %p52 = scmp.eq.s32.totalorder %s12, 0
    %p53 = por %p51, %p52
    %p54 = scmp.ne.s32.totalorder %s46, %s48
    %p55 = scmp.eq.s32.totalorder %s17, 1
    %p56 = por %p54, %p55
    %p57 = scmp.ne.s32.totalorder %s48, %s49
    %p58 = scmp.eq.s32.totalorder %s17, 0
    %p59 = por %p57, %p58
    %p60 = scmp.ne.s32.totalorder %s48, %s49
    %p61 = scmp.eq.s32.totalorder %s18, 1
    %p62 = por %p60, %p61
    %p64 = scmp.ne.s32.totalorder %s49, %s63
    %p65 = scmp.eq.s32.totalorder %s18, 0
    %p66 = por %p64, %p65
    %s68 = sadd.s32 %s67, 1
    %p71 = scmp.eq.s32.totalorder %s12, 1
    %p72 = scmp.ne.s32.totalorder %s67, %s69
    %p73 = scmp.eq.s32.totalorder %s12, 0
    %p74 = por %p72, %p73
    %p75 = scmp.ne.s32.totalorder %s67, %s69
    %p76 = scmp.eq.s32.totalorder %s17, 1
    %p77 = por %p75, %p76
    %p78 = scmp.ne.s32.totalorder %s69, %s70
    %p79 = scmp.eq.s32.totalorder %s17, 0
    %p80 = por %p78, %p79
    %p81 = scmp.ne.s32.totalorder %s69, %s70
    %p82 = scmp.eq.s32.totalorder %s18, 1
    %p83 = por %p81, %p82
    %p85 = scmp.ne.s32.totalorder %s70, %s84
    %p86 = scmp.eq.s32.totalorder %s18, 0
    %p87 = por %p85, %p86
    %s89 = sadd.s32 %s88, 1
    %p92 = scmp.eq.s32.totalorder %s12, 1
    %p93 = scmp.ne.s32.totalorder %s88, %s90
    %p94 = scmp.eq.s32.totalorder %s12, 0
    %p95 = por %p93, %p94
    %p96 = scmp.ne.s32.totalorder %s88, %s90
    %p97 = scmp.eq.s32.totalorder %s17, 1
    %p98 = por %p96, %p97
    %p99 = scmp.ne.s32.totalorder %s90, %s91
    %p100 = scmp.eq.s32.totalorder %s17, 0
    %p101 = por %p99, %p100
    %p102 = scmp.ne.s32.totalorder %s90, %s91
    %p103 = scmp.eq.s32.totalorder %s18, 1
    %p104 = por %p102, %p103
    %p106 = scmp.ne.s32.totalorder %s91, %s105
    %p107 = scmp.eq.s32.totalorder %s18, 0
    %p108 = por %p106, %p107
    %s110 = sadd.s32 %s109, 1
    %p113 = scmp.eq.s32.totalorder %s12, 1
    %p114 = scmp.ne.s32.totalorder %s109, %s111
    %p115 = scmp.eq.s32.totalorder %s12, 0
    %p116 = por %p114, %p115
    %p117 = scmp.ne.s32.totalorder %s109, %s111
    %p118 = scmp.eq.s32.totalorder %s17, 1
    %p119 = por %p117, %p118
    %p120 = scmp.ne.s32.totalorder %s111, %s112
    %p121 = scmp.eq.s32.totalorder %s17, 0
    %p122 = por %p120, %p121
    %p123 = scmp.ne.s32.totalorder %s111, %s112
    %p124 = scmp.eq.s32.totalorder %s18, 1
    %p125 = por %p123, %p124
    %p127 = scmp.ne.s32.totalorder %s112, %s126
    %p128 = scmp.eq.s32.totalorder %s18, 0
    %p129 = por %p127, %p128
    %s131 = sadd.s32 %s130, 1
    %p134 = scmp.eq.s32.totalorder %s12, 1
    %p135 = scmp.ne.s32.totalorder %s130, %s132
    %p136 = scmp.eq.s32.totalorder %s12, 0
    %p137 = por %p135, %p136
    %p138 = scmp.ne.s32.totalorder %s130, %s132
    %p139 = scmp.eq.s32.totalorder %s17, 1
    %p140 = por %p138, %p139
    %p141 = scmp.ne.s32.totalorder %s132, %s133
    %p142 = scmp.eq.s32.totalorder %s17, 0
    %p143 = por %p141, %p142
    %p144 = scmp.ne.s32.totalorder %s132, %s133
    %p145 = scmp.eq.s32.totalorder %s18, 1
    %p146 = por %p144, %p145
    %p148 = scmp.ne.s32.totalorder %s133, %s147
    %p149 = scmp.eq.s32.totalorder %s18, 0
    %p150 = por %p148, %p149
    %s151 = ssub.s32 %s12, %s19
    %p152 = scmp.eq.s32.totalorder %s151, 0
    %s154 = sadd.s32 %s153, 1
    %s155 = scalar_select %p152, %s153, %s154
    %p158 = pneg %p152
    %p159 = scmp.eq.s32.totalorder %s12, 1
    %p160 = por %p158, %p159
    %p161 = scmp.ne.s32.totalorder %s153, %s156
    %p162 = scmp.eq.s32.totalorder %s12, 0
    %p163 = por %p161, %p162
    %p164 = scmp.ne.s32.totalorder %s153, %s156
    %p165 = scmp.eq.s32.totalorder %s17, 1
    %p166 = por %p164, %p165
    %p167 = scmp.ne.s32.totalorder %s156, %s157
    %p168 = scmp.eq.s32.totalorder %s17, 0
    %p169 = por %p167, %p168
    %p170 = scmp.ne.s32.totalorder %s156, %s157
    %p171 = scmp.eq.s32.totalorder %s18, 1
    %p172 = por %p170, %p171
    %p174 = scmp.ne.s32.totalorder %s157, %s173
    %p175 = scmp.eq.s32.totalorder %s18, 0
    %p176 = por %p174, %p175
    %p177 = scmp.le.s32.totalorder 1, %s12
    %p178 = scmp.lt.s32.totalorder %s12, 3
    %p179 = pnand %p177, %p178
    %p180 = pneg %p179
    // Predicated region
    $region9: #{_lambda_.4} parent=5 // pred_check
      _
    $region10: #{_lambda_.4} parent=5 // pred_check_branch
      %182 = sbr.rel (%p179) target = $region12
    $region11: #{_lambda_.4} parent=5 // pred_region
      %s183 = ssub.s32 %s12, 1
      // Predicated region
      $region13: #{_lambda_.4} parent=11 // pred_check
        %p184 = pneg %p59
      $region14: #{_lambda_.4} parent=11 // pred_check_branch
        %186 = sbr.rel (%p184) target = $region16
      $region15: #{_lambda_.4} parent=11 // pred_region
        _
      $region16: #{_lambda_.4} parent=11 // pred_fallthru
        _
      // Predicated region
      $region17: #{_lambda_.4} parent=11 // pred_check
        %p187 = pneg %p80
      $region18: #{_lambda_.4} parent=11 // pred_check_branch
        %189 = sbr.rel (%p187) target = $region20
      $region19: #{_lambda_.4} parent=11 // pred_region
        _
      $region20: #{_lambda_.4} parent=11 // pred_fallthru
        _
      // Predicated region
      $region21: #{_lambda_.4} parent=11 // pred_check
        %p190 = pneg %p101
      $region22: #{_lambda_.4} parent=11 // pred_check_branch
        %192 = sbr.rel (%p190) target = $region24
      $region23: #{_lambda_.4} parent=11 // pred_region
        _
      $region24: #{_lambda_.4} parent=11 // pred_fallthru
        _
      // Predicated region
      $region25: #{_lambda_.4} parent=11 // pred_check
        %p193 = pneg %p122
      $region26: #{_lambda_.4} parent=11 // pred_check_branch
        %195 = sbr.rel (%p193) target = $region28
      $region27: #{_lambda_.4} parent=11 // pred_region
        _
      $region28: #{_lambda_.4} parent=11 // pred_fallthru
        _
      // Predicated region
      $region29: #{_lambda_.4} parent=11 // pred_check
        %p196 = pneg %p143
      $region30: #{_lambda_.4} parent=11 // pred_check_branch
        %198 = sbr.rel (%p196) target = $region32
      $region31: #{_lambda_.4} parent=11 // pred_region
        _
      $region32: #{_lambda_.4} parent=11 // pred_fallthru
        _
    $region12: #{_lambda_.4} parent=5 // pred_fallthru
      _
    %p199 = scmp.lt.s32.totalorder %s12, 2
    // Predicated region
    $region33: #{_lambda_.4} parent=5 // pred_check
      %p200 = pneg %p199
    $region34: #{_lambda_.4} parent=5 // pred_check_branch
      %202 = sbr.rel (%p200) target = $region36
    $region35: #{_lambda_.4} parent=5 // pred_region
      // Predicated region
      $region37: #{_lambda_.4} parent=35 // pred_check
        %p203 = pneg %p32
      $region38: #{_lambda_.4} parent=35 // pred_check_branch
        %205 = sbr.rel (%p203) target = $region40
      $region39: #{_lambda_.4} parent=35 // pred_region
        %s206 = smul.u32 2, %s12
        %p207 = scmp.lt.s32.totalorder %s206, 3
        %s208 = scalar_select %p207, %s206, 3
        %s209 = smul.addr %s208, 8
        %s210 = scalar_lea.vmem %s0, %s209
        %s211 = smul.u32 2, %s12
      $region40: #{_lambda_.4} parent=35 // pred_fallthru
        _
    $region36: #{_lambda_.4} parent=5 // pred_fallthru
      _
    %p212 = scmp.le.s32.totalorder 1, %s12
    %p213 = scmp.lt.s32.totalorder %s12, 3
    %p214 = pnand %p212, %p213
    %p215 = pneg %p214
    // Predicated region
    $region41: #{_lambda_.4} parent=5 // pred_check
      _
    $region42: #{_lambda_.4} parent=5 // pred_check_branch
      %217 = sbr.rel (%p214) target = $region44
    $region43: #{_lambda_.4} parent=5 // pred_region
      %s218 = ssub.s32 %s12, 1
      %s219 = smul.u32 2, %s17
      %p220 = scmp.lt.s32.totalorder %s219, 3
      %s221 = scalar_select %p220, %s219, 3
      %s222 = smul.addr %s221, 8
      %s223 = scalar_lea.vmem %s0, %s222
      %p224 = pneg %p38
      %p225 = pneg %p35
      %p226 = pneg %p59
      %p227 = pneg %p56
      %p228 = pneg %p80
      %p229 = pneg %p77
      %p230 = pneg %p101
      %p231 = pneg %p98
      %p232 = pneg %p122
      %p233 = pneg %p119
      %p234 = pneg %p143
      %p235 = pneg %p140
      %p236 = pneg %p169
      %p237 = pneg %p166
      %s238 = smul.u32 2, %s17
      %p239 = scmp.lt.s32.totalorder %s238, 3
      %s240 = scalar_select %p239, %s238, 3
      %s241 = smul.addr %s240, 8
      %s242 = scalar_lea.vmem %s6, %s241
      %s243 = smul.u32 2, %s17
      %p244 = scmp.lt.s32.totalorder %s243, 3
      %s245 = scalar_select %p244, %s243, 3
      %s246 = smul.addr %s245, 8
      %s247 = scalar_lea.vmem %s0, %s246
      %s248 = smul.u32 2, %s17
      %s249 = smul.u32 2, %s17
      %p250 = scmp.lt.s32.totalorder %s249, 3
      %s251 = scalar_select %p250, %s249, 3
      %s252 = smul.addr %s251, 8
      %s253 = scalar_lea.vmem %s6, %s252
      %s254 = smul.u32 2, %s17
      %v256 = vld [vmem:[%s247] sm:$0xff]
      %v257 = vld [vmem:[%s247 + $0x8] sm:$0xff]
      %v258 = vld [vmem:[%s1] sm:$0xff]
      %v259 = vld [vmem:[%s1 + $0x8] sm:$0xff]
      %v260 = vld [vmem:[%s1 + $0x10] sm:$0xff]
      %v261 = vld [vmem:[%s1 + $0x18] sm:$0xff]
      %v262 = vld [vmem:[%s1 + $0x20] sm:$0xff]
      %v263 = vld [vmem:[%s1 + $0x28] sm:$0xff]
      %v264 = vld [vmem:[%s1 + $0x30] sm:$0xff]
      %v265 = vld [vmem:[%s1 + $0x38] sm:$0xff]
      %v266 = vld [vmem:[%s1 + $0x40] sm:$0xff]
      %v267 = vld [vmem:[%s1 + $0x48] sm:$0xff]
      %v268 = vld [vmem:[%s1 + $0x50] sm:$0xff]
      %v269 = vld [vmem:[%s1 + $0x58] sm:$0xff]
      %v270 = vld [vmem:[%s1 + $0x60] sm:$0xff]
      %v271 = vld [vmem:[%s1 + $0x68] sm:$0xff]
      %v272 = vld [vmem:[%s1 + $0x70] sm:$0xff]
      %v273 = vld [vmem:[%s1 + $0x78] sm:$0xff]
      %v274 = vld [vmem:[%s2] sm:$0xff]
      %v275 = vld [vmem:[%s2 + $0x8] sm:$0xff]
      %v276 = vld [vmem:[%s2 + $0x10] sm:$0xff]
      %v277 = vld [vmem:[%s2 + $0x18] sm:$0xff]
      %v278 = vld [vmem:[%s2 + $0x20] sm:$0xff]
      %v279 = vld [vmem:[%s2 + $0x28] sm:$0xff]
      %v280 = vld [vmem:[%s2 + $0x30] sm:$0xff]
      %v281 = vld [vmem:[%s2 + $0x38] sm:$0xff]
      %v282 = vld [vmem:[%s2 + $0x40] sm:$0xff]
      %v283 = vld [vmem:[%s2 + $0x48] sm:$0xff]
      %v284 = vld [vmem:[%s2 + $0x50] sm:$0xff]
      %v285 = vld [vmem:[%s2 + $0x58] sm:$0xff]
      %v286 = vld [vmem:[%s2 + $0x60] sm:$0xff]
      %v287 = vld [vmem:[%s2 + $0x68] sm:$0xff]
      %v288 = vld [vmem:[%s2 + $0x70] sm:$0xff]
      %v289 = vld [vmem:[%s2 + $0x78] sm:$0xff]
      %v290 = vld [vmem:[%s2 + $0x80] sm:$0xff]
      %v291 = vld [vmem:[%s2 + $0x88] sm:$0xff]
      %v292 = vld [vmem:[%s2 + $0x90] sm:$0xff]
      %v293 = vld [vmem:[%s2 + $0x98] sm:$0xff]
      %v294 = vld [vmem:[%s2 + $0xa0] sm:$0xff]
      %v295 = vld [vmem:[%s2 + $0xa8] sm:$0xff]
      %v296 = vld [vmem:[%s2 + $0xb0] sm:$0xff]
      %v297 = vld [vmem:[%s2 + $0xb8] sm:$0xff]
      %v298 = vld [vmem:[%s2 + $0xc0] sm:$0xff]
      %v299 = vld [vmem:[%s2 + $0xc8] sm:$0xff]
      %v300 = vld [vmem:[%s2 + $0xd0] sm:$0xff]
      %v301 = vld [vmem:[%s2 + $0xd8] sm:$0xff]
      %v302 = vld [vmem:[%s2 + $0xe0] sm:$0xff]
      %v303 = vld [vmem:[%s2 + $0xe8] sm:$0xff]
      %v304 = vld [vmem:[%s2 + $0xf0] sm:$0xff]
      %v305 = vld [vmem:[%s2 + $0xf8] sm:$0xff]
      %v306 = vld [vmem:[%s3] sm:$0xf]
      %v307 = vld [vmem:[%s4] sm:$0xf]
      %v308 = vld [vmem:[%s4 + $0x4] sm:$0xf]
      %v309 = vld [vmem:[%s4 + $0x8] sm:$0xf]
      %v310 = vld [vmem:[%s4 + $0xc] sm:$0xf]
      %v311 = vld [vmem:[%s4 + $0x10] sm:$0xf]
      %v312 = vld [vmem:[%s4 + $0x14] sm:$0xf]
      %v313 = vld [vmem:[%s4 + $0x18] sm:$0xf]
      %v314 = vld [vmem:[%s4 + $0x1c] sm:$0xf]
      %v315 = vld [vmem:[%s4 + $0x20] sm:$0xf]
      %v316 = vld [vmem:[%s4 + $0x24] sm:$0xf]
      %v317 = vld [vmem:[%s4 + $0x28] sm:$0xf]
      %v318 = vld [vmem:[%s4 + $0x2c] sm:$0xf]
      %v319 = vld [vmem:[%s4 + $0x30] sm:$0xf]
      %v320 = vld [vmem:[%s4 + $0x34] sm:$0xf]
      %v321 = vld [vmem:[%s4 + $0x38] sm:$0xf]
      %v322 = vld [vmem:[%s4 + $0x3c] sm:$0xf]
      %v323 = vld [vmem:[%s4 + $0x40] sm:$0xf]
      %v324 = vld [vmem:[%s4 + $0x44] sm:$0xf]
      %v325 = vld [vmem:[%s4 + $0x48] sm:$0xf]
      %v326 = vld [vmem:[%s4 + $0x4c] sm:$0xf]
      %v327 = vld [vmem:[%s4 + $0x50] sm:$0xf]
      %v328 = vld [vmem:[%s4 + $0x54] sm:$0xf]
      %v329 = vld [vmem:[%s4 + $0x58] sm:$0xf]
      %v330 = vld [vmem:[%s4 + $0x5c] sm:$0xf]
      %v331 = vld [vmem:[%s4 + $0x60] sm:$0xf]
      %v332 = vld [vmem:[%s4 + $0x64] sm:$0xf]
      %v333 = vld [vmem:[%s4 + $0x68] sm:$0xf]
      %v334 = vld [vmem:[%s4 + $0x6c] sm:$0xf]
      %v335 = vld [vmem:[%s4 + $0x70] sm:$0xf]
      %v336 = vld [vmem:[%s4 + $0x74] sm:$0xf]
      %v337 = vld [vmem:[%s4 + $0x78] sm:$0xf]
      %v338 = vld [vmem:[%s4 + $0x7c] sm:$0xf]
      %v339 = vld [vmem:[%s4 + $0x80] sm:$0xf]
      %v340 = vld [vmem:[%s4 + $0x84] sm:$0xf]
      %v341 = vld [vmem:[%s4 + $0x88] sm:$0xf]
      %v342 = vld [vmem:[%s4 + $0x8c] sm:$0xf]
      %v343 = vld [vmem:[%s4 + $0x90] sm:$0xf]
      %v344 = vld [vmem:[%s4 + $0x94] sm:$0xf]
      %v345 = vld [vmem:[%s4 + $0x98] sm:$0xf]
      %v346 = vld [vmem:[%s4 + $0x9c] sm:$0xf]
      %v347 = vld [vmem:[%s4 + $0xa0] sm:$0xf]
      %v348 = vld [vmem:[%s4 + $0xa4] sm:$0xf]
      %v349 = vld [vmem:[%s4 + $0xa8] sm:$0xf]
      %v350 = vld [vmem:[%s4 + $0xac] sm:$0xf]
      %v351 = vld [vmem:[%s4 + $0xb0] sm:$0xf]
      %v352 = vld [vmem:[%s4 + $0xb4] sm:$0xf]
      %v353 = vld [vmem:[%s4 + $0xb8] sm:$0xf]
      %v354 = vld [vmem:[%s4 + $0xbc] sm:$0xf]
      %v355 = vld [vmem:[%s4 + $0xc0] sm:$0xf]
      %v356 = vld [vmem:[%s4 + $0xc4] sm:$0xf]
      %v357 = vld [vmem:[%s4 + $0xc8] sm:$0xf]
      %v358 = vld [vmem:[%s4 + $0xcc] sm:$0xf]
      %v359 = vld [vmem:[%s4 + $0xd0] sm:$0xf]
      %v360 = vld [vmem:[%s4 + $0xd4] sm:$0xf]
      %v361 = vld [vmem:[%s4 + $0xd8] sm:$0xf]
      %v362 = vld [vmem:[%s4 + $0xdc] sm:$0xf]
      %v363 = vld [vmem:[%s4 + $0xe0] sm:$0xf]
      %v364 = vld [vmem:[%s4 + $0xe4] sm:$0xf]
      %v365 = vld [vmem:[%s4 + $0xe8] sm:$0xf]
      %v366 = vld [vmem:[%s4 + $0xec] sm:$0xf]
      %v367 = vld [vmem:[%s4 + $0xf0] sm:$0xf]
      %v368 = vld [vmem:[%s4 + $0xf4] sm:$0xf]
      %v369 = vld [vmem:[%s4 + $0xf8] sm:$0xf]
      %v370 = vld [vmem:[%s4 + $0xfc] sm:$0xf]
      %v371 = vld [vmem:[%s5] sm:$0x1]
      %372 = vmatprep.subr.mxu0 0.0
      %373 = vmatpush1.msra.mxu0 %v258
      %374 = vmatprep.subr.mxu0 0.0
      %375 = vmatpush1.msra.mxu0 %v259
      %376 = vmatprep.subr.mxu0 0.0
      %377 = vmatpush1.msra.mxu0 %v260
      %378 = vmatprep.subr.mxu0 0.0
      %379 = vmatpush1.msra.mxu0 %v261
      %380 = vmatprep.subr.mxu0 0.0
      %381 = vmatpush1.msra.mxu0 %v262
      %382 = vmatprep.subr.mxu0 0.0
      %383 = vmatpush1.msra.mxu0 %v263
      %384 = vmatprep.subr.mxu0 0.0
      %385 = vmatpush1.msra.mxu0 %v264
      %386 = vmatprep.subr.mxu0 0.0
      %387 = vmatpush1.msra.mxu0 %v265
      %388 = vmatprep.subr.mxu0 0.0
      %389 = vmatpush1.msra.mxu0 %v266
      %390 = vmatprep.subr.mxu0 0.0
      %391 = vmatpush1.msra.mxu0 %v267
      %392 = vmatprep.subr.mxu0 0.0
      %393 = vmatpush1.msra.mxu0 %v268
      %394 = vmatprep.subr.mxu0 0.0
      %395 = vmatpush1.msra.mxu0 %v269
      %396 = vmatprep.subr.mxu0 0.0
      %397 = vmatpush1.msra.mxu0 %v270
      %398 = vmatprep.subr.mxu0 0.0
      %399 = vmatpush1.msra.mxu0 %v271
      %400 = vmatprep.subr.mxu0 0.0
      %401 = vmatpush1.msra.mxu0 %v272
      %402 = vmatprep.subr.mxu0 0.0
      %403 = vmatpush1.msra.mxu0 %v273
      %404 = vmatprep.subr.mxu0 0.0
      %405 = vmatpush1.msra.mxu0 0.0
      %406 = vmatprep.subr.mxu0 0.0
      %407 = vmatpush1.msra.mxu0 0.0
      %408 = vmatprep.subr.mxu0 0.0
      %409 = vmatpush1.msra.mxu0 0.0
      %410 = vmatprep.subr.mxu0 0.0
      %411 = vmatpush1.msra.mxu0 0.0
      %412 = vmatprep.subr.mxu0 0.0
      %413 = vmatpush1.msra.mxu0 0.0
      %414 = vmatprep.subr.mxu0 0.0
      %415 = vmatpush1.msra.mxu0 0.0
      %416 = vmatprep.subr.mxu0 0.0
      %417 = vmatpush1.msra.mxu0 0.0
      %418 = vmatprep.subr.mxu0 0.0
      %419 = vmatpush1.msra.mxu0 0.0
      %420 = vmatprep.subr.mxu0 0.0
      %421 = vmatpush1.msra.mxu0 0.0
      %422 = vmatprep.subr.mxu0 0.0
      %423 = vmatpush1.msra.mxu0 0.0
      %424 = vmatprep.subr.mxu0 0.0
      %425 = vmatpush1.msra.mxu0 0.0
      %426 = vmatprep.subr.mxu0 0.0
      %427 = vmatpush1.msra.mxu0 0.0
      %428 = vmatprep.subr.mxu0 0.0
      %429 = vmatpush1.msra.mxu0 0.0
      %430 = vmatprep.subr.mxu0 0.0
      %431 = vmatpush1.msra.mxu0 0.0
      %432 = vmatprep.subr.mxu0 0.0
      %433 = vmatpush1.msra.mxu0 0.0
      %434 = vmatprep.subr.mxu0 0.0
      %435 = vmatpush1.msra.mxu0 0.0
      %436 = vmatprep.mubr.f32.mxu0 0.0
      %437 = vmatmul.mubr.f32.gmra.mrb[0].mxu0 %v256
      %v438 = vpop.f32.mrb[0].mxu0
      %v439 = vadd.f32 0.0, %v438
      %v440 = vpop.f32.mrb[0].mxu0
      %441 = vmatprep.mubr.f32.mxu0 0.0
      %442 = vmatmul.mubr.f32.gmra.mrb[0].mxu0 %v257
      %v443 = vpop.f32.mrb[0].mxu0
      %v444 = vadd.f32 0.0, %v443
      %v445 = vpop.f32.mrb[0].mxu0
      %446 = vdwg.mxu0
      %v447 = vsub.f32 %v256, %v439
      %v448 = vsub.f32 %v257, %v444
      %v449 = vmul.f32 %v447, %v447
      %v450 = vmul.f32 %v448, %v448
      %451 = vmatprep.subr.mxu0 0.0
      %452 = vmatpush1.msra.mxu0 %v258
      %453 = vmatprep.subr.mxu0 0.0
      %454 = vmatpush1.msra.mxu0 %v259
      %455 = vmatprep.subr.mxu0 0.0
      %456 = vmatpush1.msra.mxu0 %v260
      %457 = vmatprep.subr.mxu0 0.0
      %458 = vmatpush1.msra.mxu0 %v261
      %459 = vmatprep.subr.mxu0 0.0
      %460 = vmatpush1.msra.mxu0 %v262
      %461 = vmatprep.subr.mxu0 0.0
      %462 = vmatpush1.msra.mxu0 %v263
      %463 = vmatprep.subr.mxu0 0.0
      %464 = vmatpush1.msra.mxu0 %v264
      %465 = vmatprep.subr.mxu0 0.0
      %466 = vmatpush1.msra.mxu0 %v265
      %467 = vmatprep.subr.mxu0 0.0
      %468 = vmatpush1.msra.mxu0 %v266
      %469 = vmatprep.subr.mxu0 0.0
      %470 = vmatpush1.msra.mxu0 %v267
      %471 = vmatprep.subr.mxu0 0.0
      %472 = vmatpush1.msra.mxu0 %v268
      %473 = vmatprep.subr.mxu0 0.0
      %474 = vmatpush1.msra.mxu0 %v269
      %475 = vmatprep.subr.mxu0 0.0
      %476 = vmatpush1.msra.mxu0 %v270
      %477 = vmatprep.subr.mxu0 0.0
      %478 = vmatpush1.msra.mxu0 %v271
      %479 = vmatprep.subr.mxu0 0.0
      %480 = vmatpush1.msra.mxu0 %v272
      %481 = vmatprep.subr.mxu0 0.0
      %482 = vmatpush1.msra.mxu0 %v273
      %483 = vmatprep.subr.mxu0 0.0
      %484 = vmatpush1.msra.mxu0 0.0
      %485 = vmatprep.subr.mxu0 0.0
      %486 = vmatpush1.msra.mxu0 0.0
      %487 = vmatprep.subr.mxu0 0.0
      %488 = vmatpush1.msra.mxu0 0.0
      %489 = vmatprep.subr.mxu0 0.0
      %490 = vmatpush1.msra.mxu0 0.0
      %491 = vmatprep.subr.mxu0 0.0
      %492 = vmatpush1.msra.mxu0 0.0
      %493 = vmatprep.subr.mxu0 0.0
      %494 = vmatpush1.msra.mxu0 0.0
      %495 = vmatprep.subr.mxu0 0.0
      %496 = vmatpush1.msra.mxu0 0.0
      %497 = vmatprep.subr.mxu0 0.0
      %498 = vmatpush1.msra.mxu0 0.0
      %499 = vmatprep.subr.mxu0 0.0
      %500 = vmatpush1.msra.mxu0 0.0
      %501 = vmatprep.subr.mxu0 0.0
      %502 = vmatpush1.msra.mxu0 0.0
      %503 = vmatprep.subr.mxu0 0.0
      %504 = vmatpush1.msra.mxu0 0.0
      %505 = vmatprep.subr.mxu0 0.0
      %506 = vmatpush1.msra.mxu0 0.0
      %507 = vmatprep.subr.mxu0 0.0
      %508 = vmatpush1.msra.mxu0 0.0
      %509 = vmatprep.subr.mxu0 0.0
      %510 = vmatpush1.msra.mxu0 0.0
      %511 = vmatprep.subr.mxu0 0.0
      %512 = vmatpush1.msra.mxu0 0.0
      %513 = vmatprep.subr.mxu0 0.0
      %514 = vmatpush1.msra.mxu0 0.0
      %515 = vmatprep.mubr.f32.mxu0 0.0
      %516 = vmatmul.mubr.f32.gmra.mrb[0].mxu0 %v449
      %v517 = vpop.f32.mrb[0].mxu0
      %v518 = vadd.f32 1e-05, %v517
      %v519 = vpop.f32.mrb[0].mxu0
      %520 = vmatprep.mubr.f32.mxu0 0.0
      %521 = vmatmul.mubr.f32.gmra.mrb[0].mxu0 %v450
      %v522 = vpop.f32.mrb[0].mxu0
      %v523 = vadd.f32 1e-05, %v522
      %v524 = vpop.f32.mrb[0].mxu0
      %525 = vdwg.mxu0
      %v526 = vrsqrt.pop %v518
      %v527 = vrsqrt.pop %v523
      %v528 = vmul.f32 %v447, %v526
      %v529 = vmul.f32 %v448, %v527
      %v530 = vpack.c.bf16 %v529, %v528
      %v532 = vlaneseq
      %v533 = vshrl.u32 %v532, 7
      %v534 = vsub.s32 0, %v533
      %v535 = vrot.slane %v306, %v534
      %v536 = vlaneseq
      %v537 = vshrl.u32 %v536, 7
      %v538 = vsub.s32 1, %v537
      %v539 = vrot.slane %v306, %v538
      %v540 = vlaneseq
      %v541 = vshrl.u32 %v540, 7
      %v542 = vsub.s32 2, %v541
      %v543 = vrot.slane %v306, %v542
      %v544 = vlaneseq
      %v545 = vshrl.u32 %v544, 7
      %v546 = vsub.s32 3, %v545
      %v547 = vrot.slane %v306, %v546
      %v584 = vunpack.c.l.b16 %v274
      %v585 = vunpack.c.h.b16 %v274
      %v586 = vunpack.c.l.b16 %v275
      %v587 = vunpack.c.h.b16 %v275
      %v588 = vunpack.c.l.b16 %v276
      %v589 = vunpack.c.h.b16 %v276
      %v590 = vunpack.c.l.b16 %v277
      %v591 = vunpack.c.h.b16 %v277
      %v592 = vunpack.c.l.b16 %v278
      %v593 = vunpack.c.h.b16 %v278
      %v594 = vunpack.c.l.b16 %v279
      %v595 = vunpack.c.h.b16 %v279
      %v596 = vunpack.c.l.b16 %v280
      %v597 = vunpack.c.h.b16 %v280
      %v598 = vunpack.c.l.b16 %v281
      %v599 = vunpack.c.h.b16 %v281
      %v600 = vunpack.c.l.b16 %v282
      %v601 = vunpack.c.h.b16 %v282
      %v602 = vunpack.c.l.b16 %v283
      %v603 = vunpack.c.h.b16 %v283
      %v604 = vunpack.c.l.b16 %v284
      %v605 = vunpack.c.h.b16 %v284
      %v606 = vunpack.c.l.b16 %v285
      %v607 = vunpack.c.h.b16 %v285
      %v608 = vunpack.c.l.b16 %v286
      %v609 = vunpack.c.h.b16 %v286
      %v610 = vunpack.c.l.b16 %v287
      %v611 = vunpack.c.h.b16 %v287
      %v612 = vunpack.c.l.b16 %v288
      %v613 = vunpack.c.h.b16 %v288
      %v614 = vunpack.c.l.b16 %v289
      %v615 = vunpack.c.h.b16 %v289
      %v616 = vunpack.c.l.b16 %v290
      %v617 = vunpack.c.h.b16 %v290
      %v618 = vunpack.c.l.b16 %v291
      %v619 = vunpack.c.h.b16 %v291
      %v620 = vunpack.c.l.b16 %v292
      %v621 = vunpack.c.h.b16 %v292
      %v622 = vunpack.c.l.b16 %v293
      %v623 = vunpack.c.h.b16 %v293
      %v624 = vunpack.c.l.b16 %v294
      %v625 = vunpack.c.h.b16 %v294
      %v626 = vunpack.c.l.b16 %v295
      %v627 = vunpack.c.h.b16 %v295
      %v628 = vunpack.c.l.b16 %v296
      %v629 = vunpack.c.h.b16 %v296
      %v630 = vunpack.c.l.b16 %v297
      %v631 = vunpack.c.h.b16 %v297
      %v632 = vunpack.c.l.b16 %v298
      %v633 = vunpack.c.h.b16 %v298
      %v634 = vunpack.c.l.b16 %v299
      %v635 = vunpack.c.h.b16 %v299
      %v636 = vunpack.c.l.b16 %v300
      %v637 = vunpack.c.h.b16 %v300
      %v638 = vunpack.c.l.b16 %v301
      %v639 = vunpack.c.h.b16 %v301
      %v640 = vunpack.c.l.b16 %v302
      %v641 = vunpack.c.h.b16 %v302
      %v642 = vunpack.c.l.b16 %v303
      %v643 = vunpack.c.h.b16 %v303
      %v644 = vunpack.c.l.b16 %v304
      %v645 = vunpack.c.h.b16 %v304
      %v646 = vunpack.c.l.b16 %v305
      %v647 = vunpack.c.h.b16 %v305
      %v648 = vpack.c.b16 %v588, %v584
      %v649 = vpack.c.b16 %v589, %v585
      %v650 = vpack.c.b16 %v590, %v586
      %v651 = vpack.c.b16 %v591, %v587
      %v652 = vpack.c.b16 %v596, %v592
      %v653 = vpack.c.b16 %v597, %v593
      %v654 = vpack.c.b16 %v598, %v594
      %v655 = vpack.c.b16 %v599, %v595
      %v656 = vpack.c.b16 %v604, %v600
      %v657 = vpack.c.b16 %v605, %v601
      %v658 = vpack.c.b16 %v606, %v602
      %v659 = vpack.c.b16 %v607, %v603
      %v660 = vpack.c.b16 %v612, %v608
      %v661 = vpack.c.b16 %v613, %v609
      %v662 = vpack.c.b16 %v614, %v610
      %v663 = vpack.c.b16 %v615, %v611
      %v664 = vpack.c.b16 %v620, %v616
      %v665 = vpack.c.b16 %v621, %v617
      %v666 = vpack.c.b16 %v622, %v618
      %v667 = vpack.c.b16 %v623, %v619
      %v668 = vpack.c.b16 %v628, %v624
      %v669 = vpack.c.b16 %v629, %v625
      %v670 = vpack.c.b16 %v630, %v626
      %v671 = vpack.c.b16 %v631, %v627
      %v672 = vpack.c.b16 %v636, %v632
      %v673 = vpack.c.b16 %v637, %v633
      %v674 = vpack.c.b16 %v638, %v634
      %v675 = vpack.c.b16 %v639, %v635
      %v676 = vpack.c.b16 %v644, %v640
      %v677 = vpack.c.b16 %v645, %v641
      %v678 = vpack.c.b16 %v646, %v642
      %v679 = vpack.c.b16 %v647, %v643
      %712 = vmatprep.subr.bf16.mxu0 %v649
      %713 = vmatpush1.bf16.msra.mxu0 %v648
      %714 = vmatprep.subr.bf16.mxu0 %v653
      %715 = vmatpush1.bf16.msra.mxu0 %v652
      %716 = vmatprep.subr.bf16.mxu0 %v657
      %717 = vmatpush1.bf16.msra.mxu0 %v656
      %718 = vmatprep.subr.bf16.mxu0 %v661
      %719 = vmatpush1.bf16.msra.mxu0 %v660
      %720 = vmatprep.subr.bf16.mxu0 %v665
      %721 = vmatpush1.bf16.msra.mxu0 %v664
      %722 = vmatprep.subr.bf16.mxu0 %v669
      %723 = vmatpush1.bf16.msra.mxu0 %v668
      %724 = vmatprep.subr.bf16.mxu0 %v673
      %725 = vmatpush1.bf16.msra.mxu0 %v672
      %726 = vmatprep.subr.bf16.mxu0 %v677
      %727 = vmatpush1.bf16.msra.mxu0 %v676
      %728 = vmatprep.subr.bf16.mxu0 0
      %729 = vmatpush1.bf16.msra.mxu0 0
      %730 = vmatprep.subr.bf16.mxu0 0
      %731 = vmatpush1.bf16.msra.mxu0 0
      %732 = vmatprep.subr.bf16.mxu0 0
      %733 = vmatpush1.bf16.msra.mxu0 0
      %734 = vmatprep.subr.bf16.mxu0 0
      %735 = vmatpush1.bf16.msra.mxu0 0
      %736 = vmatprep.subr.bf16.mxu0 0
      %737 = vmatpush1.bf16.msra.mxu0 0
      %738 = vmatprep.subr.bf16.mxu0 0
      %739 = vmatpush1.bf16.msra.mxu0 0
      %740 = vmatprep.subr.bf16.mxu0 0
      %741 = vmatpush1.bf16.msra.mxu0 0
      %742 = vmatprep.subr.bf16.mxu0 0
      %743 = vmatpush1.bf16.msra.mxu0 0
      %744 = vmatprep.mubr.bf16.mxu0 0
      %745 = vmatmul.mubr.bf16.gmra.mrb[0].mxu0 %v530
      %v746 = vpop.f32.mrb[0].mxu0
      %v747 = vadd.f32 %v535, %v746
      %v748 = vpop.f32.mrb[0].mxu0
      %v749 = vadd.f32 %v539, %v748
      %v750 = vpop.f32.mrb[0].mxu0
      %v751 = vadd.f32 %v535, %v750
      %v752 = vpop.f32.mrb[0].mxu0
      %v753 = vadd.f32 %v539, %v752
      %754 = vdwg.mxu0
      %755 = vmatprep.subr.bf16.mxu0 %v651
      %756 = vmatpush1.bf16.msra.mxu0 %v650
      %757 = vmatprep.subr.bf16.mxu0 %v655
      %758 = vmatpush1.bf16.msra.mxu0 %v654
      %759 = vmatprep.subr.bf16.mxu0 %v659
      %760 = vmatpush1.bf16.msra.mxu0 %v658
      %761 = vmatprep.subr.bf16.mxu0 %v663
      %762 = vmatpush1.bf16.msra.mxu0 %v662
      %763 = vmatprep.subr.bf16.mxu0 %v667
      %764 = vmatpush1.bf16.msra.mxu0 %v666
      %765 = vmatprep.subr.bf16.mxu0 %v671
      %766 = vmatpush1.bf16.msra.mxu0 %v670
      %767 = vmatprep.subr.bf16.mxu0 %v675
      %768 = vmatpush1.bf16.msra.mxu0 %v674
      %769 = vmatprep.subr.bf16.mxu0 %v679
      %770 = vmatpush1.bf16.msra.mxu0 %v678
      %771 = vmatprep.subr.bf16.mxu0 0
      %772 = vmatpush1.bf16.msra.mxu0 0
      %773 = vmatprep.subr.bf16.mxu0 0
      %774 = vmatpush1.bf16.msra.mxu0 0
      %775 = vmatprep.subr.bf16.mxu0 0
      %776 = vmatpush1.bf16.msra.mxu0 0
      %777 = vmatprep.subr.bf16.mxu0 0
      %778 = vmatpush1.bf16.msra.mxu0 0
      %779 = vmatprep.subr.bf16.mxu0 0
      %780 = vmatpush1.bf16.msra.mxu0 0
      %781 = vmatprep.subr.bf16.mxu0 0
      %782 = vmatpush1.bf16.msra.mxu0 0
      %783 = vmatprep.subr.bf16.mxu0 0
      %784 = vmatpush1.bf16.msra.mxu0 0
      %785 = vmatprep.subr.bf16.mxu0 0
      %786 = vmatpush1.bf16.msra.mxu0 0
      %787 = vmatprep.mubr.bf16.mxu0 0
      %788 = vmatmul.mubr.bf16.gmra.mrb[0].mxu0 %v530
      %v789 = vpop.f32.mrb[0].mxu0
      %v790 = vadd.f32 %v543, %v789
      %v791 = vpop.f32.mrb[0].mxu0
      %v792 = vadd.f32 %v547, %v791
      %v793 = vpop.f32.mrb[0].mxu0
      %v794 = vadd.f32 %v543, %v793
      %v795 = vpop.f32.mrb[0].mxu0
      %v796 = vadd.f32 %v547, %v795
      %797 = vdwg.mxu0
      %v798 = vmax.f32 %v747, 0.0
      %v799 = vmax.f32 %v749, 0.0
      %v800 = vmax.f32 %v790, 0.0
      %v801 = vmax.f32 %v792, 0.0
      %v802 = vmax.f32 %v751, 0.0
      %v803 = vmax.f32 %v753, 0.0
      %v804 = vmax.f32 %v794, 0.0
      %v805 = vmax.f32 %v796, 0.0
      %v806 = vpack.c.bf16 %v802, %v798
      %v807 = vpack.c.bf16 %v803, %v799
      %v808 = vpack.c.bf16 %v804, %v800
      %v809 = vpack.c.bf16 %v805, %v801
      %v811 = vlaneseq
      %v812 = vshrl.u32 %v811, 7
      %v813 = vsub.s32 0, %v812
      %v814 = vrot.slane %v371, %v813
      %v880 = vunpack.c.l.b16 %v307
      %v881 = vunpack.c.l.b16 %v308
      %v882 = vunpack.c.l.b16 %v309
      %v883 = vunpack.c.l.b16 %v310
      %v884 = vunpack.c.l.b16 %v311
      %v885 = vunpack.c.l.b16 %v312
      %v886 = vunpack.c.l.b16 %v313
      %v887 = vunpack.c.l.b16 %v314
      %v888 = vunpack.c.l.b16 %v315
      %v889 = vunpack.c.l.b16 %v316
      %v890 = vunpack.c.l.b16 %v317
      %v891 = vunpack.c.l.b16 %v318
      %v892 = vunpack.c.l.b16 %v319
      %v893 = vunpack.c.l.b16 %v320
      %v894 = vunpack.c.l.b16 %v321
      %v895 = vunpack.c.l.b16 %v322
      %v896 = vunpack.c.l.b16 %v323
      %v897 = vunpack.c.l.b16 %v324
      %v898 = vunpack.c.l.b16 %v325
      %v899 = vunpack.c.l.b16 %v326
      %v900 = vunpack.c.l.b16 %v327
      %v901 = vunpack.c.l.b16 %v328
      %v902 = vunpack.c.l.b16 %v329
      %v903 = vunpack.c.l.b16 %v330
      %v904 = vunpack.c.l.b16 %v331
      %v905 = vunpack.c.l.b16 %v332
      %v906 = vunpack.c.l.b16 %v333
      %v907 = vunpack.c.l.b16 %v334
      %v908 = vunpack.c.l.b16 %v335
      %v909 = vunpack.c.l.b16 %v336
      %v910 = vunpack.c.l.b16 %v337
      %v911 = vunpack.c.l.b16 %v338
      %v912 = vunpack.c.l.b16 %v339
      %v913 = vunpack.c.l.b16 %v340
      %v914 = vunpack.c.l.b16 %v341
      %v915 = vunpack.c.l.b16 %v342
      %v916 = vunpack.c.l.b16 %v343
      %v917 = vunpack.c.l.b16 %v344
      %v918 = vunpack.c.l.b16 %v345
      %v919 = vunpack.c.l.b16 %v346
      %v920 = vunpack.c.l.b16 %v347
      %v921 = vunpack.c.l.b16 %v348
      %v922 = vunpack.c.l.b16 %v349
      %v923 = vunpack.c.l.b16 %v350
      %v924 = vunpack.c.l.b16 %v351
      %v925 = vunpack.c.l.b16 %v352
      %v926 = vunpack.c.l.b16 %v353
      %v927 = vunpack.c.l.b16 %v354
      %v928 = vunpack.c.l.b16 %v355
      %v929 = vunpack.c.l.b16 %v356
      %v930 = vunpack.c.l.b16 %v357
      %v931 = vunpack.c.l.b16 %v358
      %v932 = vunpack.c.l.b16 %v359
      %v933 = vunpack.c.l.b16 %v360
      %v934 = vunpack.c.l.b16 %v361
      %v935 = vunpack.c.l.b16 %v362
      %v936 = vunpack.c.l.b16 %v363
      %v937 = vunpack.c.l.b16 %v364
      %v938 = vunpack.c.l.b16 %v365
      %v939 = vunpack.c.l.b16 %v366
      %v940 = vunpack.c.l.b16 %v367
      %v941 = vunpack.c.l.b16 %v368
      %v942 = vunpack.c.l.b16 %v369
      %v943 = vunpack.c.l.b16 %v370
      %v944 = vpack.c.b16 %v881, %v880
      %v945 = vpack.c.b16 %v883, %v882
      %v946 = vpack.c.b16 %v885, %v884
      %v947 = vpack.c.b16 %v887, %v886
      %v948 = vpack.c.b16 %v889, %v888
      %v949 = vpack.c.b16 %v891, %v890
      %v950 = vpack.c.b16 %v893, %v892
      %v951 = vpack.c.b16 %v895, %v894
      %v952 = vpack.c.b16 %v897, %v896
      %v953 = vpack.c.b16 %v899, %v898
      %v954 = vpack.c.b16 %v901, %v900
      %v955 = vpack.c.b16 %v903, %v902
      %v956 = vpack.c.b16 %v905, %v904
      %v957 = vpack.c.b16 %v907, %v906
      %v958 = vpack.c.b16 %v909, %v908
      %v959 = vpack.c.b16 %v911, %v910
      %v960 = vpack.c.b16 %v913, %v912
      %v961 = vpack.c.b16 %v915, %v914
      %v962 = vpack.c.b16 %v917, %v916
      %v963 = vpack.c.b16 %v919, %v918
      %v964 = vpack.c.b16 %v921, %v920
      %v965 = vpack.c.b16 %v923, %v922
      %v966 = vpack.c.b16 %v925, %v924
      %v967 = vpack.c.b16 %v927, %v926
      %v968 = vpack.c.b16 %v929, %v928
      %v969 = vpack.c.b16 %v931, %v930
      %v970 = vpack.c.b16 %v933, %v932
      %v971 = vpack.c.b16 %v935, %v934
      %v972 = vpack.c.b16 %v937, %v936
      %v973 = vpack.c.b16 %v939, %v938
      %v974 = vpack.c.b16 %v941, %v940
      %v975 = vpack.c.b16 %v943, %v942
      %1008 = vmatprep.subr.bf16.mxu0 0
      %1009 = vmatpush1.bf16.msra.mxu0 %v944
      %1010 = vmatprep.subr.bf16.mxu0 0
      %1011 = vmatpush1.bf16.msra.mxu0 %v945
      %1012 = vmatprep.subr.bf16.mxu0 0
      %1013 = vmatpush1.bf16.msra.mxu0 %v946
      %1014 = vmatprep.subr.bf16.mxu0 0
      %1015 = vmatpush1.bf16.msra.mxu0 %v947
      %1016 = vmatprep.subr.bf16.mxu0 0
      %1017 = vmatpush1.bf16.msra.mxu0 %v948
      %1018 = vmatprep.subr.bf16.mxu0 0
      %1019 = vmatpush1.bf16.msra.mxu0 %v949
      %1020 = vmatprep.subr.bf16.mxu0 0
      %1021 = vmatpush1.bf16.msra.mxu0 %v950
      %1022 = vmatprep.subr.bf16.mxu0 0
      %1023 = vmatpush1.bf16.msra.mxu0 %v951
      %1024 = vmatprep.subr.bf16.mxu0 0
      %1025 = vmatpush1.bf16.msra.mxu0 %v952
      %1026 = vmatprep.subr.bf16.mxu0 0
      %1027 = vmatpush1.bf16.msra.mxu0 %v953
      %1028 = vmatprep.subr.bf16.mxu0 0
      %1029 = vmatpush1.bf16.msra.mxu0 %v954
      %1030 = vmatprep.subr.bf16.mxu0 0
      %1031 = vmatpush1.bf16.msra.mxu0 %v955
      %1032 = vmatprep.subr.bf16.mxu0 0
      %1033 = vmatpush1.bf16.msra.mxu0 %v956
      %1034 = vmatprep.subr.bf16.mxu0 0
      %1035 = vmatpush1.bf16.msra.mxu0 %v957
      %1036 = vmatprep.subr.bf16.mxu0 0
      %1037 = vmatpush1.bf16.msra.mxu0 %v958
      %1038 = vmatprep.subr.bf16.mxu0 0
      %1039 = vmatpush1.bf16.msra.mxu0 %v959
      %1040 = vmatprep.mubr.bf16.mxu0 %v807
      %1041 = vmatmul.mubr.bf16.gmra.mrb[0].mxu0 %v806
      %v1042 = vpop.f32.mrb[0].mxu0
      %v1043 = vadd.f32 %v814, %v1042
      %v1044 = vpop.f32.mrb[0].mxu0
      %v1045 = vpop.f32.mrb[0].mxu0
      %v1046 = vadd.f32 %v814, %v1045
      %v1047 = vpop.f32.mrb[0].mxu0
      %1048 = vdwg.mxu0
      %1049 = vmatprep.subr.bf16.mxu0 0
      %1050 = vmatpush1.bf16.msra.mxu0 %v960
      %1051 = vmatprep.subr.bf16.mxu0 0
      %1052 = vmatpush1.bf16.msra.mxu0 %v961
      %1053 = vmatprep.subr.bf16.mxu0 0
      %1054 = vmatpush1.bf16.msra.mxu0 %v962
      %1055 = vmatprep.subr.bf16.mxu0 0
      %1056 = vmatpush1.bf16.msra.mxu0 %v963
      %1057 = vmatprep.subr.bf16.mxu0 0
      %1058 = vmatpush1.bf16.msra.mxu0 %v964
      %1059 = vmatprep.subr.bf16.mxu0 0
      %1060 = vmatpush1.bf16.msra.mxu0 %v965
      %1061 = vmatprep.subr.bf16.mxu0 0
      %1062 = vmatpush1.bf16.msra.mxu0 %v966
      %1063 = vmatprep.subr.bf16.mxu0 0
      %1064 = vmatpush1.bf16.msra.mxu0 %v967
      %1065 = vmatprep.subr.bf16.mxu0 0
      %1066 = vmatpush1.bf16.msra.mxu0 %v968
      %1067 = vmatprep.subr.bf16.mxu0 0
      %1068 = vmatpush1.bf16.msra.mxu0 %v969
      %1069 = vmatprep.subr.bf16.mxu0 0
      %1070 = vmatpush1.bf16.msra.mxu0 %v970
      %1071 = vmatprep.subr.bf16.mxu0 0
      %1072 = vmatpush1.bf16.msra.mxu0 %v971
      %1073 = vmatprep.subr.bf16.mxu0 0
      %1074 = vmatpush1.bf16.msra.mxu0 %v972
      %1075 = vmatprep.subr.bf16.mxu0 0
      %1076 = vmatpush1.bf16.msra.mxu0 %v973
      %1077 = vmatprep.subr.bf16.mxu0 0
      %1078 = vmatpush1.bf16.msra.mxu0 %v974
      %1079 = vmatprep.subr.bf16.mxu0 0
      %1080 = vmatpush1.bf16.msra.mxu0 %v975
      %1081 = vmatprep.mubr.bf16.mxu0 %v809
      %1082 = vmatmul.mubr.bf16.gmra.mrb[0].mxu0 %v808
      %v1083 = vpop.f32.mrb[0].mxu0
      %v1084 = vadd.f32 %v1043, %v1083
      %v1085 = vpop.f32.mrb[0].mxu0
      %v1086 = vpop.f32.mrb[0].mxu0
      %v1087 = vadd.f32 %v1046, %v1086
      %v1088 = vpop.f32.mrb[0].mxu0
      %1089 = vdwg.mxu0
      %v1090 = vadd.f32 %v256, %v1084
      %v1091 = vadd.f32 %v257, %v1087
      %1092 = vst [vmem:[%s253] sm:$0xff] %v1090
      %1093 = vst [vmem:[%s253 + $0x8] sm:$0xff] %v1091
      %s1094 = smul.u32 2, %s17
      %p1095 = scmp.lt.s32.totalorder %s1094, 3
      %s1096 = scalar_select %p1095, %s1094, 3
      %s1097 = smul.addr %s1096, 8
      %s1098 = scalar_lea.vmem %s6, %s1097
      // Predicated region
      $region45: #{_lambda_.4} parent=43 // pred_check
        %p1099 = pneg %p166
      $region46: #{_lambda_.4} parent=43 // pred_check_branch
        %1101 = sbr.rel (%p1099) target = $region48
      $region47: #{_lambda_.4} parent=43 // pred_region
        %s1102 = smul.u32 2, %s17
      $region48: #{_lambda_.4} parent=43 // pred_fallthru
        _
    $region44: #{_lambda_.4} parent=5 // pred_fallthru
      _
    %p1103 = scmp.le.s32.totalorder 2, %s12
    // Predicated region
    $region49: #{_lambda_.4} parent=5 // pred_check
      %p1104 = pneg %p1103
    $region50: #{_lambda_.4} parent=5 // pred_check_branch
      %1106 = sbr.rel (%p1104) target = $region52
    $region51: #{_lambda_.4} parent=5 // pred_region
      %s1107 = ssub.s32 %s12, 2
      // Predicated region
      $region53: #{_lambda_.4} parent=51 // pred_check
        %p1108 = pneg %p172
      $region54: #{_lambda_.4} parent=51 // pred_check_branch
        %1110 = sbr.rel (%p1108) target = $region56
      $region55: #{_lambda_.4} parent=51 // pred_region
        %s1111 = smul.u32 2, %s18
        %p1112 = scmp.lt.s32.totalorder %s1111, 3
        %s1113 = scalar_select %p1112, %s1111, 3
        %s1114 = smul.addr %s1113, 8
        %s1115 = scalar_lea.vmem %s6, %s1114
      $region56: #{_lambda_.4} parent=51 // pred_fallthru
        _
    $region52: #{_lambda_.4} parent=5 // pred_fallthru
      _
  $region6: #{_lambda_.4} parent=0 // loop_footer
    %s16 = sadd.s32 1, %s12
  $region7: #{_lambda_.4} parent=0 // loop_footer_branch
    %11 = sbr.rel target = $region3
  $region8: #{_lambda_.4} parent=0 // loop_exit
    _

// kernel: _lambda_.5
$region0: #{_lambda_.5}
  #allocation0 [shape = 'u32[]', space=smem, size = 0x4, offset = 0x4, fixed_abs, tag = 'smem constant byte address 0x4 - core index']
  #allocation1 [shape = 'u32[144,128]{1,0:T(1,128)}', space=vmem, size = 0x12000, scoped, tag = 'internal scratch']
  %s0 = inlined_call_operand.vmem [shape: f32[2,16,128], index: 0, kind: input, shape index: {}]
  %s1 = inlined_call_operand.vmem [shape: f32[128,128], index: 1, kind: input, shape index: {}]
  %s2 = inlined_call_operand.vmem [shape: bf16[256,32], index: 2, kind: input, shape index: {}]
  %s3 = inlined_call_operand.vmem [shape: bf16[32,256], index: 3, kind: input, shape index: {}]
  %s4 = inlined_call_operand.vmem [shape: bf16[128,1024], index: 4, kind: input, shape index: {}]
  %s5 = inlined_call_operand.vmem [shape: f32[1,1024], index: 5, kind: input, shape index: {}]
  %s6 = inlined_call_operand.vmem [shape: bf16[256,128], index: 6, kind: input, shape index: {}]
  %s7 = inlined_call_operand.vmem [shape: f32[1,128], index: 7, kind: input, shape index: {}, may-alias: {7,11}]
  %s8 = inlined_call_operand.vmem [shape: bf16[128,128], index: 8, kind: input, shape index: {}]
  %s9 = inlined_call_operand.vmem [shape: f32[1,128], index: 9, kind: input, shape index: {}]
  %s10 = inlined_call_operand.vmem [shape: bf16[128,128], index: 10, kind: input, shape index: {}]
  %s11 = inlined_call_operand.vmem [shape: f32[1,128], index: 11, kind: input, shape index: {}, may-alias: {7,11}]
  %s12 = inlined_call_operand.vmem [shape: f32[2,16,128], index: 12, kind: output, shape index: {}]
  %s13 = sld [smem:[#allocation0]]
  $region153: #{_lambda_.5} parent=0
    _
  %s15 = ssub.s32 1, %s13
  %s16 = scalar_select 0, %s15, %s13
  $region1: #{_lambda_.5} parent=0
    #allocation2 [shape = 'u8[16384]{0}', space=vmem, size = 0x4000, scoped, tag = 'input window, operand 0']
    #allocation3 [shape = 'u8[16384]{0}', space=vmem, size = 0x4000, scoped, tag = 'output window, operand 0']
    loop: start=0, step=1, limit=4
    $region2: #{_lambda_.5} parent=1 // loop_pre_header
      _
    $region3: #{_lambda_.5} parent=1 // loop_header
      %s18 = sphi 0, %s22
      %p19 = scmp.ge.s32.totalorder %s18, 4
      %s28 = sphi 0, %s30
      %s31 = sphi 0, %s28
      %s32 = sphi 0, %s31
      %s48 = sphi 0, %s32
      %s52 = sphi 0, %s52
      %s54 = sphi 0, %s52
      %s55 = sphi 0, %s54
      %s69 = sphi 0, %s55
      %s73 = sphi 0, %s73
      %s75 = sphi 0, %s73
      %s76 = sphi 0, %s75
      %s90 = sphi 0, %s76
      %s94 = sphi 0, %s94
      %s96 = sphi 0, %s94
      %s97 = sphi 0, %s96
      %s111 = sphi 0, %s97
      %s115 = sphi 0, %s115
      %s117 = sphi 0, %s115
      %s118 = sphi 0, %s117
      %s132 = sphi 0, %s118
      %s136 = sphi 0, %s136
      %s138 = sphi 0, %s136
      %s139 = sphi 0, %s138
      %s153 = sphi 0, %s139
      %s157 = sphi 0, %s157
      %s159 = sphi 0, %s157
      %s160 = sphi 0, %s159
      %s174 = sphi 0, %s160
      %s178 = sphi 0, %s178
      %s180 = sphi 0, %s178
      %s181 = sphi 0, %s180
      %s195 = sphi 0, %s181
      %s199 = sphi 0, %s199
      %s201 = sphi 0, %s199
      %s202 = sphi 0, %s201
      %s216 = sphi 0, %s202
      %s220 = sphi 0, %s220
      %s222 = sphi 0, %s220
      %s223 = sphi 0, %s222
      %s237 = sphi 0, %s223
      %s241 = sphi 0, %s241
      %s243 = sphi 0, %s241
      %s244 = sphi 0, %s243
      %s258 = sphi 0, %s244
      %s262 = sphi 0, %s262
      %s264 = sphi 0, %s262
      %s265 = sphi 0, %s264
      %s279 = sphi 0, %s265
      %s285 = sphi 0, %s287
      %s288 = sphi 0, %s285
      %s289 = sphi 0, %s288
      %s305 = sphi 0, %s289
    $region4: #{_lambda_.5} parent=1 // loop_header_branch
      %21 = sbr.rel (%p19) target = $region8
    $region5: #{_lambda_.5} parent=1 // loop_body
      %s23 = ssub.s32 %s18, 1
      %s24 = ssub.s32 %s18, 2
      %s25 = sadd.s32 %s18, 1
      %s26 = ssub.s32 %s18, %s25
      %p27 = scmp.eq.s32.totalorder %s26, 0
      %s29 = sadd.s32 %s28, 1
      %s30 = scalar_select %p27, %s28, %s29
      %p33 = pneg %p27
      %p34 = scmp.eq.s32.totalorder %s18, 1
      %p35 = por %p33, %p34
      %p36 = scmp.ne.s32.totalorder %s28, %s31
      %p37 = scmp.eq.s32.totalorder %s18, 0
      %p38 = por %p36, %p37
      %p39 = scmp.ne.s32.totalorder %s28, %s31
      %p40 = scmp.eq.s32.totalorder %s23, 1
      %p41 = por %p39, %p40
      %p42 = scmp.ne.s32.totalorder %s31, %s32
      %p43 = scmp.eq.s32.totalorder %s23, 0
      %p44 = por %p42, %p43
      %p45 = scmp.ne.s32.totalorder %s31, %s32
      %p46 = scmp.eq.s32.totalorder %s24, 1
      %p47 = por %p45, %p46
      %p49 = scmp.ne.s32.totalorder %s32, %s48
      %p50 = scmp.eq.s32.totalorder %s24, 0
      %p51 = por %p49, %p50
      %s53 = sadd.s32 %s52, 1
      %p56 = scmp.eq.s32.totalorder %s18, 1
      %p57 = scmp.ne.s32.totalorder %s52, %s54
      %p58 = scmp.eq.s32.totalorder %s18, 0
      %p59 = por %p57, %p58
      %p60 = scmp.ne.s32.totalorder %s52, %s54
      %p61 = scmp.eq.s32.totalorder %s23, 1
      %p62 = por %p60, %p61
      %p63 = scmp.ne.s32.totalorder %s54, %s55
      %p64 = scmp.eq.s32.totalorder %s23, 0
      %p65 = por %p63, %p64
      %p66 = scmp.ne.s32.totalorder %s54, %s55
      %p67 = scmp.eq.s32.totalorder %s24, 1
      %p68 = por %p66, %p67
      %p70 = scmp.ne.s32.totalorder %s55, %s69
      %p71 = scmp.eq.s32.totalorder %s24, 0
      %p72 = por %p70, %p71
      %s74 = sadd.s32 %s73, 1
      %p77 = scmp.eq.s32.totalorder %s18, 1
      %p78 = scmp.ne.s32.totalorder %s73, %s75
      %p79 = scmp.eq.s32.totalorder %s18, 0
      %p80 = por %p78, %p79
      %p81 = scmp.ne.s32.totalorder %s73, %s75
      %p82 = scmp.eq.s32.totalorder %s23, 1
      %p83 = por %p81, %p82
      %p84 = scmp.ne.s32.totalorder %s75, %s76
      %p85 = scmp.eq.s32.totalorder %s23, 0
      %p86 = por %p84, %p85
      %p87 = scmp.ne.s32.totalorder %s75, %s76
      %p88 = scmp.eq.s32.totalorder %s24, 1
      %p89 = por %p87, %p88
      %p91 = scmp.ne.s32.totalorder %s76, %s90
      %p92 = scmp.eq.s32.totalorder %s24, 0
      %p93 = por %p91, %p92
      %s95 = sadd.s32 %s94, 1
      %p98 = scmp.eq.s32.totalorder %s18, 1
      %p99 = scmp.ne.s32.totalorder %s94, %s96
      %p100 = scmp.eq.s32.totalorder %s18, 0
      %p101 = por %p99, %p100
      %p102 = scmp.ne.s32.totalorder %s94, %s96
      %p103 = scmp.eq.s32.totalorder %s23, 1
      %p104 = por %p102, %p103
      %p105 = scmp.ne.s32.totalorder %s96, %s97
      %p106 = scmp.eq.s32.totalorder %s23, 0
      %p107 = por %p105, %p106
      %p108 = scmp.ne.s32.totalorder %s96, %s97
      %p109 = scmp.eq.s32.totalorder %s24, 1
      %p110 = por %p108, %p109
      %p112 = scmp.ne.s32.totalorder %s97, %s111
      %p113 = scmp.eq.s32.totalorder %s24, 0
      %p114 = por %p112, %p113
      %s116 = sadd.s32 %s115, 1
      %p119 = scmp.eq.s32.totalorder %s18, 1
      %p120 = scmp.ne.s32.totalorder %s115, %s117
      %p121 = scmp.eq.s32.totalorder %s18, 0
      %p122 = por %p120, %p121
      %p123 = scmp.ne.s32.totalorder %s115, %s117
      %p124 = scmp.eq.s32.totalorder %s23, 1
      %p125 = por %p123, %p124
      %p126 = scmp.ne.s32.totalorder %s117, %s118
      %p127 = scmp.eq.s32.totalorder %s23, 0
      %p128 = por %p126, %p127
      %p129 = scmp.ne.s32.totalorder %s117, %s118
      %p130 = scmp.eq.s32.totalorder %s24, 1
      %p131 = por %p129, %p130
      %p133 = scmp.ne.s32.totalorder %s118, %s132
      %p134 = scmp.eq.s32.totalorder %s24, 0
      %p135 = por %p133, %p134
      %s137 = sadd.s32 %s136, 1
      %p140 = scmp.eq.s32.totalorder %s18, 1
      %p141 = scmp.ne.s32.totalorder %s136, %s138
      %p142 = scmp.eq.s32.totalorder %s18, 0
      %p143 = por %p141, %p142
      %p144 = scmp.ne.s32.totalorder %s136, %s138
      %p145 = scmp.eq.s32.totalorder %s23, 1
      %p146 = por %p144, %p145
      %p147 = scmp.ne.s32.totalorder %s138, %s139
      %p148 = scmp.eq.s32.totalorder %s23, 0
      %p149 = por %p147, %p148
      %p150 = scmp.ne.s32.totalorder %s138, %s139
      %p151 = scmp.eq.s32.totalorder %s24, 1
      %p152 = por %p150, %p151
      %p154 = scmp.ne.s32.totalorder %s139, %s153
      %p155 = scmp.eq.s32.totalorder %s24, 0
      %p156 = por %p154, %p155
      %s158 = sadd.s32 %s157, 1
      %p161 = scmp.eq.s32.totalorder %s18, 1
      %p162 = scmp.ne.s32.totalorder %s157, %s159
      %p163 = scmp.eq.s32.totalorder %s18, 0
      %p164 = por %p162, %p163
      %p165 = scmp.ne.s32.totalorder %s157, %s159
      %p166 = scmp.eq.s32.totalorder %s23, 1
      %p167 = por %p165, %p166
      %p168 = scmp.ne.s32.totalorder %s159, %s160
      %p169 = scmp.eq.s32.totalorder %s23, 0
      %p170 = por %p168, %p169
      %p171 = scmp.ne.s32.totalorder %s159, %s160
      %p172 = scmp.eq.s32.totalorder %s24, 1
      %p173 = por %p171, %p172
      %p175 = scmp.ne.s32.totalorder %s160, %s174
      %p176 = scmp.eq.s32.totalorder %s24, 0
      %p177 = por %p175, %p176
      %s179 = sadd.s32 %s178, 1
      %p182 = scmp.eq.s32.totalorder %s18, 1
      %p183 = scmp.ne.s32.totalorder %s178, %s180
      %p184 = scmp.eq.s32.totalorder %s18, 0
      %p185 = por %p183, %p184
      %p186 = scmp.ne.s32.totalorder %s178, %s180
      %p187 = scmp.eq.s32.totalorder %s23, 1
      %p188 = por %p186, %p187
      %p189 = scmp.ne.s32.totalorder %s180, %s181
      %p190 = scmp.eq.s32.totalorder %s23, 0
      %p191 = por %p189, %p190
      %p192 = scmp.ne.s32.totalorder %s180, %s181
      %p193 = scmp.eq.s32.totalorder %s24, 1
      %p194 = por %p192, %p193
      %p196 = scmp.ne.s32.totalorder %s181, %s195
      %p197 = scmp.eq.s32.totalorder %s24, 0
      %p198 = por %p196, %p197
      %s200 = sadd.s32 %s199, 1
      %p203 = scmp.eq.s32.totalorder %s18, 1
      %p204 = scmp.ne.s32.totalorder %s199, %s201
      %p205 = scmp.eq.s32.totalorder %s18, 0
      %p206 = por %p204, %p205
      %p207 = scmp.ne.s32.totalorder %s199, %s201
      %p208 = scmp.eq.s32.totalorder %s23, 1
      %p209 = por %p207, %p208
      %p210 = scmp.ne.s32.totalorder %s201, %s202
      %p211 = scmp.eq.s32.totalorder %s23, 0
      %p212 = por %p210, %p211
      %p213 = scmp.ne.s32.totalorder %s201, %s202
      %p214 = scmp.eq.s32.totalorder %s24, 1
      %p215 = por %p213, %p214
      %p217 = scmp.ne.s32.totalorder %s202, %s216
      %p218 = scmp.eq.s32.totalorder %s24, 0
      %p219 = por %p217, %p218
      %s221 = sadd.s32 %s220, 1
      %p224 = scmp.eq.s32.totalorder %s18, 1
      %p225 = scmp.ne.s32.totalorder %s220, %s222
      %p226 = scmp.eq.s32.totalorder %s18, 0
      %p227 = por %p225, %p226
      %p228 = scmp.ne.s32.totalorder %s220, %s222
      %p229 = scmp.eq.s32.totalorder %s23, 1
      %p230 = por %p228, %p229
      %p231 = scmp.ne.s32.totalorder %s222, %s223
      %p232 = scmp.eq.s32.totalorder %s23, 0
      %p233 = por %p231, %p232
      %p234 = scmp.ne.s32.totalorder %s222, %s223
      %p235 = scmp.eq.s32.totalorder %s24, 1
      %p236 = por %p234, %p235
      %p238 = scmp.ne.s32.totalorder %s223, %s237
      %p239 = scmp.eq.s32.totalorder %s24, 0
      %p240 = por %p238, %p239
      %s242 = sadd.s32 %s241, 1
      %p245 = scmp.eq.s32.totalorder %s18, 1
      %p246 = scmp.ne.s32.totalorder %s241, %s243
      %p247 = scmp.eq.s32.totalorder %s18, 0
      %p248 = por %p246, %p247
      %p249 = scmp.ne.s32.totalorder %s241, %s243
      %p250 = scmp.eq.s32.totalorder %s23, 1
      %p251 = por %p249, %p250
      %p252 = scmp.ne.s32.totalorder %s243, %s244
      %p253 = scmp.eq.s32.totalorder %s23, 0
      %p254 = por %p252, %p253
      %p255 = scmp.ne.s32.totalorder %s243, %s244
      %p256 = scmp.eq.s32.totalorder %s24, 1
      %p257 = por %p255, %p256
      %p259 = scmp.ne.s32.totalorder %s244, %s258
      %p260 = scmp.eq.s32.totalorder %s24, 0
      %p261 = por %p259, %p260
      %s263 = sadd.s32 %s262, 1
      %p266 = scmp.eq.s32.totalorder %s18, 1
      %p267 = scmp.ne.s32.totalorder %s262, %s264
      %p268 = scmp.eq.s32.totalorder %s18, 0
      %p269 = por %p267, %p268
      %p270 = scmp.ne.s32.totalorder %s262, %s264
      %p271 = scmp.eq.s32.totalorder %s23, 1
      %p272 = por %p270, %p271
      %p273 = scmp.ne.s32.totalorder %s264, %s265
      %p274 = scmp.eq.s32.totalorder %s23, 0
      %p275 = por %p273, %p274
      %p276 = scmp.ne.s32.totalorder %s264, %s265
      %p277 = scmp.eq.s32.totalorder %s24, 1
      %p278 = por %p276, %p277
      %p280 = scmp.ne.s32.totalorder %s265, %s279
      %p281 = scmp.eq.s32.totalorder %s24, 0
      %p282 = por %p280, %p281
      %s283 = ssub.s32 %s18, %s25
      %p284 = scmp.eq.s32.totalorder %s283, 0
      %s286 = sadd.s32 %s285, 1
      %s287 = scalar_select %p284, %s285, %s286
      %p290 = pneg %p284
      %p291 = scmp.eq.s32.totalorder %s18, 1
      %p292 = por %p290, %p291
      %p293 = scmp.ne.s32.totalorder %s285, %s288
      %p294 = scmp.eq.s32.totalorder %s18, 0
      %p295 = por %p293, %p294
      %p296 = scmp.ne.s32.totalorder %s285, %s288
      %p297 = scmp.eq.s32.totalorder %s23, 1
      %p298 = por %p296, %p297
      %p299 = scmp.ne.s32.totalorder %s288, %s289
      %p300 = scmp.eq.s32.totalorder %s23, 0
      %p301 = por %p299, %p300
      %p302 = scmp.ne.s32.totalorder %s288, %s289
      %p303 = scmp.eq.s32.totalorder %s24, 1
      %p304 = por %p302, %p303
      %p306 = scmp.ne.s32.totalorder %s289, %s305
      %p307 = scmp.eq.s32.totalorder %s24, 0
      %p308 = por %p306, %p307
      %p309 = scmp.le.s32.totalorder 1, %s18
      %p310 = scmp.lt.s32.totalorder %s18, 3
      %p311 = pnand %p309, %p310
      %p312 = pneg %p311
      // Predicated region
      $region9: #{_lambda_.5} parent=5 // pred_check
        _
      $region10: #{_lambda_.5} parent=5 // pred_check_branch
        %314 = sbr.rel (%p311) target = $region12
      $region11: #{_lambda_.5} parent=5 // pred_region
        %s315 = ssub.s32 %s18, 1
        // Predicated region
        $region13: #{_lambda_.5} parent=11 // pred_check
          %p316 = pneg %p65
        $region14: #{_lambda_.5} parent=11 // pred_check_branch
          %318 = sbr.rel (%p316) target = $region16
        $region15: #{_lambda_.5} parent=11 // pred_region
          _
        $region16: #{_lambda_.5} parent=11 // pred_fallthru
          _
        // Predicated region
        $region17: #{_lambda_.5} parent=11 // pred_check
          %p319 = pneg %p86
        $region18: #{_lambda_.5} parent=11 // pred_check_branch
          %321 = sbr.rel (%p319) target = $region20
        $region19: #{_lambda_.5} parent=11 // pred_region
          _
        $region20: #{_lambda_.5} parent=11 // pred_fallthru
          _
        // Predicated region
        $region21: #{_lambda_.5} parent=11 // pred_check
          %p322 = pneg %p107
        $region22: #{_lambda_.5} parent=11 // pred_check_branch
          %324 = sbr.rel (%p322) target = $region24
        $region23: #{_lambda_.5} parent=11 // pred_region
          _
        $region24: #{_lambda_.5} parent=11 // pred_fallthru
          _
        // Predicated region
        $region25: #{_lambda_.5} parent=11 // pred_check
          %p325 = pneg %p128
        $region26: #{_lambda_.5} parent=11 // pred_check_branch
          %327 = sbr.rel (%p325) target = $region28
        $region27: #{_lambda_.5} parent=11 // pred_region
          _
        $region28: #{_lambda_.5} parent=11 // pred_fallthru
          _
        // Predicated region
        $region29: #{_lambda_.5} parent=11 // pred_check
          %p328 = pneg %p149
        $region30: #{_lambda_.5} parent=11 // pred_check_branch
          %330 = sbr.rel (%p328) target = $region32
        $region31: #{_lambda_.5} parent=11 // pred_region
          _
        $region32: #{_lambda_.5} parent=11 // pred_fallthru
          _
        // Predicated region
        $region33: #{_lambda_.5} parent=11 // pred_check
          %p331 = pneg %p170
        $region34: #{_lambda_.5} parent=11 // pred_check_branch
          %333 = sbr.rel (%p331) target = $region36
        $region35: #{_lambda_.5} parent=11 // pred_region
          _
        $region36: #{_lambda_.5} parent=11 // pred_fallthru
          _
        // Predicated region
        $region37: #{_lambda_.5} parent=11 // pred_check
          %p334 = pneg %p191
        $region38: #{_lambda_.5} parent=11 // pred_check_branch
          %336 = sbr.rel (%p334) target = $region40
        $region39: #{_lambda_.5} parent=11 // pred_region
          _
        $region40: #{_lambda_.5} parent=11 // pred_fallthru
          _
        // Predicated region
        $region41: #{_lambda_.5} parent=11 // pred_check
          %p337 = pneg %p212
        $region42: #{_lambda_.5} parent=11 // pred_check_branch
          %339 = sbr.rel (%p337) target = $region44
        $region43: #{_lambda_.5} parent=11 // pred_region
          _
        $region44: #{_lambda_.5} parent=11 // pred_fallthru
          _
        // Predicated region
        $region45: #{_lambda_.5} parent=11 // pred_check
          %p340 = pneg %p233
        $region46: #{_lambda_.5} parent=11 // pred_check_branch
          %342 = sbr.rel (%p340) target = $region48
        $region47: #{_lambda_.5} parent=11 // pred_region
          _
        $region48: #{_lambda_.5} parent=11 // pred_fallthru
          _
        // Predicated region
        $region49: #{_lambda_.5} parent=11 // pred_check
          %p343 = pneg %p254
        $region50: #{_lambda_.5} parent=11 // pred_check_branch
          %345 = sbr.rel (%p343) target = $region52
        $region51: #{_lambda_.5} parent=11 // pred_region
          _
        $region52: #{_lambda_.5} parent=11 // pred_fallthru
          _
        // Predicated region
        $region53: #{_lambda_.5} parent=11 // pred_check
          %p346 = pneg %p275
        $region54: #{_lambda_.5} parent=11 // pred_check_branch
          %348 = sbr.rel (%p346) target = $region56
        $region55: #{_lambda_.5} parent=11 // pred_region
          _
        $region56: #{_lambda_.5} parent=11 // pred_fallthru
          _
      $region12: #{_lambda_.5} parent=5 // pred_fallthru
        _
      %p349 = scmp.lt.s32.totalorder %s18, 2
      // Predicated region
      $region57: #{_lambda_.5} parent=5 // pred_check
        %p350 = pneg %p349
      $region58: #{_lambda_.5} parent=5 // pred_check_branch
        %352 = sbr.rel (%p350) target = $region60
      $region59: #{_lambda_.5} parent=5 // pred_region
        // Predicated region
        $region61: #{_lambda_.5} parent=59 // pred_check
          %p353 = pneg %p38
        $region62: #{_lambda_.5} parent=59 // pred_check_branch
          %355 = sbr.rel (%p353) target = $region64
        $region63: #{_lambda_.5} parent=59 // pred_region
          %s356 = sand.u32 %s28, 1
          %s357 = sand.u32 %s28, 1
          %s358 = smul.addr %s357, 16
          %s359 = scalar_lea.vmem [#allocation2], %s358
          %s360 = smul.addr %s18, 8
          %s361 = scalar_lea.vmem %s0, %s360
          // Predicated region
          $region65: #{_lambda_.5} parent=63 // pred_check
            _
          $region66: #{_lambda_.5} parent=63 // pred_check_branch
            %363 = sbr.rel (0) target = $region68
          $region67: #{_lambda_.5} parent=63 // pred_region
            // Predicated region
            $region69: #{_lambda_.5} parent=67 // pred_check
              _
            $region70: #{_lambda_.5} parent=67 // pred_check_branch
              %365 = sbr.rel (0) target = $region72
            $region71: #{_lambda_.5} parent=67 // pred_region
              // Predicated region
              $region84: #{_lambda_.5} parent=71 // pred_check
                _
              $region85: #{_lambda_.5} parent=71 // pred_check_branch
                %382 = sbr.rel (0) target = $region87
              $region86: #{_lambda_.5} parent=71 // pred_region
                loop: start=0, step=1, limit=1
                $region88: #{_lambda_.5} parent=86 // loop_pre_header
                  _
                $region89: #{_lambda_.5} parent=86 // loop_header
                  %s384 = sphi 0, %s388
                  %p385 = scmp.ge.s32.totalorder %s384, 1
                  %s389 = sphi %s361, %s361
                  %s390 = sphi %s359, %s359
                $region90: #{_lambda_.5} parent=86 // loop_header_branch
                  %387 = sbr.rel (%p385) target = $region94
                $region91: #{_lambda_.5} parent=86 // loop_body
                  %v391 = vld [vmem:[%s389] sm:$0xff]
                  %392 = vst [vmem:[%s390] sm:$0xff] %v391
                  %v393 = vld [vmem:[%s389 + $0x10] sm:$0xff]
                  %394 = vst [vmem:[%s390 + $0x8] sm:$0xff] %v393
                $region92: #{_lambda_.5} parent=86 // loop_footer
                  %s388 = sadd.s32 1, %s384
                $region93: #{_lambda_.5} parent=86 // loop_footer_branch
                  %383 = sbr.rel target = $region89
                $region94: #{_lambda_.5} parent=86 // loop_exit
                  _
              $region87: #{_lambda_.5} parent=71 // pred_fallthru
                _
              // Predicated region
              $region95: #{_lambda_.5} parent=71 // pred_check
                _
              $region96: #{_lambda_.5} parent=71 // pred_check_branch
                %396 = sbr.rel target = $region98
              $region97: #{_lambda_.5} parent=71 // pred_region
                _
              $region98: #{_lambda_.5} parent=71 // pred_fallthru
                _
            $region72: #{_lambda_.5} parent=67 // pred_fallthru
              _
            // Predicated region
            $region73: #{_lambda_.5} parent=67 // pred_check
              _
            $region74: #{_lambda_.5} parent=67 // pred_check_branch
              %367 = sbr.rel target = $region76
            $region75: #{_lambda_.5} parent=67 // pred_region
              loop: start=0, step=1, limit=1
              $region77: #{_lambda_.5} parent=75 // loop_pre_header
                _
              $region78: #{_lambda_.5} parent=75 // loop_header
                %s370 = sphi 0, %s374
                %p371 = scmp.ge.s32.totalorder %s370, 1
                %s375 = sphi %s361, %s361
                %s376 = sphi %s359, %s359
              $region79: #{_lambda_.5} parent=75 // loop_header_branch
                %373 = sbr.rel (%p371) target = $region83
              $region80: #{_lambda_.5} parent=75 // loop_body
                %v377 = vld [vmem:[%s375] sm:$0xff]
                %378 = vst [vmem:[%s376] sm:$0xff] %v377
                %v379 = vld [vmem:[%s375 + $0x10] sm:$0xff]
                %380 = vst [vmem:[%s376 + $0x8] sm:$0xff] %v379
              $region81: #{_lambda_.5} parent=75 // loop_footer
                %s374 = sadd.s32 1, %s370
              $region82: #{_lambda_.5} parent=75 // loop_footer_branch
                %369 = sbr.rel target = $region78
              $region83: #{_lambda_.5} parent=75 // loop_exit
                _
            $region76: #{_lambda_.5} parent=67 // pred_fallthru
              _
          $region68: #{_lambda_.5} parent=63 // pred_fallthru
            _
          %397 = vnop
        $region64: #{_lambda_.5} parent=59 // pred_fallthru
          _
      $region60: #{_lambda_.5} parent=5 // pred_fallthru
        _
      %p398 = scmp.le.s32.totalorder 1, %s18
      %p399 = scmp.lt.s32.totalorder %s18, 3
      %p400 = pnand %p398, %p399
      %p401 = pneg %p400
      // Predicated region
      $region99: #{_lambda_.5} parent=5 // pred_check
        _
      $region100: #{_lambda_.5} parent=5 // pred_check_branch
        %403 = sbr.rel (%p400) target = $region102
      $region101: #{_lambda_.5} parent=5 // pred_region
        %s404 = ssub.s32 %s18, 1
        %s405 = sand.u32 %s31, 1
        %s406 = sand.u32 %s31, 1
        %s407 = smul.addr %s406, 16
        %s408 = scalar_lea.vmem [#allocation2], %s407
        // Predicated region
        $region103: #{_lambda_.5} parent=101 // pred_check
          %p409 = pneg %p44
        $region104: #{_lambda_.5} parent=101 // pred_check_branch
          %411 = sbr.rel (%p409) target = $region106
        $region105: #{_lambda_.5} parent=101 // pred_region
          _
        $region106: #{_lambda_.5} parent=101 // pred_fallthru
          _
        %s412 = sand.u32 %s31, 1
        %s413 = sand.u32 %s31, 1
        %s414 = smul.addr %s413, 16
        %s415 = scalar_lea.vmem [#allocation2], %s414
        %p416 = pneg %p44
        %p417 = pneg %p41
        %p418 = pneg %p65
        %p419 = pneg %p62
        %p420 = pneg %p86
        %p421 = pneg %p83
        %p422 = pneg %p107
        %p423 = pneg %p104
        %p424 = pneg %p128
        %p425 = pneg %p125
        %p426 = pneg %p149
        %p427 = pneg %p146
        %p428 = pneg %p170
        %p429 = pneg %p167
        %p430 = pneg %p191
        %p431 = pneg %p188
        %p432 = pneg %p212
        %p433 = pneg %p209
        %p434 = pneg %p233
        %p435 = pneg %p230
        %p436 = pneg %p254
        %p437 = pneg %p251
        %p438 = pneg %p275
        %p439 = pneg %p272
        %p440 = pneg %p301
        %p441 = pneg %p298
        %s442 = sand.u32 %s288, 1
        %s443 = sand.u32 %s288, 1
        %s444 = smul.addr %s443, 16
        %s445 = scalar_lea.vmem [#allocation3], %s444
        %v447 = vld [vmem:[%s408] sm:$0xff]
        %v448 = vld [vmem:[%s408 + $0x8] sm:$0xff]
        %v449 = vld [vmem:[%s1] sm:$0xff]
        %v450 = vld [vmem:[%s1 + $0x8] sm:$0xff]
        %v451 = vld [vmem:[%s1 + $0x10] sm:$0xff]
        %v452 = vld [vmem:[%s1 + $0x18] sm:$0xff]
        %v453 = vld [vmem:[%s1 + $0x20] sm:$0xff]
        %v454 = vld [vmem:[%s1 + $0x28] sm:$0xff]
        %v455 = vld [vmem:[%s1 + $0x30] sm:$0xff]
        %v456 = vld [vmem:[%s1 + $0x38] sm:$0xff]
        %v457 = vld [vmem:[%s1 + $0x40] sm:$0xff]
        %v458 = vld [vmem:[%s1 + $0x48] sm:$0xff]
        %v459 = vld [vmem:[%s1 + $0x50] sm:$0xff]
        %v460 = vld [vmem:[%s1 + $0x58] sm:$0xff]
        %v461 = vld [vmem:[%s1 + $0x60] sm:$0xff]
        %v462 = vld [vmem:[%s1 + $0x68] sm:$0xff]
        %v463 = vld [vmem:[%s1 + $0x70] sm:$0xff]
        %v464 = vld [vmem:[%s1 + $0x78] sm:$0xff]
        %v465 = vld [vmem:[%s2] sm:$0xf]
        %v466 = vld [vmem:[%s2 + $0x4] sm:$0xf]
        %v467 = vld [vmem:[%s2 + $0x8] sm:$0xf]
        %v468 = vld [vmem:[%s2 + $0xc] sm:$0xf]
        %v469 = vld [vmem:[%s2 + $0x10] sm:$0xf]
        %v470 = vld [vmem:[%s2 + $0x14] sm:$0xf]
        %v471 = vld [vmem:[%s2 + $0x18] sm:$0xf]
        %v472 = vld [vmem:[%s2 + $0x1c] sm:$0xf]
        %v473 = vld [vmem:[%s2 + $0x20] sm:$0xf]
        %v474 = vld [vmem:[%s2 + $0x24] sm:$0xf]
        %v475 = vld [vmem:[%s2 + $0x28] sm:$0xf]
        %v476 = vld [vmem:[%s2 + $0x2c] sm:$0xf]
        %v477 = vld [vmem:[%s2 + $0x30] sm:$0xf]
        %v478 = vld [vmem:[%s2 + $0x34] sm:$0xf]
        %v479 = vld [vmem:[%s2 + $0x38] sm:$0xf]
        %v480 = vld [vmem:[%s2 + $0x3c] sm:$0xf]
        %v481 = vld [vmem:[%s2 + $0x40] sm:$0xf]
        %v482 = vld [vmem:[%s2 + $0x44] sm:$0xf]
        %v483 = vld [vmem:[%s2 + $0x48] sm:$0xf]
        %v484 = vld [vmem:[%s2 + $0x4c] sm:$0xf]
        %v485 = vld [vmem:[%s2 + $0x50] sm:$0xf]
        %v486 = vld [vmem:[%s2 + $0x54] sm:$0xf]
        %v487 = vld [vmem:[%s2 + $0x58] sm:$0xf]
        %v488 = vld [vmem:[%s2 + $0x5c] sm:$0xf]
        %v489 = vld [vmem:[%s2 + $0x60] sm:$0xf]
        %v490 = vld [vmem:[%s2 + $0x64] sm:$0xf]
        %v491 = vld [vmem:[%s2 + $0x68] sm:$0xf]
        %v492 = vld [vmem:[%s2 + $0x6c] sm:$0xf]
        %v493 = vld [vmem:[%s2 + $0x70] sm:$0xf]
        %v494 = vld [vmem:[%s2 + $0x74] sm:$0xf]
        %v495 = vld [vmem:[%s2 + $0x78] sm:$0xf]
        %v496 = vld [vmem:[%s2 + $0x7c] sm:$0xf]
        %v497 = vld [vmem:[%s3] sm:$0xff]
        %v498 = vld [vmem:[%s3 + $0x8] sm:$0xff]
        %v499 = vld [vmem:[%s3 + $0x10] sm:$0xff]
        %v500 = vld [vmem:[%s3 + $0x18] sm:$0xff]
        %v501 = vld [vmem:[%s4] sm:$0xff]
        %v502 = vld [vmem:[%s4 + $0x8] sm:$0xff]
        %v503 = vld [vmem:[%s4 + $0x10] sm:$0xff]
        %v504 = vld [vmem:[%s4 + $0x18] sm:$0xff]
        %v505 = vld [vmem:[%s4 + $0x20] sm:$0xff]
        %v506 = vld [vmem:[%s4 + $0x28] sm:$0xff]
        %v507 = vld [vmem:[%s4 + $0x30] sm:$0xff]
        %v508 = vld [vmem:[%s4 + $0x38] sm:$0xff]
        %v509 = vld [vmem:[%s4 + $0x40] sm:$0xff]
        %v510 = vld [vmem:[%s4 + $0x48] sm:$0xff]
        %v511 = vld [vmem:[%s4 + $0x50] sm:$0xff]
        %v512 = vld [vmem:[%s4 + $0x58] sm:$0xff]
        %v513 = vld [vmem:[%s4 + $0x60] sm:$0xff]
        %v514 = vld [vmem:[%s4 + $0x68] sm:$0xff]
        %v515 = vld [vmem:[%s4 + $0x70] sm:$0xff]
        %v516 = vld [vmem:[%s4 + $0x78] sm:$0xff]
        %v517 = vld [vmem:[%s4 + $0x80] sm:$0xff]
        %v518 = vld [vmem:[%s4 + $0x88] sm:$0xff]
        %v519 = vld [vmem:[%s4 + $0x90] sm:$0xff]
        %v520 = vld [vmem:[%s4 + $0x98] sm:$0xff]
        %v521 = vld [vmem:[%s4 + $0xa0] sm:$0xff]
        %v522 = vld [vmem:[%s4 + $0xa8] sm:$0xff]
        %v523 = vld [vmem:[%s4 + $0xb0] sm:$0xff]
        %v524 = vld [vmem:[%s4 + $0xb8] sm:$0xff]
        %v525 = vld [vmem:[%s4 + $0xc0] sm:$0xff]
        %v526 = vld [vmem:[%s4 + $0xc8] sm:$0xff]
        %v527 = vld [vmem:[%s4 + $0xd0] sm:$0xff]
        %v528 = vld [vmem:[%s4 + $0xd8] sm:$0xff]
        %v529 = vld [vmem:[%s4 + $0xe0] sm:$0xff]
        %v530 = vld [vmem:[%s4 + $0xe8] sm:$0xff]
        %v531 = vld [vmem:[%s4 + $0xf0] sm:$0xff]
        %v532 = vld [vmem:[%s4 + $0xf8] sm:$0xff]
        %v533 = vld [vmem:[%s4 + $0x100] sm:$0xff]
        %v534 = vld [vmem:[%s4 + $0x108] sm:$0xff]
        %v535 = vld [vmem:[%s4 + $0x110] sm:$0xff]
        %v536 = vld [vmem:[%s4 + $0x118] sm:$0xff]
        %v537 = vld [vmem:[%s4 + $0x120] sm:$0xff]
        %v538 = vld [vmem:[%s4 + $0x128] sm:$0xff]
        %v539 = vld [vmem:[%s4 + $0x130] sm:$0xff]
        %v540 = vld [vmem:[%s4 + $0x138] sm:$0xff]
        %v541 = vld [vmem:[%s4 + $0x140] sm:$0xff]
        %v542 = vld [vmem:[%s4 + $0x148] sm:$0xff]
        %v543 = vld [vmem:[%s4 + $0x150] sm:$0xff]
        %v544 = vld [vmem:[%s4 + $0x158] sm:$0xff]
        %v545 = vld [vmem:[%s4 + $0x160] sm:$0xff]
        %v546 = vld [vmem:[%s4 + $0x168] sm:$0xff]
        %v547 = vld [vmem:[%s4 + $0x170] sm:$0xff]
        %v548 = vld [vmem:[%s4 + $0x178] sm:$0xff]
        %v549 = vld [vmem:[%s4 + $0x180] sm:$0xff]
        %v550 = vld [vmem:[%s4 + $0x188] sm:$0xff]
        %v551 = vld [vmem:[%s4 + $0x190] sm:$0xff]
        %v552 = vld [vmem:[%s4 + $0x198] sm:$0xff]
        %v553 = vld [vmem:[%s4 + $0x1a0] sm:$0xff]
        %v554 = vld [vmem:[%s4 + $0x1a8] sm:$0xff]
        %v555 = vld [vmem:[%s4 + $0x1b0] sm:$0xff]
        %v556 = vld [vmem:[%s4 + $0x1b8] sm:$0xff]
        %v557 = vld [vmem:[%s4 + $0x1c0] sm:$0xff]
        %v558 = vld [vmem:[%s4 + $0x1c8] sm:$0xff]
        %v559 = vld [vmem:[%s4 + $0x1d0] sm:$0xff]
        %v560 = vld [vmem:[%s4 + $0x1d8] sm:$0xff]
        %v561 = vld [vmem:[%s4 + $0x1e0] sm:$0xff]
        %v562 = vld [vmem:[%s4 + $0x1e8] sm:$0xff]
        %v563 = vld [vmem:[%s4 + $0x1f0] sm:$0xff]
        %v564 = vld [vmem:[%s4 + $0x1f8] sm:$0xff]
        %v565 = vld [vmem:[%s5] sm:$0xff]
        %v566 = vld [vmem:[%s6] sm:$0xf]
        %v567 = vld [vmem:[%s6 + $0x4] sm:$0xf]
        %v568 = vld [vmem:[%s6 + $0x8] sm:$0xf]
        %v569 = vld [vmem:[%s6 + $0xc] sm:$0xf]
        %v570 = vld [vmem:[%s6 + $0x10] sm:$0xf]
        %v571 = vld [vmem:[%s6 + $0x14] sm:$0xf]
        %v572 = vld [vmem:[%s6 + $0x18] sm:$0xf]
        %v573 = vld [vmem:[%s6 + $0x1c] sm:$0xf]
        %v574 = vld [vmem:[%s6 + $0x20] sm:$0xf]
        %v575 = vld [vmem:[%s6 + $0x24] sm:$0xf]
        %v576 = vld [vmem:[%s6 + $0x28] sm:$0xf]
        %v577 = vld [vmem:[%s6 + $0x2c] sm:$0xf]
        %v578 = vld [vmem:[%s6 + $0x30] sm:$0xf]
        %v579 = vld [vmem:[%s6 + $0x34] sm:$0xf]
        %v580 = vld [vmem:[%s6 + $0x38] sm:$0xf]
        %v581 = vld [vmem:[%s6 + $0x3c] sm:$0xf]
        %v582 = vld [vmem:[%s6 + $0x40] sm:$0xf]
        %v583 = vld [vmem:[%s6 + $0x44] sm:$0xf]
        %v584 = vld [vmem:[%s6 + $0x48] sm:$0xf]
        %v585 = vld [vmem:[%s6 + $0x4c] sm:$0xf]
        %v586 = vld [vmem:[%s6 + $0x50] sm:$0xf]
        %v587 = vld [vmem:[%s6 + $0x54] sm:$0xf]
        %v588 = vld [vmem:[%s6 + $0x58] sm:$0xf]
        %v589 = vld [vmem:[%s6 + $0x5c] sm:$0xf]
        %v590 = vld [vmem:[%s6 + $0x60] sm:$0xf]
        %v591 = vld [vmem:[%s6 + $0x64] sm:$0xf]
        %v592 = vld [vmem:[%s6 + $0x68] sm:$0xf]
        %v593 = vld [vmem:[%s6 + $0x6c] sm:$0xf]
        %v594 = vld [vmem:[%s6 + $0x70] sm:$0xf]
        %v595 = vld [vmem:[%s6 + $0x74] sm:$0xf]
        %v596 = vld [vmem:[%s6 + $0x78] sm:$0xf]
        %v597 = vld [vmem:[%s6 + $0x7c] sm:$0xf]
        %v598 = vld [vmem:[%s7] sm:$0x1]
        %599 = vmatprep.subr.mxu0 0.0
        %600 = vmatpush1.msra.mxu0 %v449
        %601 = vmatprep.subr.mxu0 0.0
        %602 = vmatpush1.msra.mxu0 %v450
        %603 = vmatprep.subr.mxu0 0.0
        %604 = vmatpush1.msra.mxu0 %v451
        %605 = vmatprep.subr.mxu0 0.0
        %606 = vmatpush1.msra.mxu0 %v452
        %607 = vmatprep.subr.mxu0 0.0
        %608 = vmatpush1.msra.mxu0 %v453
        %609 = vmatprep.subr.mxu0 0.0
        %610 = vmatpush1.msra.mxu0 %v454
        %611 = vmatprep.subr.mxu0 0.0
        %612 = vmatpush1.msra.mxu0 %v455
        %613 = vmatprep.subr.mxu0 0.0
        %614 = vmatpush1.msra.mxu0 %v456
        %615 = vmatprep.subr.mxu0 0.0
        %616 = vmatpush1.msra.mxu0 %v457
        %617 = vmatprep.subr.mxu0 0.0
        %618 = vmatpush1.msra.mxu0 %v458
        %619 = vmatprep.subr.mxu0 0.0
        %620 = vmatpush1.msra.mxu0 %v459
        %621 = vmatprep.subr.mxu0 0.0
        %622 = vmatpush1.msra.mxu0 %v460
        %623 = vmatprep.subr.mxu0 0.0
        %624 = vmatpush1.msra.mxu0 %v461
        %625 = vmatprep.subr.mxu0 0.0
        %626 = vmatpush1.msra.mxu0 %v462
        %627 = vmatprep.subr.mxu0 0.0
        %628 = vmatpush1.msra.mxu0 %v463
        %629 = vmatprep.subr.mxu0 0.0
        %630 = vmatpush1.msra.mxu0 %v464
        %631 = vmatprep.subr.mxu0 0.0
        %632 = vmatpush1.msra.mxu0 0.0
        %633 = vmatprep.subr.mxu0 0.0
        %634 = vmatpush1.msra.mxu0 0.0
        %635 = vmatprep.subr.mxu0 0.0
        %636 = vmatpush1.msra.mxu0 0.0
        %637 = vmatprep.subr.mxu0 0.0
        %638 = vmatpush1.msra.mxu0 0.0
        %639 = vmatprep.subr.mxu0 0.0
        %640 = vmatpush1.msra.mxu0 0.0
        %641 = vmatprep.subr.mxu0 0.0
        %642 = vmatpush1.msra.mxu0 0.0
        %643 = vmatprep.subr.mxu0 0.0
        %644 = vmatpush1.msra.mxu0 0.0
        %645 = vmatprep.subr.mxu0 0.0
        %646 = vmatpush1.msra.mxu0 0.0
        %647 = vmatprep.subr.mxu0 0.0
        %648 = vmatpush1.msra.mxu0 0.0
        %649 = vmatprep.subr.mxu0 0.0
        %650 = vmatpush1.msra.mxu0 0.0
        %651 = vmatprep.subr.mxu0 0.0
        %652 = vmatpush1.msra.mxu0 0.0
        %653 = vmatprep.subr.mxu0 0.0
        %654 = vmatpush1.msra.mxu0 0.0
        %655 = vmatprep.subr.mxu0 0.0
        %656 = vmatpush1.msra.mxu0 0.0
        %657 = vmatprep.subr.mxu0 0.0
        %658 = vmatpush1.msra.mxu0 0.0
        %659 = vmatprep.subr.mxu0 0.0
        %660 = vmatpush1.msra.mxu0 0.0
        %661 = vmatprep.subr.mxu0 0.0
        %662 = vmatpush1.msra.mxu0 0.0
        %663 = vmatprep.mubr.f32.mxu0 0.0
        %664 = vmatmul.mubr.f32.gmra.mrb[0].mxu0 %v447
        %v665 = vpop.f32.mrb[0].mxu0
        %v666 = vadd.f32 0.0, %v665
        %v667 = vpop.f32.mrb[0].mxu0
        %668 = vmatprep.mubr.f32.mxu0 0.0
        %669 = vmatmul.mubr.f32.gmra.mrb[0].mxu0 %v448
        %v670 = vpop.f32.mrb[0].mxu0
        %v671 = vadd.f32 0.0, %v670
        %v672 = vpop.f32.mrb[0].mxu0
        %673 = vdwg.mxu0
        %v674 = vsub.f32 %v447, %v666
        %v675 = vsub.f32 %v448, %v671
        %v676 = vmul.f32 %v674, %v674
        %v677 = vmul.f32 %v675, %v675
        %678 = vmatprep.subr.mxu0 0.0
        %679 = vmatpush1.msra.mxu0 %v449
        %680 = vmatprep.subr.mxu0 0.0
        %681 = vmatpush1.msra.mxu0 %v450
        %682 = vmatprep.subr.mxu0 0.0
        %683 = vmatpush1.msra.mxu0 %v451
        %684 = vmatprep.subr.mxu0 0.0
        %685 = vmatpush1.msra.mxu0 %v452
        %686 = vmatprep.subr.mxu0 0.0
        %687 = vmatpush1.msra.mxu0 %v453
        %688 = vmatprep.subr.mxu0 0.0
        %689 = vmatpush1.msra.mxu0 %v454
        %690 = vmatprep.subr.mxu0 0.0
        %691 = vmatpush1.msra.mxu0 %v455
        %692 = vmatprep.subr.mxu0 0.0
        %693 = vmatpush1.msra.mxu0 %v456
        %694 = vmatprep.subr.mxu0 0.0
        %695 = vmatpush1.msra.mxu0 %v457
        %696 = vmatprep.subr.mxu0 0.0
        %697 = vmatpush1.msra.mxu0 %v458
        %698 = vmatprep.subr.mxu0 0.0
        %699 = vmatpush1.msra.mxu0 %v459
        %700 = vmatprep.subr.mxu0 0.0
        %701 = vmatpush1.msra.mxu0 %v460
        %702 = vmatprep.subr.mxu0 0.0
        %703 = vmatpush1.msra.mxu0 %v461
        %704 = vmatprep.subr.mxu0 0.0
        %705 = vmatpush1.msra.mxu0 %v462
        %706 = vmatprep.subr.mxu0 0.0
        %707 = vmatpush1.msra.mxu0 %v463
        %708 = vmatprep.subr.mxu0 0.0
        %709 = vmatpush1.msra.mxu0 %v464
        %710 = vmatprep.subr.mxu0 0.0
        %711 = vmatpush1.msra.mxu0 0.0
        %712 = vmatprep.subr.mxu0 0.0
        %713 = vmatpush1.msra.mxu0 0.0
        %714 = vmatprep.subr.mxu0 0.0
        %715 = vmatpush1.msra.mxu0 0.0
        %716 = vmatprep.subr.mxu0 0.0
        %717 = vmatpush1.msra.mxu0 0.0
        %718 = vmatprep.subr.mxu0 0.0
        %719 = vmatpush1.msra.mxu0 0.0
        %720 = vmatprep.subr.mxu0 0.0
        %721 = vmatpush1.msra.mxu0 0.0
        %722 = vmatprep.subr.mxu0 0.0
        %723 = vmatpush1.msra.mxu0 0.0
        %724 = vmatprep.subr.mxu0 0.0
        %725 = vmatpush1.msra.mxu0 0.0
        %726 = vmatprep.subr.mxu0 0.0
        %727 = vmatpush1.msra.mxu0 0.0
        %728 = vmatprep.subr.mxu0 0.0
        %729 = vmatpush1.msra.mxu0 0.0
        %730 = vmatprep.subr.mxu0 0.0
        %731 = vmatpush1.msra.mxu0 0.0
        %732 = vmatprep.subr.mxu0 0.0
        %733 = vmatpush1.msra.mxu0 0.0
        %734 = vmatprep.subr.mxu0 0.0
        %735 = vmatpush1.msra.mxu0 0.0
        %736 = vmatprep.subr.mxu0 0.0
        %737 = vmatpush1.msra.mxu0 0.0
        %738 = vmatprep.subr.mxu0 0.0
        %739 = vmatpush1.msra.mxu0 0.0
        %740 = vmatprep.subr.mxu0 0.0
        %741 = vmatpush1.msra.mxu0 0.0
        %742 = vmatprep.mubr.f32.mxu0 0.0
        %743 = vmatmul.mubr.f32.gmra.mrb[0].mxu0 %v676
        %v744 = vpop.f32.mrb[0].mxu0
        %v745 = vadd.f32 1e-05, %v744
        %v746 = vpop.f32.mrb[0].mxu0
        %747 = vmatprep.mubr.f32.mxu0 0.0
        %748 = vmatmul.mubr.f32.gmra.mrb[0].mxu0 %v677
        %v749 = vpop.f32.mrb[0].mxu0
        %v750 = vadd.f32 1e-05, %v749
        %v751 = vpop.f32.mrb[0].mxu0
        %752 = vdwg.mxu0
        %v753 = vrsqrt.pop %v745
        %v754 = vrsqrt.pop %v750
        %v755 = vmul.f32 %v674, %v753
        %v756 = vmul.f32 %v675, %v754
        %v757 = vpack.c.bf16 %v756, %v755
        %v759 = vlaneseq
        %v760 = vshrl.u32 %v759, 7
        %v761 = vsub.s32 0, %v760
        %v762 = vrot.slane %v565, %v761
        %v763 = vlaneseq
        %v764 = vshrl.u32 %v763, 7
        %v765 = vsub.s32 1, %v764
        %v766 = vrot.slane %v565, %v765
        %v767 = vlaneseq
        %v768 = vshrl.u32 %v767, 7
        %v769 = vsub.s32 2, %v768
        %v770 = vrot.slane %v565, %v769
        %v771 = vlaneseq
        %v772 = vshrl.u32 %v771, 7
        %v773 = vsub.s32 3, %v772
        %v774 = vrot.slane %v565, %v773
        %v775 = vlaneseq
        %v776 = vshrl.u32 %v775, 7
        %v777 = vsub.s32 4, %v776
        %v778 = vrot.slane %v565, %v777
        %v779 = vlaneseq
        %v780 = vshrl.u32 %v779, 7
        %v781 = vsub.s32 5, %v780
        %v782 = vrot.slane %v565, %v781
        %v783 = vlaneseq
        %v784 = vshrl.u32 %v783, 7
        %v785 = vsub.s32 6, %v784
        %v786 = vrot.slane %v565, %v785
        %v787 = vlaneseq
        %v788 = vshrl.u32 %v787, 7
        %v789 = vsub.s32 7, %v788
        %v790 = vrot.slane %v565, %v789
        %v863 = vunpack.c.l.b16 %v501
        %v864 = vunpack.c.h.b16 %v501
        %v865 = vunpack.c.l.b16 %v502
        %v866 = vunpack.c.h.b16 %v502
        %v867 = vunpack.c.l.b16 %v503
        %v868 = vunpack.c.h.b16 %v503
        %v869 = vunpack.c.l.b16 %v504
        %v870 = vunpack.c.h.b16 %v504
        %v871 = vunpack.c.l.b16 %v505
        %v872 = vunpack.c.h.b16 %v505
        %v873 = vunpack.c.l.b16 %v506
        %v874 = vunpack.c.h.b16 %v506
        %v875 = vunpack.c.l.b16 %v507
        %v876 = vunpack.c.h.b16 %v507
        %v877 = vunpack.c.l.b16 %v508
        %v878 = vunpack.c.h.b16 %v508
        %v879 = vunpack.c.l.b16 %v509
        %v880 = vunpack.c.h.b16 %v509
        %v881 = vunpack.c.l.b16 %v510
        %v882 = vunpack.c.h.b16 %v510
        %v883 = vunpack.c.l.b16 %v511
        %v884 = vunpack.c.h.b16 %v511
        %v885 = vunpack.c.l.b16 %v512
        %v886 = vunpack.c.h.b16 %v512
        %v887 = vunpack.c.l.b16 %v513
        %v888 = vunpack.c.h.b16 %v513
        %v889 = vunpack.c.l.b16 %v514
        %v890 = vunpack.c.h.b16 %v514
        %v891 = vunpack.c.l.b16 %v515
        %v892 = vunpack.c.h.b16 %v515
        %v893 = vunpack.c.l.b16 %v516
        %v894 = vunpack.c.h.b16 %v516
        %v895 = vunpack.c.l.b16 %v517
        %v896 = vunpack.c.h.b16 %v517
        %v897 = vunpack.c.l.b16 %v518
        %v898 = vunpack.c.h.b16 %v518
        %v899 = vunpack.c.l.b16 %v519
        %v900 = vunpack.c.h.b16 %v519
        %v901 = vunpack.c.l.b16 %v520
        %v902 = vunpack.c.h.b16 %v520
        %v903 = vunpack.c.l.b16 %v521
        %v904 = vunpack.c.h.b16 %v521
        %v905 = vunpack.c.l.b16 %v522
        %v906 = vunpack.c.h.b16 %v522
        %v907 = vunpack.c.l.b16 %v523
        %v908 = vunpack.c.h.b16 %v523
        %v909 = vunpack.c.l.b16 %v524
        %v910 = vunpack.c.h.b16 %v524
        %v911 = vunpack.c.l.b16 %v525
        %v912 = vunpack.c.h.b16 %v525
        %v913 = vunpack.c.l.b16 %v526
        %v914 = vunpack.c.h.b16 %v526
        %v915 = vunpack.c.l.b16 %v527
        %v916 = vunpack.c.h.b16 %v527
        %v917 = vunpack.c.l.b16 %v528
        %v918 = vunpack.c.h.b16 %v528
        %v919 = vunpack.c.l.b16 %v529
        %v920 = vunpack.c.h.b16 %v529
        %v921 = vunpack.c.l.b16 %v530
        %v922 = vunpack.c.h.b16 %v530
        %v923 = vunpack.c.l.b16 %v531
        %v924 = vunpack.c.h.b16 %v531
        %v925 = vunpack.c.l.b16 %v532
        %v926 = vunpack.c.h.b16 %v532
        %v927 = vunpack.c.l.b16 %v533
        %v928 = vunpack.c.h.b16 %v533
        %v929 = vunpack.c.l.b16 %v534
        %v930 = vunpack.c.h.b16 %v534
        %v931 = vunpack.c.l.b16 %v535
        %v932 = vunpack.c.h.b16 %v535
        %v933 = vunpack.c.l.b16 %v536
        %v934 = vunpack.c.h.b16 %v536
        %v935 = vunpack.c.l.b16 %v537
        %v936 = vunpack.c.h.b16 %v537
        %v937 = vunpack.c.l.b16 %v538
        %v938 = vunpack.c.h.b16 %v538
        %v939 = vunpack.c.l.b16 %v539
        %v940 = vunpack.c.h.b16 %v539
        %v941 = vunpack.c.l.b16 %v540
        %v942 = vunpack.c.h.b16 %v540
        %v943 = vunpack.c.l.b16 %v541
        %v944 = vunpack.c.h.b16 %v541
        %v945 = vunpack.c.l.b16 %v542
        %v946 = vunpack.c.h.b16 %v542
        %v947 = vunpack.c.l.b16 %v543
        %v948 = vunpack.c.h.b16 %v543
        %v949 = vunpack.c.l.b16 %v544
        %v950 = vunpack.c.h.b16 %v544
        %v951 = vunpack.c.l.b16 %v545
        %v952 = vunpack.c.h.b16 %v545
        %v953 = vunpack.c.l.b16 %v546
        %v954 = vunpack.c.h.b16 %v546
        %v955 = vunpack.c.l.b16 %v547
        %v956 = vunpack.c.h.b16 %v547
        %v957 = vunpack.c.l.b16 %v548
        %v958 = vunpack.c.h.b16 %v548
        %v959 = vunpack.c.l.b16 %v549
        %v960 = vunpack.c.h.b16 %v549
        %v961 = vunpack.c.l.b16 %v550
        %v962 = vunpack.c.h.b16 %v550
        %v963 = vunpack.c.l.b16 %v551
        %v964 = vunpack.c.h.b16 %v551
        %v965 = vunpack.c.l.b16 %v552
        %v966 = vunpack.c.h.b16 %v552
        %v967 = vunpack.c.l.b16 %v553
        %v968 = vunpack.c.h.b16 %v553
        %v969 = vunpack.c.l.b16 %v554
        %v970 = vunpack.c.h.b16 %v554
        %v971 = vunpack.c.l.b16 %v555
        %v972 = vunpack.c.h.b16 %v555
        %v973 = vunpack.c.l.b16 %v556
        %v974 = vunpack.c.h.b16 %v556
        %v975 = vunpack.c.l.b16 %v557
        %v976 = vunpack.c.h.b16 %v557
        %v977 = vunpack.c.l.b16 %v558
        %v978 = vunpack.c.h.b16 %v558
        %v979 = vunpack.c.l.b16 %v559
        %v980 = vunpack.c.h.b16 %v559
        %v981 = vunpack.c.l.b16 %v560
        %v982 = vunpack.c.h.b16 %v560
        %v983 = vunpack.c.l.b16 %v561
        %v984 = vunpack.c.h.b16 %v561
        %v985 = vunpack.c.l.b16 %v562
        %v986 = vunpack.c.h.b16 %v562
        %v987 = vunpack.c.l.b16 %v563
        %v988 = vunpack.c.h.b16 %v563
        %v989 = vunpack.c.l.b16 %v564
        %v990 = vunpack.c.h.b16 %v564
        %v991 = vpack.c.b16 %v871, %v863
        %v992 = vpack.c.b16 %v872, %v864
        %v993 = vpack.c.b16 %v873, %v865
        %v994 = vpack.c.b16 %v874, %v866
        %v995 = vpack.c.b16 %v875, %v867
        %v996 = vpack.c.b16 %v876, %v868
        %v997 = vpack.c.b16 %v877, %v869
        %v998 = vpack.c.b16 %v878, %v870
        %v999 = vpack.c.b16 %v887, %v879
        %v1000 = vpack.c.b16 %v888, %v880
        %v1001 = vpack.c.b16 %v889, %v881
        %v1002 = vpack.c.b16 %v890, %v882
        %v1003 = vpack.c.b16 %v891, %v883
        %v1004 = vpack.c.b16 %v892, %v884
        %v1005 = vpack.c.b16 %v893, %v885
        %v1006 = vpack.c.b16 %v894, %v886
        %v1007 = vpack.c.b16 %v903, %v895
        %v1008 = vpack.c.b16 %v904, %v896
        %v1009 = vpack.c.b16 %v905, %v897
        %v1010 = vpack.c.b16 %v906, %v898
        %v1011 = vpack.c.b16 %v907, %v899
        %v1012 = vpack.c.b16 %v908, %v900
        %v1013 = vpack.c.b16 %v909, %v901
        %v1014 = vpack.c.b16 %v910, %v902
        %v1015 = vpack.c.b16 %v919, %v911
        %v1016 = vpack.c.b16 %v920, %v912
        %v1017 = vpack.c.b16 %v921, %v913
        %v1018 = vpack.c.b16 %v922, %v914
        %v1019 = vpack.c.b16 %v923, %v915
        %v1020 = vpack.c.b16 %v924, %v916
        %v1021 = vpack.c.b16 %v925, %v917
        %v1022 = vpack.c.b16 %v926, %v918
        %v1023 = vpack.c.b16 %v935, %v927
        %v1024 = vpack.c.b16 %v936, %v928
        %v1025 = vpack.c.b16 %v937, %v929
        %v1026 = vpack.c.b16 %v938, %v930
        %v1027 = vpack.c.b16 %v939, %v931
        %v1028 = vpack.c.b16 %v940, %v932
        %v1029 = vpack.c.b16 %v941, %v933
        %v1030 = vpack.c.b16 %v942, %v934
        %v1031 = vpack.c.b16 %v951, %v943
        %v1032 = vpack.c.b16 %v952, %v944
        %v1033 = vpack.c.b16 %v953, %v945
        %v1034 = vpack.c.b16 %v954, %v946
        %v1035 = vpack.c.b16 %v955, %v947
        %v1036 = vpack.c.b16 %v956, %v948
        %v1037 = vpack.c.b16 %v957, %v949
        %v1038 = vpack.c.b16 %v958, %v950
        %v1039 = vpack.c.b16 %v967, %v959
        %v1040 = vpack.c.b16 %v968, %v960
        %v1041 = vpack.c.b16 %v969, %v961
        %v1042 = vpack.c.b16 %v970, %v962
        %v1043 = vpack.c.b16 %v971, %v963
        %v1044 = vpack.c.b16 %v972, %v964
        %v1045 = vpack.c.b16 %v973, %v965
        %v1046 = vpack.c.b16 %v974, %v966
        %v1047 = vpack.c.b16 %v983, %v975
        %v1048 = vpack.c.b16 %v984, %v976
        %v1049 = vpack.c.b16 %v985, %v977
        %v1050 = vpack.c.b16 %v986, %v978
        %v1051 = vpack.c.b16 %v987, %v979
        %v1052 = vpack.c.b16 %v988, %v980
        %v1053 = vpack.c.b16 %v989, %v981
        %v1054 = vpack.c.b16 %v990, %v982
        %1119 = vmatprep.subr.bf16.mxu0 %v992
        %1120 = vmatpush1.bf16.msra.mxu0 %v991
        %1121 = vmatprep.subr.bf16.mxu0 %v1000
        %1122 = vmatpush1.bf16.msra.mxu0 %v999
        %1123 = vmatprep.subr.bf16.mxu0 %v1008
        %1124 = vmatpush1.bf16.msra.mxu0 %v1007
        %1125 = vmatprep.subr.bf16.mxu0 %v1016
        %1126 = vmatpush1.bf16.msra.mxu0 %v1015
        %1127 = vmatprep.subr.bf16.mxu0 %v1024
        %1128 = vmatpush1.bf16.msra.mxu0 %v1023
        %1129 = vmatprep.subr.bf16.mxu0 %v1032
        %1130 = vmatpush1.bf16.msra.mxu0 %v1031
        %1131 = vmatprep.subr.bf16.mxu0 %v1040
        %1132 = vmatpush1.bf16.msra.mxu0 %v1039
        %1133 = vmatprep.subr.bf16.mxu0 %v1048
        %1134 = vmatpush1.bf16.msra.mxu0 %v1047
        %1135 = vmatprep.subr.bf16.mxu0 0
        %1136 = vmatpush1.bf16.msra.mxu0 0
        %1137 = vmatprep.subr.bf16.mxu0 0
        %1138 = vmatpush1.bf16.msra.mxu0 0
        %1139 = vmatprep.subr.bf16.mxu0 0
        %1140 = vmatpush1.bf16.msra.mxu0 0
        %1141 = vmatprep.subr.bf16.mxu0 0
        %1142 = vmatpush1.bf16.msra.mxu0 0
        %1143 = vmatprep.subr.bf16.mxu0 0
        %1144 = vmatpush1.bf16.msra.mxu0 0
        %1145 = vmatprep.subr.bf16.mxu0 0
        %1146 = vmatpush1.bf16.msra.mxu0 0
        %1147 = vmatprep.subr.bf16.mxu0 0
        %1148 = vmatpush1.bf16.msra.mxu0 0
        %1149 = vmatprep.subr.bf16.mxu0 0
        %1150 = vmatpush1.bf16.msra.mxu0 0
        %1151 = vmatprep.mubr.bf16.mxu0 0
        %1152 = vmatmul.mubr.bf16.gmra.mrb[0].mxu0 %v757
        %v1153 = vpop.f32.mrb[0].mxu0
        %v1154 = vadd.f32 %v762, %v1153
        %v1155 = vpop.f32.mrb[0].mxu0
        %v1156 = vadd.f32 %v766, %v1155
        %v1157 = vpop.f32.mrb[0].mxu0
        %v1158 = vadd.f32 %v762, %v1157
        %v1159 = vpop.f32.mrb[0].mxu0
        %v1160 = vadd.f32 %v766, %v1159
        %1161 = vdwg.mxu0
        %1162 = vmatprep.subr.bf16.mxu0 %v994
        %1163 = vmatpush1.bf16.msra.mxu0 %v993
        %1164 = vmatprep.subr.bf16.mxu0 %v1002
        %1165 = vmatpush1.bf16.msra.mxu0 %v1001
        %1166 = vmatprep.subr.bf16.mxu0 %v1010
        %1167 = vmatpush1.bf16.msra.mxu0 %v1009
        %1168 = vmatprep.subr.bf16.mxu0 %v1018
        %1169 = vmatpush1.bf16.msra.mxu0 %v1017
        %1170 = vmatprep.subr.bf16.mxu0 %v1026
        %1171 = vmatpush1.bf16.msra.mxu0 %v1025
        %1172 = vmatprep.subr.bf16.mxu0 %v1034
        %1173 = vmatpush1.bf16.msra.mxu0 %v1033
        %1174 = vmatprep.subr.bf16.mxu0 %v1042
        %1175 = vmatpush1.bf16.msra.mxu0 %v1041
        %1176 = vmatprep.subr.bf16.mxu0 %v1050
        %1177 = vmatpush1.bf16.msra.mxu0 %v1049
        %1178 = vmatprep.subr.bf16.mxu0 0
        %1179 = vmatpush1.bf16.msra.mxu0 0
        %1180 = vmatprep.subr.bf16.mxu0 0
        %1181 = vmatpush1.bf16.msra.mxu0 0
        %1182 = vmatprep.subr.bf16.mxu0 0
        %1183 = vmatpush1.bf16.msra.mxu0 0
        %1184 = vmatprep.subr.bf16.mxu0 0
        %1185 = vmatpush1.bf16.msra.mxu0 0
        %1186 = vmatprep.subr.bf16.mxu0 0
        %1187 = vmatpush1.bf16.msra.mxu0 0
        %1188 = vmatprep.subr.bf16.mxu0 0
        %1189 = vmatpush1.bf16.msra.mxu0 0
        %1190 = vmatprep.subr.bf16.mxu0 0
        %1191 = vmatpush1.bf16.msra.mxu0 0
        %1192 = vmatprep.subr.bf16.mxu0 0
        %1193 = vmatpush1.bf16.msra.mxu0 0
        %1194 = vmatprep.mubr.bf16.mxu0 0
        %1195 = vmatmul.mubr.bf16.gmra.mrb[0].mxu0 %v757
        %v1196 = vpop.f32.mrb[0].mxu0
        %v1197 = vadd.f32 %v770, %v1196
        %v1198 = vpop.f32.mrb[0].mxu0
        %v1199 = vadd.f32 %v774, %v1198
        %v1200 = vpop.f32.mrb[0].mxu0
        %v1201 = vadd.f32 %v770, %v1200
        %v1202 = vpop.f32.mrb[0].mxu0
        %v1203 = vadd.f32 %v774, %v1202
        %1204 = vdwg.mxu0
        %1205 = vmatprep.subr.bf16.mxu0 %v996
        %1206 = vmatpush1.bf16.msra.mxu0 %v995
        %1207 = vmatprep.subr.bf16.mxu0 %v1004
        %1208 = vmatpush1.bf16.msra.mxu0 %v1003
        %1209 = vmatprep.subr.bf16.mxu0 %v1012
        %1210 = vmatpush1.bf16.msra.mxu0 %v1011
        %1211 = vmatprep.subr.bf16.mxu0 %v1020
        %1212 = vmatpush1.bf16.msra.mxu0 %v1019
        %1213 = vmatprep.subr.bf16.mxu0 %v1028
        %1214 = vmatpush1.bf16.msra.mxu0 %v1027
        %1215 = vmatprep.subr.bf16.mxu0 %v1036
        %1216 = vmatpush1.bf16.msra.mxu0 %v1035
        %1217 = vmatprep.subr.bf16.mxu0 %v1044
        %1218 = vmatpush1.bf16.msra.mxu0 %v1043
        %1219 = vmatprep.subr.bf16.mxu0 %v1052
        %1220 = vmatpush1.bf16.msra.mxu0 %v1051
        %1221 = vmatprep.subr.bf16.mxu0 0
        %1222 = vmatpush1.bf16.msra.mxu0 0
        %1223 = vmatprep.subr.bf16.mxu0 0
        %1224 = vmatpush1.bf16.msra.mxu0 0
        %1225 = vmatprep.subr.bf16.mxu0 0
        %1226 = vmatpush1.bf16.msra.mxu0 0
        %1227 = vmatprep.subr.bf16.mxu0 0
        %1228 = vmatpush1.bf16.msra.mxu0 0
        %1229 = vmatprep.subr.bf16.mxu0 0
        %1230 = vmatpush1.bf16.msra.mxu0 0
        %1231 = vmatprep.subr.bf16.mxu0 0
        %1232 = vmatpush1.bf16.msra.mxu0 0
        %1233 = vmatprep.subr.bf16.mxu0 0
        %1234 = vmatpush1.bf16.msra.mxu0 0
        %1235 = vmatprep.subr.bf16.mxu0 0
        %1236 = vmatpush1.bf16.msra.mxu0 0
        %1237 = vmatprep.mubr.bf16.mxu0 0
        %1238 = vmatmul.mubr.bf16.gmra.mrb[0].mxu0 %v757
        %v1239 = vpop.f32.mrb[0].mxu0
        %v1240 = vadd.f32 %v778, %v1239
        %v1241 = vpop.f32.mrb[0].mxu0
        %v1242 = vadd.f32 %v782, %v1241
        %v1243 = vpop.f32.mrb[0].mxu0
        %v1244 = vadd.f32 %v778, %v1243
        %v1245 = vpop.f32.mrb[0].mxu0
        %v1246 = vadd.f32 %v782, %v1245
        %1247 = vdwg.mxu0
        %1248 = vmatprep.subr.bf16.mxu0 %v998
        %1249 = vmatpush1.bf16.msra.mxu0 %v997
        %1250 = vmatprep.subr.bf16.mxu0 %v1006
        %1251 = vmatpush1.bf16.msra.mxu0 %v1005
        %1252 = vmatprep.subr.bf16.mxu0 %v1014
        %1253 = vmatpush1.bf16.msra.mxu0 %v1013
        %1254 = vmatprep.subr.bf16.mxu0 %v1022
        %1255 = vmatpush1.bf16.msra.mxu0 %v1021
        %1256 = vmatprep.subr.bf16.mxu0 %v1030
        %1257 = vmatpush1.bf16.msra.mxu0 %v1029
        %1258 = vmatprep.subr.bf16.mxu0 %v1038
        %1259 = vmatpush1.bf16.msra.mxu0 %v1037
        %1260 = vmatprep.subr.bf16.mxu0 %v1046
        %1261 = vmatpush1.bf16.msra.mxu0 %v1045
        %1262 = vmatprep.subr.bf16.mxu0 %v1054
        %1263 = vmatpush1.bf16.msra.mxu0 %v1053
        %1264 = vmatprep.subr.bf16.mxu0 0
        %1265 = vmatpush1.bf16.msra.mxu0 0
        %1266 = vmatprep.subr.bf16.mxu0 0
        %1267 = vmatpush1.bf16.msra.mxu0 0
        %1268 = vmatprep.subr.bf16.mxu0 0
        %1269 = vmatpush1.bf16.msra.mxu0 0
        %1270 = vmatprep.subr.bf16.mxu0 0
        %1271 = vmatpush1.bf16.msra.mxu0 0
        %1272 = vmatprep.subr.bf16.mxu0 0
        %1273 = vmatpush1.bf16.msra.mxu0 0
        %1274 = vmatprep.subr.bf16.mxu0 0
        %1275 = vmatpush1.bf16.msra.mxu0 0
        %1276 = vmatprep.subr.bf16.mxu0 0
        %1277 = vmatpush1.bf16.msra.mxu0 0
        %1278 = vmatprep.subr.bf16.mxu0 0
        %1279 = vmatpush1.bf16.msra.mxu0 0
        %1280 = vmatprep.mubr.bf16.mxu0 0
        %1281 = vmatmul.mubr.bf16.gmra.mrb[0].mxu0 %v757
        %v1282 = vpop.f32.mrb[0].mxu0
        %v1283 = vadd.f32 %v786, %v1282
        %v1284 = vpop.f32.mrb[0].mxu0
        %v1285 = vadd.f32 %v790, %v1284
        %v1286 = vpop.f32.mrb[0].mxu0
        %v1287 = vadd.f32 %v786, %v1286
        %v1288 = vpop.f32.mrb[0].mxu0
        %v1289 = vadd.f32 %v790, %v1288
        %1290 = vdwg.mxu0
        %v1291 = vxor.u32 %v1283, 2147483648
        %v1292 = vxor.u32 %v1285, 2147483648
        %v1293 = vxor.u32 %v1287, 2147483648
        %v1294 = vxor.u32 %v1289, 2147483648
        %v1295 = vmul.f32 %v1291, 1.442695
        %v1296 = vpow.pop %v1295
        %v1297 = vmul.f32 %v1292, 1.442695
        %v1298 = vpow.pop %v1297
        %v1299 = vmul.f32 %v1293, 1.442695
        %v1300 = vpow.pop %v1299
        %v1301 = vmul.f32 %v1294, 1.442695
        %v1302 = vpow.pop %v1301
        %v1303 = vadd.f32 %v1296, 1.0
        %v1304 = vadd.f32 %v1298, 1.0
        %v1305 = vadd.f32 %v1300, 1.0
        %v1306 = vadd.f32 %v1302, 1.0
        %v1307 = vrcp.pop %v1303
        %v1308 = vmul.f32 1.0, %v1307
        %v1309 = vrcp.pop %v1304
        %v1310 = vmul.f32 1.0, %v1309
        %v1311 = vrcp.pop %v1305
        %v1312 = vmul.f32 1.0, %v1311
        %v1313 = vrcp.pop %v1306
        %v1314 = vmul.f32 1.0, %v1313
        %v1315 = vmul.f32 %v1154, %v1197
        %v1316 = vmul.f32 %v1156, %v1199
        %v1317 = vmul.f32 %v1154, %v1201
        %v1318 = vmul.f32 %v1156, %v1203
        %v1319 = vmul.f32 %v1158, %v1197
        %v1320 = vmul.f32 %v1160, %v1199
        %v1321 = vmul.f32 %v1158, %v1201
        %v1322 = vmul.f32 %v1160, %v1203
        %v1323 = vpack.c.bf16 %v1317, %v1315
        %v1324 = vpack.c.bf16 %v1318, %v1316
        %v1325 = vpack.c.bf16 %v1321, %v1319
        %v1326 = vpack.c.bf16 %v1322, %v1320
        %v1359 = vunpack.c.l.b16 %v465
        %v1360 = vunpack.c.l.b16 %v466
        %v1361 = vunpack.c.l.b16 %v467
        %v1362 = vunpack.c.l.b16 %v468
        %v1363 = vunpack.c.l.b16 %v469
        %v1364 = vunpack.c.l.b16 %v470
        %v1365 = vunpack.c.l.b16 %v471
        %v1366 = vunpack.c.l.b16 %v472
        %v1367 = vunpack.c.l.b16 %v473
        %v1368 = vunpack.c.l.b16 %v474
        %v1369 = vunpack.c.l.b16 %v475
        %v1370 = vunpack.c.l.b16 %v476
        %v1371 = vunpack.c.l.b16 %v477
        %v1372 = vunpack.c.l.b16 %v478
        %v1373 = vunpack.c.l.b16 %v479
        %v1374 = vunpack.c.l.b16 %v480
        %v1375 = vunpack.c.l.b16 %v481
        %v1376 = vunpack.c.l.b16 %v482
        %v1377 = vunpack.c.l.b16 %v483
        %v1378 = vunpack.c.l.b16 %v484
        %v1379 = vunpack.c.l.b16 %v485
        %v1380 = vunpack.c.l.b16 %v486
        %v1381 = vunpack.c.l.b16 %v487
        %v1382 = vunpack.c.l.b16 %v488
        %v1383 = vunpack.c.l.b16 %v489
        %v1384 = vunpack.c.l.b16 %v490
        %v1385 = vunpack.c.l.b16 %v491
        %v1386 = vunpack.c.l.b16 %v492
        %v1387 = vunpack.c.l.b16 %v493
        %v1388 = vunpack.c.l.b16 %v494
        %v1389 = vunpack.c.l.b16 %v495
        %v1390 = vunpack.c.l.b16 %v496
        %v1391 = vpack.c.b16 %v1360, %v1359
        %v1392 = vpack.c.b16 %v1362, %v1361
        %v1393 = vpack.c.b16 %v1364, %v1363
        %v1394 = vpack.c.b16 %v1366, %v1365
        %v1395 = vpack.c.b16 %v1368, %v1367
        %v1396 = vpack.c.b16 %v1370, %v1369
        %v1397 = vpack.c.b16 %v1372, %v1371
        %v1398 = vpack.c.b16 %v1374, %v1373
        %v1399 = vpack.c.b16 %v1376, %v1375
        %v1400 = vpack.c.b16 %v1378, %v1377
        %v1401 = vpack.c.b16 %v1380, %v1379
        %v1402 = vpack.c.b16 %v1382, %v1381
        %v1403 = vpack.c.b16 %v1384, %v1383
        %v1404 = vpack.c.b16 %v1386, %v1385
        %v1405 = vpack.c.b16 %v1388, %v1387
        %v1406 = vpack.c.b16 %v1390, %v1389
        %1423 = vmatprep.subr.bf16.mxu0 0
        %1424 = vmatpush1.bf16.msra.mxu0 %v1391
        %1425 = vmatprep.subr.bf16.mxu0 0
        %1426 = vmatpush1.bf16.msra.mxu0 %v1392
        %1427 = vmatprep.subr.bf16.mxu0 0
        %1428 = vmatpush1.bf16.msra.mxu0 %v1393
        %1429 = vmatprep.subr.bf16.mxu0 0
        %1430 = vmatpush1.bf16.msra.mxu0 %v1394
        %1431 = vmatprep.subr.bf16.mxu0 0
        %1432 = vmatpush1.bf16.msra.mxu0 %v1395
        %1433 = vmatprep.subr.bf16.mxu0 0
        %1434 = vmatpush1.bf16.msra.mxu0 %v1396
        %1435 = vmatprep.subr.bf16.mxu0 0
        %1436 = vmatpush1.bf16.msra.mxu0 %v1397
        %1437 = vmatprep.subr.bf16.mxu0 0
        %1438 = vmatpush1.bf16.msra.mxu0 %v1398
        %1439 = vmatprep.subr.bf16.mxu0 0
        %1440 = vmatpush1.bf16.msra.mxu0 %v1399
        %1441 = vmatprep.subr.bf16.mxu0 0
        %1442 = vmatpush1.bf16.msra.mxu0 %v1400
        %1443 = vmatprep.subr.bf16.mxu0 0
        %1444 = vmatpush1.bf16.msra.mxu0 %v1401
        %1445 = vmatprep.subr.bf16.mxu0 0
        %1446 = vmatpush1.bf16.msra.mxu0 %v1402
        %1447 = vmatprep.subr.bf16.mxu0 0
        %1448 = vmatpush1.bf16.msra.mxu0 %v1403
        %1449 = vmatprep.subr.bf16.mxu0 0
        %1450 = vmatpush1.bf16.msra.mxu0 %v1404
        %1451 = vmatprep.subr.bf16.mxu0 0
        %1452 = vmatpush1.bf16.msra.mxu0 %v1405
        %1453 = vmatprep.subr.bf16.mxu0 0
        %1454 = vmatpush1.bf16.msra.mxu0 %v1406
        %1455 = vmatprep.mubr.bf16.mxu0 %v1324
        %1456 = vmatmul.mubr.bf16.gmra.mrb[0].mxu0 %v1323
        %v1457 = vpop.f32.mrb[0].mxu0
        %v1458 = vadd.f32 0.0, %v1457
        %v1459 = vpop.f32.mrb[0].mxu0
        %v1460 = vpop.f32.mrb[0].mxu0
        %v1461 = vadd.f32 0.0, %v1460
        %v1462 = vpop.f32.mrb[0].mxu0
        %1463 = vmatprep.mubr.bf16.mxu0 %v1326
        %1464 = vmatmul.mubr.bf16.gmra.mrb[0].mxu0 %v1325
        %v1465 = vpop.f32.mrb[0].mxu0
        %v1466 = vadd.f32 0.0, %v1465
        %v1467 = vpop.f32.mrb[0].mxu0
        %v1468 = vpop.f32.mrb[0].mxu0
        %v1469 = vadd.f32 0.0, %v1468
        %v1470 = vpop.f32.mrb[0].mxu0
        %1471 = vdwg.mxu0
        %v1472 = vmul.f32 %v1458, 0.35355338
        %v1473 = vmul.f32 %v1461, 0.35355338
        %v1474 = vmul.f32 %v1466, 0.35355338
        %v1475 = vmul.f32 %v1469, 0.35355338
        %vm1476 = vcmask 261120
        %v1477 = vsel %vm1476, %v1472, -inf
        %v1478 = vsel %vm1476, %v1473, -inf
        %v1479 = vmax.f32 %v1477, %v1478
        %v1480 = vsel %vm1476, %v1474, -inf
        %v1481 = vsel %vm1476, %v1475, -inf
        %v1482 = vmax.f32 %v1480, %v1481
        %v1483 = vsub.f32 %v1472, %v1479
        %v1484 = vsub.f32 %v1473, %v1479
        %v1485 = vsub.f32 %v1474, %v1482
        %v1486 = vsub.f32 %v1475, %v1482
        %v1487 = vmul.f32 %v1483, 1.442695
        %v1488 = vpow.pop %v1487
        %v1489 = vmul.f32 %v1484, 1.442695
        %v1490 = vpow.pop %v1489
        %v1491 = vmul.f32 %v1485, 1.442695
        %v1492 = vpow.pop %v1491
        %v1493 = vmul.f32 %v1486, 1.442695
        %v1494 = vpow.pop %v1493
        %v1495 = vsel %vm1476, %v1488, 0.0
        %v1496 = vsel %vm1476, %v1490, 0.0
        %v1497 = vadd.f32 %v1495, %v1496
        %v1498 = vsel %vm1476, %v1492, 0.0
        %v1499 = vsel %vm1476, %v1494, 0.0
        %v1500 = vadd.f32 %v1498, %v1499
        %v1501 = vrcp.pop %v1497
        %v1502 = vrcp.pop %v1500
        %v1503 = vmul.f32 %v1488, %v1501
        %v1504 = vmul.f32 %v1490, %v1501
        %v1505 = vmul.f32 %v1492, %v1502
        %v1506 = vmul.f32 %v1494, %v1502
        %v1507 = vpack.c.bf16 %v1504, %v1503
        %v1508 = vpack.c.bf16 %v1506, %v1505
        %v1513 = vunpack.c.l.b16 %v497
        %v1514 = vunpack.c.h.b16 %v497
        %v1515 = vunpack.c.l.b16 %v498
        %v1516 = vunpack.c.h.b16 %v498
        %v1517 = vunpack.c.l.b16 %v499
        %v1518 = vunpack.c.h.b16 %v499
        %v1519 = vunpack.c.l.b16 %v500
        %v1520 = vunpack.c.h.b16 %v500
        %v1521 = vpack.c.b16 %v1515, %v1513
        %v1522 = vpack.c.b16 %v1516, %v1514
        %v1523 = vpack.c.b16 %v1519, %v1517
        %v1524 = vpack.c.b16 %v1520, %v1518
        %v1530 = vsel %vm1476, %v1507, 0
        %v1533 = vsel %vm1476, %v1508, 0
        %1535 = vmatprep.subr.bf16.mxu0 %v1522
        %1536 = vmatpush1.bf16.msra.mxu0 %v1521
        %1537 = vmatprep.subr.bf16.mxu0 %v1524
        %1538 = vmatpush1.bf16.msra.mxu0 %v1523
        %1539 = vmatprep.subr.bf16.mxu0 0
        %1540 = vmatpush1.bf16.msra.mxu0 0
        %1541 = vmatprep.subr.bf16.mxu0 0
        %1542 = vmatpush1.bf16.msra.mxu0 0
        %1543 = vmatprep.subr.bf16.mxu0 0
        %1544 = vmatpush1.bf16.msra.mxu0 0
        %1545 = vmatprep.subr.bf16.mxu0 0
        %1546 = vmatpush1.bf16.msra.mxu0 0
        %1547 = vmatprep.subr.bf16.mxu0 0
        %1548 = vmatpush1.bf16.msra.mxu0 0
        %1549 = vmatprep.subr.bf16.mxu0 0
        %1550 = vmatpush1.bf16.msra.mxu0 0
        %1551 = vmatprep.subr.bf16.mxu0 0
        %1552 = vmatpush1.bf16.msra.mxu0 0
        %1553 = vmatprep.subr.bf16.mxu0 0
        %1554 = vmatpush1.bf16.msra.mxu0 0
        %1555 = vmatprep.subr.bf16.mxu0 0
        %1556 = vmatpush1.bf16.msra.mxu0 0
        %1557 = vmatprep.subr.bf16.mxu0 0
        %1558 = vmatpush1.bf16.msra.mxu0 0
        %1559 = vmatprep.subr.bf16.mxu0 0
        %1560 = vmatpush1.bf16.msra.mxu0 0
        %1561 = vmatprep.subr.bf16.mxu0 0
        %1562 = vmatpush1.bf16.msra.mxu0 0
        %1563 = vmatprep.subr.bf16.mxu0 0
        %1564 = vmatpush1.bf16.msra.mxu0 0
        %1565 = vmatprep.subr.bf16.mxu0 0
        %1566 = vmatpush1.bf16.msra.mxu0 0
        %1567 = vmatprep.mubr.bf16.mxu0 0
        %1568 = vmatmul.mubr.bf16.gmra.mrb[0].mxu0 %v1530
        %v1569 = vpop.f32.mrb[0].mxu0
        %v1570 = vadd.f32 0.0, %v1569
        %v1571 = vpop.f32.mrb[0].mxu0
        %v1572 = vadd.f32 0.0, %v1571
        %v1573 = vpop.f32.mrb[0].mxu0
        %v1574 = vadd.f32 0.0, %v1573
        %v1575 = vpop.f32.mrb[0].mxu0
        %v1576 = vadd.f32 0.0, %v1575
        %1577 = vmatprep.mubr.bf16.mxu0 0
        %1578 = vmatmul.mubr.bf16.gmra.mrb[0].mxu0 %v1533
        %v1579 = vpop.f32.mrb[0].mxu0
        %v1580 = vadd.f32 0.0, %v1579
        %v1581 = vpop.f32.mrb[0].mxu0
        %v1582 = vadd.f32 0.0, %v1581
        %v1583 = vpop.f32.mrb[0].mxu0
        %v1584 = vadd.f32 0.0, %v1583
        %v1585 = vpop.f32.mrb[0].mxu0
        %v1586 = vadd.f32 0.0, %v1585
        %1587 = vdwg.mxu0
        %v1588 = vmul.f32 %v1570, %v1240
        %v1589 = vmul.f32 %v1572, %v1242
        %v1590 = vmul.f32 %v1574, %v1244
        %v1591 = vmul.f32 %v1576, %v1246
        %v1592 = vmul.f32 %v1580, %v1240
        %v1593 = vmul.f32 %v1582, %v1242
        %v1594 = vmul.f32 %v1584, %v1244
        %v1595 = vmul.f32 %v1586, %v1246
        %v1596 = vadd.f32 %v1588, %v1590
        %v1597 = vadd.f32 %v1589, %v1591
        %v1598 = vadd.f32 %v1592, %v1594
        %v1599 = vadd.f32 %v1593, %v1595
        %v1600 = vmul.f32 %v1596, %v1308
        %v1601 = vmul.f32 %v1597, %v1310
        %v1602 = vmul.f32 %v1598, %v1312
        %v1603 = vmul.f32 %v1599, %v1314
        %v1604 = vpack.c.bf16 %v1602, %v1600
        %v1605 = vpack.c.bf16 %v1603, %v1601
        %v1607 = vlaneseq
        %v1608 = vshrl.u32 %v1607, 7
        %v1609 = vsub.s32 0, %v1608
        %v1610 = vrot.slane %v598, %v1609
        %v1644 = vunpack.c.l.b16 %v566
        %v1645 = vunpack.c.l.b16 %v567
        %v1646 = vunpack.c.l.b16 %v568
        %v1647 = vunpack.c.l.b16 %v569
        %v1648 = vunpack.c.l.b16 %v570
        %v1649 = vunpack.c.l.b16 %v571
        %v1650 = vunpack.c.l.b16 %v572
        %v1651 = vunpack.c.l.b16 %v573
        %v1652 = vunpack.c.l.b16 %v574
        %v1653 = vunpack.c.l.b16 %v575
        %v1654 = vunpack.c.l.b16 %v576
        %v1655 = vunpack.c.l.b16 %v577
        %v1656 = vunpack.c.l.b16 %v578
        %v1657 = vunpack.c.l.b16 %v579
        %v1658 = vunpack.c.l.b16 %v580
        %v1659 = vunpack.c.l.b16 %v581
        %v1660 = vunpack.c.l.b16 %v582
        %v1661 = vunpack.c.l.b16 %v583
        %v1662 = vunpack.c.l.b16 %v584
        %v1663 = vunpack.c.l.b16 %v585
        %v1664 = vunpack.c.l.b16 %v586
        %v1665 = vunpack.c.l.b16 %v587
        %v1666 = vunpack.c.l.b16 %v588
        %v1667 = vunpack.c.l.b16 %v589
        %v1668 = vunpack.c.l.b16 %v590
        %v1669 = vunpack.c.l.b16 %v591
        %v1670 = vunpack.c.l.b16 %v592
        %v1671 = vunpack.c.l.b16 %v593
        %v1672 = vunpack.c.l.b16 %v594
        %v1673 = vunpack.c.l.b16 %v595
        %v1674 = vunpack.c.l.b16 %v596
        %v1675 = vunpack.c.l.b16 %v597
        %v1676 = vpack.c.b16 %v1645, %v1644
        %v1677 = vpack.c.b16 %v1647, %v1646
        %v1678 = vpack.c.b16 %v1649, %v1648
        %v1679 = vpack.c.b16 %v1651, %v1650
        %v1680 = vpack.c.b16 %v1653, %v1652
        %v1681 = vpack.c.b16 %v1655, %v1654
        %v1682 = vpack.c.b16 %v1657, %v1656
        %v1683 = vpack.c.b16 %v1659, %v1658
        %v1684 = vpack.c.b16 %v1661, %v1660
        %v1685 = vpack.c.b16 %v1663, %v1662
        %v1686 = vpack.c.b16 %v1665, %v1664
        %v1687 = vpack.c.b16 %v1667, %v1666
        %v1688 = vpack.c.b16 %v1669, %v1668
        %v1689 = vpack.c.b16 %v1671, %v1670
        %v1690 = vpack.c.b16 %v1673, %v1672
        %v1691 = vpack.c.b16 %v1675, %v1674
        %1708 = vmatprep.subr.bf16.mxu0 0
        %1709 = vmatpush1.bf16.msra.mxu0 %v1676
        %1710 = vmatprep.subr.bf16.mxu0 0
        %1711 = vmatpush1.bf16.msra.mxu0 %v1677
        %1712 = vmatprep.subr.bf16.mxu0 0
        %1713 = vmatpush1.bf16.msra.mxu0 %v1678
        %1714 = vmatprep.subr.bf16.mxu0 0
        %1715 = vmatpush1.bf16.msra.mxu0 %v1679
        %1716 = vmatprep.subr.bf16.mxu0 0
        %1717 = vmatpush1.bf16.msra.mxu0 %v1680
        %1718 = vmatprep.subr.bf16.mxu0 0
        %1719 = vmatpush1.bf16.msra.mxu0 %v1681
        %1720 = vmatprep.subr.bf16.mxu0 0
        %1721 = vmatpush1.bf16.msra.mxu0 %v1682
        %1722 = vmatprep.subr.bf16.mxu0 0
        %1723 = vmatpush1.bf16.msra.mxu0 %v1683
        %1724 = vmatprep.subr.bf16.mxu0 0
        %1725 = vmatpush1.bf16.msra.mxu0 %v1684
        %1726 = vmatprep.subr.bf16.mxu0 0
        %1727 = vmatpush1.bf16.msra.mxu0 %v1685
        %1728 = vmatprep.subr.bf16.mxu0 0
        %1729 = vmatpush1.bf16.msra.mxu0 %v1686
        %1730 = vmatprep.subr.bf16.mxu0 0
        %1731 = vmatpush1.bf16.msra.mxu0 %v1687
        %1732 = vmatprep.subr.bf16.mxu0 0
        %1733 = vmatpush1.bf16.msra.mxu0 %v1688
        %1734 = vmatprep.subr.bf16.mxu0 0
        %1735 = vmatpush1.bf16.msra.mxu0 %v1689
        %1736 = vmatprep.subr.bf16.mxu0 0
        %1737 = vmatpush1.bf16.msra.mxu0 %v1690
        %1738 = vmatprep.subr.bf16.mxu0 0
        %1739 = vmatpush1.bf16.msra.mxu0 %v1691
        %1740 = vmatprep.mubr.bf16.mxu0 %v1605
        %1741 = vmatmul.mubr.bf16.gmra.mrb[0].mxu0 %v1604
        %v1742 = vpop.f32.mrb[0].mxu0
        %v1743 = vadd.f32 %v1610, %v1742
        %v1744 = vpop.f32.mrb[0].mxu0
        %v1745 = vpop.f32.mrb[0].mxu0
        %v1746 = vadd.f32 %v1610, %v1745
        %v1747 = vpop.f32.mrb[0].mxu0
        %1748 = vdwg.mxu0
        %v1749 = vadd.f32 %v447, %v1743
        %v1750 = vadd.f32 %v448, %v1746
        %v1751 = vld [vmem:[%s8] sm:$0xf]
        %v1752 = vld [vmem:[%s8 + $0x4] sm:$0xf]
        %v1753 = vld [vmem:[%s8 + $0x8] sm:$0xf]
        %v1754 = vld [vmem:[%s8 + $0xc] sm:$0xf]
        %v1755 = vld [vmem:[%s8 + $0x10] sm:$0xf]
        %v1756 = vld [vmem:[%s8 + $0x14] sm:$0xf]
        %v1757 = vld [vmem:[%s8 + $0x18] sm:$0xf]
        %v1758 = vld [vmem:[%s8 + $0x1c] sm:$0xf]
        %v1759 = vld [vmem:[%s8 + $0x20] sm:$0xf]
        %v1760 = vld [vmem:[%s8 + $0x24] sm:$0xf]
        %v1761 = vld [vmem:[%s8 + $0x28] sm:$0xf]
        %v1762 = vld [vmem:[%s8 + $0x2c] sm:$0xf]
        %v1763 = vld [vmem:[%s8 + $0x30] sm:$0xf]
        %v1764 = vld [vmem:[%s8 + $0x34] sm:$0xf]
        %v1765 = vld [vmem:[%s8 + $0x38] sm:$0xf]
        %v1766 = vld [vmem:[%s8 + $0x3c] sm:$0xf]
        %v1767 = vld [vmem:[%s9] sm:$0x1]
        %v1768 = vld [vmem:[%s10] sm:$0xf]
        %v1769 = vld [vmem:[%s10 + $0x4] sm:$0xf]
        %v1770 = vld [vmem:[%s10 + $0x8] sm:$0xf]
        %v1771 = vld [vmem:[%s10 + $0xc] sm:$0xf]
        %v1772 = vld [vmem:[%s10 + $0x10] sm:$0xf]
        %v1773 = vld [vmem:[%s10 + $0x14] sm:$0xf]
        %v1774 = vld [vmem:[%s10 + $0x18] sm:$0xf]
        %v1775 = vld [vmem:[%s10 + $0x1c] sm:$0xf]
        %v1776 = vld [vmem:[%s10 + $0x20] sm:$0xf]
        %v1777 = vld [vmem:[%s10 + $0x24] sm:$0xf]
        %v1778 = vld [vmem:[%s10 + $0x28] sm:$0xf]
        %v1779 = vld [vmem:[%s10 + $0x2c] sm:$0xf]
        %v1780 = vld [vmem:[%s10 + $0x30] sm:$0xf]
        %v1781 = vld [vmem:[%s10 + $0x34] sm:$0xf]
        %v1782 = vld [vmem:[%s10 + $0x38] sm:$0xf]
        %v1783 = vld [vmem:[%s10 + $0x3c] sm:$0xf]
        %v1784 = vld [vmem:[%s11] sm:$0x1]
        %1785 = vmatprep.subr.mxu0 0.0
        %1786 = vmatpush1.msra.mxu0 %v449
        %1787 = vmatprep.subr.mxu0 0.0
        %1788 = vmatpush1.msra.mxu0 %v450
        %1789 = vmatprep.subr.mxu0 0.0
        %1790 = vmatpush1.msra.mxu0 %v451
        %1791 = vmatprep.subr.mxu0 0.0
        %1792 = vmatpush1.msra.mxu0 %v452
        %1793 = vmatprep.subr.mxu0 0.0
        %1794 = vmatpush1.msra.mxu0 %v453
        %1795 = vmatprep.subr.mxu0 0.0
        %1796 = vmatpush1.msra.mxu0 %v454
        %1797 = vmatprep.subr.mxu0 0.0
        %1798 = vmatpush1.msra.mxu0 %v455
        %1799 = vmatprep.subr.mxu0 0.0
        %1800 = vmatpush1.msra.mxu0 %v456
        %1801 = vmatprep.subr.mxu0 0.0
        %1802 = vmatpush1.msra.mxu0 %v457
        %1803 = vmatprep.subr.mxu0 0.0
        %1804 = vmatpush1.msra.mxu0 %v458
        %1805 = vmatprep.subr.mxu0 0.0
        %1806 = vmatpush1.msra.mxu0 %v459
        %1807 = vmatprep.subr.mxu0 0.0
        %1808 = vmatpush1.msra.mxu0 %v460
        %1809 = vmatprep.subr.mxu0 0.0
        %1810 = vmatpush1.msra.mxu0 %v461
        %1811 = vmatprep.subr.mxu0 0.0
        %1812 = vmatpush1.msra.mxu0 %v462
        %1813 = vmatprep.subr.mxu0 0.0
        %1814 = vmatpush1.msra.mxu0 %v463
        %1815 = vmatprep.subr.mxu0 0.0
        %1816 = vmatpush1.msra.mxu0 %v464
        %1817 = vmatprep.subr.mxu0 0.0
        %1818 = vmatpush1.msra.mxu0 0.0
        %1819 = vmatprep.subr.mxu0 0.0
        %1820 = vmatpush1.msra.mxu0 0.0
        %1821 = vmatprep.subr.mxu0 0.0
        %1822 = vmatpush1.msra.mxu0 0.0
        %1823 = vmatprep.subr.mxu0 0.0
        %1824 = vmatpush1.msra.mxu0 0.0
        %1825 = vmatprep.subr.mxu0 0.0
        %1826 = vmatpush1.msra.mxu0 0.0
        %1827 = vmatprep.subr.mxu0 0.0
        %1828 = vmatpush1.msra.mxu0 0.0
        %1829 = vmatprep.subr.mxu0 0.0
        %1830 = vmatpush1.msra.mxu0 0.0
        %1831 = vmatprep.subr.mxu0 0.0
        %1832 = vmatpush1.msra.mxu0 0.0
        %1833 = vmatprep.subr.mxu0 0.0
        %1834 = vmatpush1.msra.mxu0 0.0
        %1835 = vmatprep.subr.mxu0 0.0
        %1836 = vmatpush1.msra.mxu0 0.0
        %1837 = vmatprep.subr.mxu0 0.0
        %1838 = vmatpush1.msra.mxu0 0.0
        %1839 = vmatprep.subr.mxu0 0.0
        %1840 = vmatpush1.msra.mxu0 0.0
        %1841 = vmatprep.subr.mxu0 0.0
        %1842 = vmatpush1.msra.mxu0 0.0
        %1843 = vmatprep.subr.mxu0 0.0
        %1844 = vmatpush1.msra.mxu0 0.0
        %1845 = vmatprep.subr.mxu0 0.0
        %1846 = vmatpush1.msra.mxu0 0.0
        %1847 = vmatprep.subr.mxu0 0.0
        %1848 = vmatpush1.msra.mxu0 0.0
        %1849 = vmatprep.mubr.f32.mxu0 0.0
        %1850 = vmatmul.mubr.f32.gmra.mrb[0].mxu0 %v1749
        %v1851 = vpop.f32.mrb[0].mxu0
        %v1852 = vadd.f32 0.0, %v1851
        %v1853 = vpop.f32.mrb[0].mxu0
        %1854 = vmatprep.mubr.f32.mxu0 0.0
        %1855 = vmatmul.mubr.f32.gmra.mrb[0].mxu0 %v1750
        %v1856 = vpop.f32.mrb[0].mxu0
        %v1857 = vadd.f32 0.0, %v1856
        %v1858 = vpop.f32.mrb[0].mxu0
        %1859 = vdwg.mxu0
        %v1860 = vsub.f32 %v1749, %v1852
        %v1861 = vsub.f32 %v1750, %v1857
        %v1862 = vmul.f32 %v1860, %v1860
        %v1863 = vmul.f32 %v1861, %v1861
        %1864 = vmatprep.subr.mxu0 0.0
        %1865 = vmatpush1.msra.mxu0 %v449
        %1866 = vmatprep.subr.mxu0 0.0
        %1867 = vmatpush1.msra.mxu0 %v450
        %1868 = vmatprep.subr.mxu0 0.0
        %1869 = vmatpush1.msra.mxu0 %v451
        %1870 = vmatprep.subr.mxu0 0.0
        %1871 = vmatpush1.msra.mxu0 %v452
        %1872 = vmatprep.subr.mxu0 0.0
        %1873 = vmatpush1.msra.mxu0 %v453
        %1874 = vmatprep.subr.mxu0 0.0
        %1875 = vmatpush1.msra.mxu0 %v454
        %1876 = vmatprep.subr.mxu0 0.0
        %1877 = vmatpush1.msra.mxu0 %v455
        %1878 = vmatprep.subr.mxu0 0.0
        %1879 = vmatpush1.msra.mxu0 %v456
        %1880 = vmatprep.subr.mxu0 0.0
        %1881 = vmatpush1.msra.mxu0 %v457
        %1882 = vmatprep.subr.mxu0 0.0
        %1883 = vmatpush1.msra.mxu0 %v458
        %1884 = vmatprep.subr.mxu0 0.0
        %1885 = vmatpush1.msra.mxu0 %v459
        %1886 = vmatprep.subr.mxu0 0.0
        %1887 = vmatpush1.msra.mxu0 %v460
        %1888 = vmatprep.subr.mxu0 0.0
        %1889 = vmatpush1.msra.mxu0 %v461
        %1890 = vmatprep.subr.mxu0 0.0
        %1891 = vmatpush1.msra.mxu0 %v462
        %1892 = vmatprep.subr.mxu0 0.0
        %1893 = vmatpush1.msra.mxu0 %v463
        %1894 = vmatprep.subr.mxu0 0.0
        %1895 = vmatpush1.msra.mxu0 %v464
        %1896 = vmatprep.subr.mxu0 0.0
        %1897 = vmatpush1.msra.mxu0 0.0
        %1898 = vmatprep.subr.mxu0 0.0
        %1899 = vmatpush1.msra.mxu0 0.0
        %1900 = vmatprep.subr.mxu0 0.0
        %1901 = vmatpush1.msra.mxu0 0.0
        %1902 = vmatprep.subr.mxu0 0.0
        %1903 = vmatpush1.msra.mxu0 0.0
        %1904 = vmatprep.subr.mxu0 0.0
        %1905 = vmatpush1.msra.mxu0 0.0
        %1906 = vmatprep.subr.mxu0 0.0
        %1907 = vmatpush1.msra.mxu0 0.0
        %1908 = vmatprep.subr.mxu0 0.0
        %1909 = vmatpush1.msra.mxu0 0.0
        %1910 = vmatprep.subr.mxu0 0.0
        %1911 = vmatpush1.msra.mxu0 0.0
        %1912 = vmatprep.subr.mxu0 0.0
        %1913 = vmatpush1.msra.mxu0 0.0
        %1914 = vmatprep.subr.mxu0 0.0
        %1915 = vmatpush1.msra.mxu0 0.0
        %1916 = vmatprep.subr.mxu0 0.0
        %1917 = vmatpush1.msra.mxu0 0.0
        %1918 = vmatprep.subr.mxu0 0.0
        %1919 = vmatpush1.msra.mxu0 0.0
        %1920 = vmatprep.subr.mxu0 0.0
        %1921 = vmatpush1.msra.mxu0 0.0
        %1922 = vmatprep.subr.mxu0 0.0
        %1923 = vmatpush1.msra.mxu0 0.0
        %1924 = vmatprep.subr.mxu0 0.0
        %1925 = vmatpush1.msra.mxu0 0.0
        %1926 = vmatprep.subr.mxu0 0.0
        %1927 = vmatpush1.msra.mxu0 0.0
        %1928 = vmatprep.mubr.f32.mxu0 0.0
        %1929 = vmatmul.mubr.f32.gmra.mrb[0].mxu0 %v1862
        %v1930 = vpop.f32.mrb[0].mxu0
        %v1931 = vadd.f32 1e-05, %v1930
        %v1932 = vpop.f32.mrb[0].mxu0
        %1933 = vmatprep.mubr.f32.mxu0 0.0
        %1934 = vmatmul.mubr.f32.gmra.mrb[0].mxu0 %v1863
        %v1935 = vpop.f32.mrb[0].mxu0
        %v1936 = vadd.f32 1e-05, %v1935
        %v1937 = vpop.f32.mrb[0].mxu0
        %1938 = vdwg.mxu0
        %v1939 = vrsqrt.pop %v1931
        %v1940 = vrsqrt.pop %v1936
        %v1941 = vmul.f32 %v1860, %v1939
        %v1942 = vmul.f32 %v1861, %v1940
        %v1943 = vpack.c.bf16 %v1942, %v1941
        %v1945 = vlaneseq
        %v1946 = vshrl.u32 %v1945, 7
        %v1947 = vsub.s32 0, %v1946
        %v1948 = vrot.slane %v1767, %v1947
        %v1966 = vunpack.c.l.b16 %v1751
        %v1967 = vunpack.c.l.b16 %v1752
        %v1968 = vunpack.c.l.b16 %v1753
        %v1969 = vunpack.c.l.b16 %v1754
        %v1970 = vunpack.c.l.b16 %v1755
        %v1971 = vunpack.c.l.b16 %v1756
        %v1972 = vunpack.c.l.b16 %v1757
        %v1973 = vunpack.c.l.b16 %v1758
        %v1974 = vunpack.c.l.b16 %v1759
        %v1975 = vunpack.c.l.b16 %v1760
        %v1976 = vunpack.c.l.b16 %v1761
        %v1977 = vunpack.c.l.b16 %v1762
        %v1978 = vunpack.c.l.b16 %v1763
        %v1979 = vunpack.c.l.b16 %v1764
        %v1980 = vunpack.c.l.b16 %v1765
        %v1981 = vunpack.c.l.b16 %v1766
        %v1982 = vpack.c.b16 %v1967, %v1966
        %v1983 = vpack.c.b16 %v1969, %v1968
        %v1984 = vpack.c.b16 %v1971, %v1970
        %v1985 = vpack.c.b16 %v1973, %v1972
        %v1986 = vpack.c.b16 %v1975, %v1974
        %v1987 = vpack.c.b16 %v1977, %v1976
        %v1988 = vpack.c.b16 %v1979, %v1978
        %v1989 = vpack.c.b16 %v1981, %v1980
        %1998 = vmatprep.subr.bf16.mxu0 0
        %1999 = vmatpush1.bf16.msra.mxu0 %v1982
        %2000 = vmatprep.subr.bf16.mxu0 0
        %2001 = vmatpush1.bf16.msra.mxu0 %v1983
        %2002 = vmatprep.subr.bf16.mxu0 0
        %2003 = vmatpush1.bf16.msra.mxu0 %v1984
        %2004 = vmatprep.subr.bf16.mxu0 0
        %2005 = vmatpush1.bf16.msra.mxu0 %v1985
        %2006 = vmatprep.subr.bf16.mxu0 0
        %2007 = vmatpush1.bf16.msra.mxu0 %v1986
        %2008 = vmatprep.subr.bf16.mxu0 0
        %2009 = vmatpush1.bf16.msra.mxu0 %v1987
        %2010 = vmatprep.subr.bf16.mxu0 0
        %2011 = vmatpush1.bf16.msra.mxu0 %v1988
        %2012 = vmatprep.subr.bf16.mxu0 0
        %2013 = vmatpush1.bf16.msra.mxu0 %v1989
        %2014 = vmatprep.subr.bf16.mxu0 0
        %2015 = vmatpush1.bf16.msra.mxu0 0
        %2016 = vmatprep.subr.bf16.mxu0 0
        %2017 = vmatpush1.bf16.msra.mxu0 0
        %2018 = vmatprep.subr.bf16.mxu0 0
        %2019 = vmatpush1.bf16.msra.mxu0 0
        %2020 = vmatprep.subr.bf16.mxu0 0
        %2021 = vmatpush1.bf16.msra.mxu0 0
        %2022 = vmatprep.subr.bf16.mxu0 0
        %2023 = vmatpush1.bf16.msra.mxu0 0
        %2024 = vmatprep.subr.bf16.mxu0 0
        %2025 = vmatpush1.bf16.msra.mxu0 0
        %2026 = vmatprep.subr.bf16.mxu0 0
        %2027 = vmatpush1.bf16.msra.mxu0 0
        %2028 = vmatprep.subr.bf16.mxu0 0
        %2029 = vmatpush1.bf16.msra.mxu0 0
        %2030 = vmatprep.mubr.bf16.mxu0 0
        %2031 = vmatmul.mubr.bf16.gmra.mrb[0].mxu0 %v1943
        %v2032 = vpop.f32.mrb[0].mxu0
        %v2033 = vadd.f32 %v1948, %v2032
        %v2034 = vpop.f32.mrb[0].mxu0
        %v2035 = vpop.f32.mrb[0].mxu0
        %v2036 = vadd.f32 %v1948, %v2035
        %v2037 = vpop.f32.mrb[0].mxu0
        %2038 = vdwg.mxu0
        %v2039 = vmax.f32 %v2033, 0.0
        %v2040 = vmax.f32 %v2036, 0.0
        %v2041 = vpack.c.bf16 %v2040, %v2039
        %v2043 = vlaneseq
        %v2044 = vshrl.u32 %v2043, 7
        %v2045 = vsub.s32 0, %v2044
        %v2046 = vrot.slane %v1784, %v2045
        %v2064 = vunpack.c.l.b16 %v1768
        %v2065 = vunpack.c.l.b16 %v1769
        %v2066 = vunpack.c.l.b16 %v1770
        %v2067 = vunpack.c.l.b16 %v1771
        %v2068 = vunpack.c.l.b16 %v1772
        %v2069 = vunpack.c.l.b16 %v1773
        %v2070 = vunpack.c.l.b16 %v1774
        %v2071 = vunpack.c.l.b16 %v1775
        %v2072 = vunpack.c.l.b16 %v1776
        %v2073 = vunpack.c.l.b16 %v1777
        %v2074 = vunpack.c.l.b16 %v1778
        %v2075 = vunpack.c.l.b16 %v1779
        %v2076 = vunpack.c.l.b16 %v1780
        %v2077 = vunpack.c.l.b16 %v1781
        %v2078 = vunpack.c.l.b16 %v1782
        %v2079 = vunpack.c.l.b16 %v1783
        %v2080 = vpack.c.b16 %v2065, %v2064
        %v2081 = vpack.c.b16 %v2067, %v2066
        %v2082 = vpack.c.b16 %v2069, %v2068
        %v2083 = vpack.c.b16 %v2071, %v2070
        %v2084 = vpack.c.b16 %v2073, %v2072
        %v2085 = vpack.c.b16 %v2075, %v2074
        %v2086 = vpack.c.b16 %v2077, %v2076
        %v2087 = vpack.c.b16 %v2079, %v2078
        %2096 = vmatprep.subr.bf16.mxu0 0
        %2097 = vmatpush1.bf16.msra.mxu0 %v2080
        %2098 = vmatprep.subr.bf16.mxu0 0
        %2099 = vmatpush1.bf16.msra.mxu0 %v2081
        %2100 = vmatprep.subr.bf16.mxu0 0
        %2101 = vmatpush1.bf16.msra.mxu0 %v2082
        %2102 = vmatprep.subr.bf16.mxu0 0
        %2103 = vmatpush1.bf16.msra.mxu0 %v2083
        %2104 = vmatprep.subr.bf16.mxu0 0
        %2105 = vmatpush1.bf16.msra.mxu0 %v2084
        %2106 = vmatprep.subr.bf16.mxu0 0
        %2107 = vmatpush1.bf16.msra.mxu0 %v2085
        %2108 = vmatprep.subr.bf16.mxu0 0
        %2109 = vmatpush1.bf16.msra.mxu0 %v2086
        %2110 = vmatprep.subr.bf16.mxu0 0
        %2111 = vmatpush1.bf16.msra.mxu0 %v2087
        %2112 = vmatprep.subr.bf16.mxu0 0
        %2113 = vmatpush1.bf16.msra.mxu0 0
        %2114 = vmatprep.subr.bf16.mxu0 0
        %2115 = vmatpush1.bf16.msra.mxu0 0
        %2116 = vmatprep.subr.bf16.mxu0 0
        %2117 = vmatpush1.bf16.msra.mxu0 0
        %2118 = vmatprep.subr.bf16.mxu0 0
        %2119 = vmatpush1.bf16.msra.mxu0 0
        %2120 = vmatprep.subr.bf16.mxu0 0
        %2121 = vmatpush1.bf16.msra.mxu0 0
        %2122 = vmatprep.subr.bf16.mxu0 0
        %2123 = vmatpush1.bf16.msra.mxu0 0
        %2124 = vmatprep.subr.bf16.mxu0 0
        %2125 = vmatpush1.bf16.msra.mxu0 0
        %2126 = vmatprep.subr.bf16.mxu0 0
        %2127 = vmatpush1.bf16.msra.mxu0 0
        %2128 = vmatprep.mubr.bf16.mxu0 0
        %2129 = vmatmul.mubr.bf16.gmra.mrb[0].mxu0 %v2041
        %v2130 = vpop.f32.mrb[0].mxu0
        %v2131 = vadd.f32 %v2046, %v2130
        %v2132 = vpop.f32.mrb[0].mxu0
        %v2133 = vpop.f32.mrb[0].mxu0
        %v2134 = vadd.f32 %v2046, %v2133
        %v2135 = vpop.f32.mrb[0].mxu0
        %2136 = vdwg.mxu0
        %v2137 = vadd.f32 %v1749, %v2131
        %v2138 = vadd.f32 %v1750, %v2134
        %2139 = vst [vmem:[%s445] sm:$0xff] %v2137
        %2140 = vst [vmem:[%s445 + $0x8] sm:$0xff] %v2138
        %s2141 = sand.u32 %s288, 1
        %s2142 = sand.u32 %s288, 1
        %s2143 = smul.addr %s2142, 16
        %s2144 = scalar_lea.vmem [#allocation3], %s2143
        // Predicated region
        $region107: #{_lambda_.5} parent=101 // pred_check
          %p2145 = pneg %p298
        $region108: #{_lambda_.5} parent=101 // pred_check_branch
          %2147 = sbr.rel (%p2145) target = $region110
        $region109: #{_lambda_.5} parent=101 // pred_region
          %s2148 = smul.addr %s23, 8
          %s2149 = scalar_lea.vmem %s12, %s2148
          // Predicated region
          $region111: #{_lambda_.5} parent=109 // pred_check
            _
          $region112: #{_lambda_.5} parent=109 // pred_check_branch
            %2151 = sbr.rel (0) target = $region114
          $region113: #{_lambda_.5} parent=109 // pred_region
            // Predicated region
            $region115: #{_lambda_.5} parent=113 // pred_check
              _
            $region116: #{_lambda_.5} parent=113 // pred_check_branch
              %2153 = sbr.rel (0) target = $region118
            $region117: #{_lambda_.5} parent=113 // pred_region
              // Predicated region
              $region130: #{_lambda_.5} parent=117 // pred_check
                _
              $region131: #{_lambda_.5} parent=117 // pred_check_branch
                %2170 = sbr.rel (0) target = $region133
              $region132: #{_lambda_.5} parent=117 // pred_region
                loop: start=0, step=1, limit=1
                $region134: #{_lambda_.5} parent=132 // loop_pre_header
                  _
                $region135: #{_lambda_.5} parent=132 // loop_header
                  %s2172 = sphi 0, %s2176
                  %p2173 = scmp.ge.s32.totalorder %s2172, 1
                  %s2177 = sphi %s2144, %s2144
                  %s2178 = sphi %s2149, %s2149
                $region136: #{_lambda_.5} parent=132 // loop_header_branch
                  %2175 = sbr.rel (%p2173) target = $region140
                $region137: #{_lambda_.5} parent=132 // loop_body
                  %v2179 = vld [vmem:[%s2177] sm:$0xff]
                  %2180 = vst [vmem:[%s2178] sm:$0xff] %v2179
                  %v2181 = vld [vmem:[%s2177 + $0x8] sm:$0xff]
                  %2182 = vst [vmem:[%s2178 + $0x10] sm:$0xff] %v2181
                $region138: #{_lambda_.5} parent=132 // loop_footer
                  %s2176 = sadd.s32 1, %s2172
                $region139: #{_lambda_.5} parent=132 // loop_footer_branch
                  %2171 = sbr.rel target = $region135
                $region140: #{_lambda_.5} parent=132 // loop_exit
                  _
              $region133: #{_lambda_.5} parent=117 // pred_fallthru
                _
              // Predicated region
              $region141: #{_lambda_.5} parent=117 // pred_check
                _
              $region142: #{_lambda_.5} parent=117 // pred_check_branch
                %2184 = sbr.rel target = $region144
              $region143: #{_lambda_.5} parent=117 // pred_region
                _
              $region144: #{_lambda_.5} parent=117 // pred_fallthru
                _
            $region118: #{_lambda_.5} parent=113 // pred_fallthru
              _
            // Predicated region
            $region119: #{_lambda_.5} parent=113 // pred_check
              _
            $region120: #{_lambda_.5} parent=113 // pred_check_branch
              %2155 = sbr.rel target = $region122
            $region121: #{_lambda_.5} parent=113 // pred_region
              loop: start=0, step=1, limit=1
              $region123: #{_lambda_.5} parent=121 // loop_pre_header
                _
              $region124: #{_lambda_.5} parent=121 // loop_header
                %s2158 = sphi 0, %s2162
                %p2159 = scmp.ge.s32.totalorder %s2158, 1
                %s2163 = sphi %s2144, %s2144
                %s2164 = sphi %s2149, %s2149
              $region125: #{_lambda_.5} parent=121 // loop_header_branch
                %2161 = sbr.rel (%p2159) target = $region129
              $region126: #{_lambda_.5} parent=121 // loop_body
                %v2165 = vld [vmem:[%s2163] sm:$0xff]
                %2166 = vst [vmem:[%s2164] sm:$0xff] %v2165
                %v2167 = vld [vmem:[%s2163 + $0x8] sm:$0xff]
                %2168 = vst [vmem:[%s2164 + $0x10] sm:$0xff] %v2167
              $region127: #{_lambda_.5} parent=121 // loop_footer
                %s2162 = sadd.s32 1, %s2158
              $region128: #{_lambda_.5} parent=121 // loop_footer_branch
                %2157 = sbr.rel target = $region124
              $region129: #{_lambda_.5} parent=121 // loop_exit
                _
            $region122: #{_lambda_.5} parent=113 // pred_fallthru
              _
          $region114: #{_lambda_.5} parent=109 // pred_fallthru
            _
          %2185 = vnop
        $region110: #{_lambda_.5} parent=101 // pred_fallthru
          _
      $region102: #{_lambda_.5} parent=5 // pred_fallthru
        _
      %p2186 = scmp.le.s32.totalorder 2, %s18
      // Predicated region
      $region145: #{_lambda_.5} parent=5 // pred_check
        %p2187 = pneg %p2186
      $region146: #{_lambda_.5} parent=5 // pred_check_branch
        %2189 = sbr.rel (%p2187) target = $region148
      $region147: #{_lambda_.5} parent=5 // pred_region
        %s2190 = ssub.s32 %s18, 2
        // Predicated region
        $region149: #{_lambda_.5} parent=147 // pred_check
          %p2191 = pneg %p304
        $region150: #{_lambda_.5} parent=147 // pred_check_branch
          %2193 = sbr.rel (%p2191) target = $region152
        $region151: #{_lambda_.5} parent=147 // pred_region
          %s2194 = sand.u32 %s289, 1
          %s2195 = sand.u32 %s289, 1
          %s2196 = smul.addr %s2195, 16
          %s2197 = scalar_lea.vmem [#allocation3], %s2196
        $region152: #{_lambda_.5} parent=147 // pred_fallthru
          _
      $region148: #{_lambda_.5} parent=5 // pred_fallthru
        _
    $region6: #{_lambda_.5} parent=1 // loop_footer
      %s22 = sadd.s32 1, %s18
    $region7: #{_lambda_.5} parent=1 // loop_footer_branch
      %17 = sbr.rel target = $region3
    $region8: #{_lambda_.5} parent=1 // loop_exit
      _

</llo_original>
